<compile_context>
chip_gen: v7x
topology: tpu7x:2x2x1
jax: 0.10.0
libtpu: 0.0.40
codegen_flags: <defaults>
</compile_context>

<pallas_src>
import jax
import jax.numpy as jnp
from jax import lax
from jax.experimental import pallas as pl
from jax.experimental.pallas import tpu as pltpu


# ----------------------------------------------------------------------------- helpers
def _round_up(x, m):
    return ((x + m - 1) // m) * m


def _pick_tile(n, want):
    """Largest multiple of 128 that divides n and is <= want, else n itself."""
    t = (min(want, n) // 128) * 128
    while t >= 128:
        if n % t == 0:
            return t
        t -= 128
    return n  # fall back to a single full-extent tile (still a legal block)


def _pad_axis(a, axis, target):
    if a.shape[axis] == target:
        return a
    pad = [(0, 0)] * a.ndim
    pad[axis] = (0, target - a.shape[axis])
    return jnp.pad(a, pad)


# ----------------------------------------------------------------------------- kernel
def _cafm_flash_kernel(
    # query-side activation tiles, channel-major (C, tq)
    xq_ref, yq_ref,
    # key/value-side activation tiles, channel-major (C, tk)
    xk_ref, yk_ref,
    # per-batch vectors (Cfp, 4): [mean(xf), mean(yf), Wv1^T mean(yf), Wv2^T mean(xf)]
    st_ref,
    # weights (channel-major / transposed) and biases
    wtT_ref, bt_ref, wcT_ref, bc_ref,
    wq1T_ref, wq2T_ref, wkv1T_ref, wkv2T_ref,
    wfaT_ref, wfbT_ref, bf_ref,
    # gamma scalars (SMEM)
    gamma_ref,
    # output tile (Cfp, tq)
    o_ref,
    # scratch
    xfq_scr, yfq_scr, q1_scr, q2_scr,
    m1_scr, l1_scr, m2_scr, l2_scr, acc1_scr, acc2_scr,
):
    ki = pl.program_id(2)
    nk = pl.num_programs(2)
    cfp = wq1T_ref.shape[0]

    st = st_ref[...]
    xfm = st[:, 0:1]          # (Cfp, 1) spatial mean of conv_trans(x)
    yfm = st[:, 1:2]          # (Cfp, 1) spatial mean of conv_cnn(y)
    vm1 = st[:, 2:3]          # (Cfp, 1) Wv1^T @ mean(yf)
    vm2 = st[:, 3:4]          # (Cfp, 1) Wv2^T @ mean(xf)
    bt = bt_ref[...]
    bc = bc_ref[...]

    # ---- per-(batch, q-tile) prologue: project the query side once and reset
    #      the online-softmax state (the reduction axis ki is innermost).
    @pl.when(ki == 0)
    def _init():
        xf_q = jnp.dot(wtT_ref[...], xq_ref[...],
                       preferred_element_type=jnp.float32) + bt        # (Cfp, tq)
        yf_q = jnp.dot(wcT_ref[...], yq_ref[...],
                       preferred_element_type=jnp.float32) + bc
        xfq_scr[...] = xf_q
        yfq_scr[...] = yf_q
        # centered queries (the query-conv bias cancels under mean subtraction)
        q1 = jnp.dot(wq1T_ref[...], xf_q - xfm, preferred_element_type=jnp.float32)
        q2 = jnp.dot(wq2T_ref[...], yf_q - yfm, preferred_element_type=jnp.float32)
        q1_scr[...] = q1.T.astype(jnp.bfloat16)   # (tq, Cfp) bf16 MXU operand
        q2_scr[...] = q2.T.astype(jnp.bfloat16)
        m1_scr[...] = jnp.full_like(m1_scr, -jnp.inf)
        m2_scr[...] = jnp.full_like(m2_scr, -jnp.inf)
        l1_scr[...] = jnp.zeros_like(l1_scr)
        l2_scr[...] = jnp.zeros_like(l2_scr)
        acc1_scr[...] = jnp.zeros_like(acc1_scr)
        acc2_scr[...] = jnp.zeros_like(acc2_scr)

    # ---- key/value-side projections for this key tile.
    #      key/query biases cancel (centered); value gets its mean re-added.
    xc_k = jnp.dot(wtT_ref[...], xk_ref[...],
                   preferred_element_type=jnp.float32) + (bt - xfm)     # (Cfp, tk)
    yc_k = jnp.dot(wcT_ref[...], yk_ref[...],
                   preferred_element_type=jnp.float32) + (bc - yfm)
    kv1 = jnp.dot(wkv1T_ref[...], yc_k, preferred_element_type=jnp.float32)  # (2Cfp, tk)
    kv2 = jnp.dot(wkv2T_ref[...], xc_k, preferred_element_type=jnp.float32)
    k1 = kv1[:cfp, :].astype(jnp.bfloat16)
    v1 = (kv1[cfp:, :] + vm1).astype(jnp.bfloat16)
    k2 = kv2[:cfp, :].astype(jnp.bfloat16)
    v2 = (kv2[cfp:, :] + vm2).astype(jnp.bfloat16)

    def online_step(q_scr, k, v, m_scr, l_scr, acc_scr):
        # (tq, tk) similarity tile: bf16 operands, f32 accumulation.
        s = jnp.dot(q_scr[...], k, preferred_element_type=jnp.float32)
        m_prev = m_scr[...]
        m_new = jnp.maximum(m_prev, jnp.max(s, axis=-1, keepdims=True))
        alpha = jnp.exp(m_prev - m_new)
        p = jnp.exp(s - m_new)                                   # f32 stats
        l_scr[...] = alpha * l_scr[...] + jnp.sum(p, axis=-1, keepdims=True)
        pv = lax.dot_general(p.astype(jnp.bfloat16), v,
                             (((1,), (1,)), ((), ())),
                             preferred_element_type=jnp.float32)  # (tq, Cfp)
        acc_scr[...] = alpha * acc_scr[...] + pv
        m_scr[...] = m_new

    online_step(q1_scr, k1, v1, m1_scr, l1_scr, acc1_scr)   # x attends over y
    online_step(q2_scr, k2, v2, m2_scr, l2_scr, acc2_scr)   # y attends over x

    # ---- epilogue: normalize (approx reciprocal, gamma folded in), residual,
    #      fuse conv, lane-dense (Cfp, tq) store.
    @pl.when(ki == nk - 1)
    def _finalize():
        inv1 = pl.reciprocal(l1_scr[...], approx=True) * gamma_ref[0]
        inv2 = pl.reciprocal(l2_scr[...], approx=True) * gamma_ref[1]
        o1 = acc1_scr[...] * inv1              # (tq, Cfp)
        o2 = acc2_scr[...] * inv2
        l2g = xfq_scr[...] + o1.T              # (Cfp, tq)
        g2l = yfq_scr[...] + o2.T
        fuse = (jnp.dot(wfaT_ref[...], l2g, preferred_element_type=jnp.float32)
                + jnp.dot(wfbT_ref[...], g2l, preferred_element_type=jnp.float32)
                + bf_ref[...])
        o_ref[...] = fuse.astype(o_ref.dtype)


# ----------------------------------------------------------------------------- wrapper
def cafm_forward(x_nchw, y_nchw, p, *, tq=256, tk=256):
    """CAFM forward.  x: (B, C_trans, H, W), y: (B, C_cnn, H, W) -> (B, C_fuse, H, W)."""
    B, Ct, H, W = x_nchw.shape
    _, Cc, _, _ = y_nchw.shape
    N = H * W
    Cf = p["wt"].shape[1]

    # Padded channel sizes: fuse channels to full lane width, inputs to sublanes.
    Cfp = _round_up(Cf, 128)
    Ctp = _round_up(Ct, 8)
    Ccp = _round_up(Cc, 8)
    tq = _pick_tile(N, tq)
    tk = _pick_tile(N, tk)
    nq, nk = N // tq, N // tk

    # NCHW -> (B, C, N): pure reshape (no transpose); zero-pad channel dims.
    x = _pad_axis(x_nchw.reshape(B, Ct, N), 1, Ctp)
    y = _pad_axis(y_nchw.reshape(B, Cc, N), 1, Ccp)

    # Zero-padded weights in (Cin, Cout) convention.
    def pw(w, ci, co):
        return _pad_axis(_pad_axis(w, 0, ci), 1, co)

    wt_p = pw(p["wt"], Ctp, Cfp); wc_p = pw(p["wc"], Ccp, Cfp)
    wq1_p = pw(p["wq1"], Cfp, Cfp); wk1_p = pw(p["wk1"], Cfp, Cfp); wv1_p = pw(p["wv1"], Cfp, Cfp)
    wq2_p = pw(p["wq2"], Cfp, Cfp); wk2_p = pw(p["wk2"], Cfp, Cfp); wv2_p = pw(p["wv2"], Cfp, Cfp)
    wfa_p = pw(p["wfa"], Cfp, Cfp); wfb_p = pw(p["wfb"], Cfp, Cfp)
    bt_row = _pad_axis(p["bt"], 1, Cfp)            # (1, Cfp)
    bc_row = _pad_axis(p["bc"], 1, Cfp)
    bf_row = _pad_axis(p["bf"], 1, Cfp)

    # Channel-major (transposed) weights for the kernel.
    wtT, wcT = wt_p.T, wc_p.T                      # (Cfp, Ctp), (Cfp, Ccp)
    wq1T, wq2T = wq1_p.T, wq2_p.T                  # (Cfp, Cfp)
    wkv1T = jnp.concatenate([wk1_p.T, wv1_p.T], axis=0)   # (2Cfp, Cfp) fused k|v
    wkv2T = jnp.concatenate([wk2_p.T, wv2_p.T], axis=0)
    wfaT, wfbT = wfa_p.T, wfb_p.T
    bt_c, bc_c, bf_c = bt_row.T, bc_row.T, bf_row.T        # (Cfp, 1)

    # Per-batch spatial-mean pre-pass (cheap O(B*N*C) reductions + tiny matmuls).
    xfm = jnp.mean(x, axis=2) @ wt_p + bt_row      # (B, Cfp) = mean_N(conv_trans(x))
    yfm = jnp.mean(y, axis=2) @ wc_p + bc_row      # (B, Cfp) = mean_N(conv_cnn(y))
    vm1 = yfm @ wv1_p                               # (B, Cfp) = Wv1^T mean(yf)
    vm2 = xfm @ wv2_p
    stats = jnp.stack([xfm, yfm, vm1, vm2], axis=-1)        # (B, Cfp, 4)

    def q_spec(c):
        return pl.BlockSpec((None, c, tq), lambda b, qi, ki: (b, 0, qi))

    def k_spec(c):
        return pl.BlockSpec((None, c, tk), lambda b, qi, ki: (b, 0, ki))

    def w_spec(a):
        return pl.BlockSpec(a.shape, lambda b, qi, ki: (0,) * a.ndim)

    in_specs = [
        q_spec(Ctp), q_spec(Ccp),                   # x, y  (query-side tiles)
        k_spec(Ctp), k_spec(Ccp),                   # x, y  (key/value-side tiles)
        pl.BlockSpec((None, Cfp, 4), lambda b, qi, ki: (b, 0, 0)),    # per-batch stats
        w_spec(wtT), w_spec(bt_c), w_spec(wcT), w_spec(bc_c),
        w_spec(wq1T), w_spec(wq2T), w_spec(wkv1T), w_spec(wkv2T),
        w_spec(wfaT), w_spec(wfbT), w_spec(bf_c),
        pl.BlockSpec(memory_space=pltpu.MemorySpace.SMEM),            # gamma scalars
    ]
    out_spec = pl.BlockSpec((None, Cfp, tq), lambda b, qi, ki: (b, 0, qi))

    scratch_shapes = [
        pltpu.VMEM((Cfp, tq), jnp.float32),         # xf (residual, channel-major)
        pltpu.VMEM((Cfp, tq), jnp.float32),         # yf
        pltpu.VMEM((tq, Cfp), jnp.bfloat16),        # centered q1 (spatial-major)
        pltpu.VMEM((tq, Cfp), jnp.bfloat16),        # centered q2
        pltpu.VMEM((tq, 1), jnp.float32),           # m1 running max
        pltpu.VMEM((tq, 1), jnp.float32),           # l1 running sum
        pltpu.VMEM((tq, 1), jnp.float32),           # m2
        pltpu.VMEM((tq, 1), jnp.float32),           # l2
        pltpu.VMEM((tq, Cfp), jnp.float32),         # acc1
        pltpu.VMEM((tq, Cfp), jnp.float32),         # acc2
    ]

    out = pl.pallas_call(
        _cafm_flash_kernel,
        grid=(B, nq, nk),
        in_specs=in_specs,
        out_specs=out_spec,
        out_shape=jax.ShapeDtypeStruct((B, Cfp, N), jnp.float32),
        scratch_shapes=scratch_shapes,
        compiler_params=pltpu.CompilerParams(
            # batch / q-tile axes are independent (megacore-shardable on v7x);
            # the key-tile reduction axis stays sequential.
            dimension_semantics=("parallel", "parallel", "arbitrary"),
            # explicit scoped VMEM: fits v7x's 64 MiB with headroom and lifts
            # the 16 MiB v5e default.
            vmem_limit_bytes=48 * 1024 * 1024,
        ),
    )(x, y, x, y, stats,
      wtT, bt_c, wcT, bc_c, wq1T, wq2T, wkv1T, wkv2T, wfaT, wfbT, bf_c,
      p["gamma"])

    # (B, Cfp, N) -> NCHW: only a cheap channel slice, no transpose.
    return out[:, :Cf, :].reshape(B, Cf, H, W)


# ----------------------------------------------------------------------------- reference
def reference_forward(x_nchw, y_nchw, p):
    """Pure-JAX (f32) reference mirroring the PyTorch forward."""
    B, Ct, H, W = x_nchw.shape
    _, Cc, _, _ = y_nchw.shape
    N = H * W
    x = x_nchw.reshape(B, Ct, N).transpose(0, 2, 1)
    y = y_nchw.reshape(B, Cc, N).transpose(0, 2, 1)
    xf = x @ p["wt"] + p["bt"]
    yf = y @ p["wc"] + p["bc"]

    def cafm(qs, kvs, wv, wq, bq, wk, bk, g):
        v = kvs @ wv
        q = qs @ wq + bq
        k = kvs @ wk + bk
        q = q - q.mean(axis=1, keepdims=True)
        k = k - k.mean(axis=1, keepdims=True)
        sim = jnp.einsum("bnc,bmc->bnm", q, k)
        pm = jax.nn.softmax(sim, axis=-1)
        return g * jnp.einsum("bnm,bmc->bnc", pm, v)

    l2g = xf + cafm(xf, yf, p["wv1"], p["wq1"], p["bq1"], p["wk1"], p["bk1"], p["gamma"][0])
    g2l = yf + cafm(yf, xf, p["wv2"], p["wq2"], p["bq2"], p["wk2"], p["bk2"], p["gamma"][1])
    fuse = l2g @ p["wfa"] + g2l @ p["wfb"] + p["bf"]
    Cf = p["wt"].shape[1]
    return fuse.transpose(0, 2, 1).reshape(B, Cf, H, W)


def make_params(key, channels_trans, channels_cnn, channels_fuse):
    ks = jax.random.split(key, 16)

    def w(k, ci, co):
        return jax.random.normal(k, (ci, co), jnp.float32) * 0.1

    def b(k, co):
        return jax.random.normal(k, (1, co), jnp.float32) * 0.05

    Cf = channels_fuse
    return {
        "wt": w(ks[0], channels_trans, Cf), "bt": b(ks[1], Cf),
        "wc": w(ks[2], channels_cnn, Cf),   "bc": b(ks[3], Cf),
        # _CAFM1 (conv_value has no bias; conv_query / conv_key have bias)
        "wv1": w(ks[4], Cf, Cf),
        "wq1": w(ks[5], Cf, Cf), "bq1": b(ks[6], Cf),
        "wk1": w(ks[7], Cf, Cf), "bk1": b(ks[8], Cf),
        # _CAFM2
        "wv2": w(ks[9], Cf, Cf),
        "wq2": w(ks[10], Cf, Cf), "bq2": b(ks[11], Cf),
        "wk2": w(ks[12], Cf, Cf), "bk2": b(ks[13], Cf),
        # fuse_conv on concat: split the (2Cf, Cf) weight into two (Cf, Cf) halves
        "wfa": w(ks[14], Cf, Cf), "wfb": w(ks[15], Cf, Cf), "bf": b(ks[0], Cf),
        # PyTorch initializes gamma to 0; use nonzero values so the attention
        # path is actually exercised in the check.
        "gamma": jnp.array([0.5, 0.25], dtype=jnp.float32),
    }


# ----------------------------------------------------------------------------- demo
if __name__ == "__main__":
    B, Ct, Cc, Cf, H, W = 2, 4, 6, 8, 16, 16       # N = 256
    key = jax.random.PRNGKey(0)
    kx, ky, kp = jax.random.split(key, 3)
    x = jax.random.normal(kx, (B, Ct, H, W), jnp.float32)
    y = jax.random.normal(ky, (B, Cc, H, W), jnp.float32)
    params = make_params(kp, Ct, Cc, Cf)

    # tq = tk = 128 -> grid (B, 2, 2): exercises the multi-tile online softmax.
    out = cafm_forward(x, y, params, tq=128, tk=128)
    out = jax.block_until_ready(out)

    ref = reference_forward(x, y, params)
    assert out.shape == (B, Cf, H, W)
    # bf16 MXU operands + approx reciprocal => slightly looser tolerance vs f32 ref.
    assert jnp.allclose(out, ref, rtol=2e-2, atol=2e-2), "mismatch vs reference"

    print("KERNEL_OK")
</pallas_src>

<mosaic_0001>
module attributes {stable_mosaic.version = 11 : i64} {
  func.func @_cafm_flash_kernel(%arg0: i32, %arg1: i32, %arg2: i32, %arg3: memref<1x8x128xf32, #tpu.memory_space<vmem>>, %arg4: memref<1x8x128xf32, #tpu.memory_space<vmem>>, %arg5: memref<1x8x128xf32, #tpu.memory_space<vmem>>, %arg6: memref<1x8x128xf32, #tpu.memory_space<vmem>>, %arg7: memref<1x128x4xf32, #tpu.memory_space<vmem>>, %arg8: memref<128x8xf32, #tpu.memory_space<vmem>>, %arg9: memref<128x1xf32, #tpu.memory_space<vmem>>, %arg10: memref<128x8xf32, #tpu.memory_space<vmem>>, %arg11: memref<128x1xf32, #tpu.memory_space<vmem>>, %arg12: memref<128x128xf32, #tpu.memory_space<vmem>>, %arg13: memref<128x128xf32, #tpu.memory_space<vmem>>, %arg14: memref<256x128xf32, #tpu.memory_space<vmem>>, %arg15: memref<256x128xf32, #tpu.memory_space<vmem>>, %arg16: memref<128x128xf32, #tpu.memory_space<vmem>>, %arg17: memref<128x128xf32, #tpu.memory_space<vmem>>, %arg18: memref<128x1xf32, #tpu.memory_space<vmem>>, %arg19: memref<2xf32, #tpu.memory_space<smem>>, %arg20: memref<1x128x128xf32, #tpu.memory_space<vmem>>, %arg21: memref<128x128xf32, #tpu.memory_space<vmem>>, %arg22: memref<128x128xf32, #tpu.memory_space<vmem>>, %arg23: memref<128x128xbf16, #tpu.memory_space<vmem>>, %arg24: memref<128x128xbf16, #tpu.memory_space<vmem>>, %arg25: memref<128x1xf32, #tpu.memory_space<vmem>>, %arg26: memref<128x1xf32, #tpu.memory_space<vmem>>, %arg27: memref<128x1xf32, #tpu.memory_space<vmem>>, %arg28: memref<128x1xf32, #tpu.memory_space<vmem>>, %arg29: memref<128x128xf32, #tpu.memory_space<vmem>>, %arg30: memref<128x128xf32, #tpu.memory_space<vmem>>) attributes {dimension_semantics = [#tpu.dimension_semantics<parallel>, #tpu.dimension_semantics<parallel>, #tpu.dimension_semantics<arbitrary>], iteration_bounds = array<i64: 2, 2, 2>, scalar_prefetch = 0 : i64, scratch_operands = 10 : i64, tpu.core_type = #tpu.core_type<tc>, window_params = [{transform_indices = @transform_0, window_bounds = array<i64: 1, 8, 128>}, {transform_indices = @transform_1, window_bounds = array<i64: 1, 8, 128>}, {transform_indices = @transform_2, window_bounds = array<i64: 1, 8, 128>}, {transform_indices = @transform_3, window_bounds = array<i64: 1, 8, 128>}, {transform_indices = @transform_4, window_bounds = array<i64: 1, 128, 4>}, {pipeline_mode = #tpu.pipeline_mode<synchronous>, transform_indices = @transform_5, window_bounds = array<i64: 128, 8>}, {pipeline_mode = #tpu.pipeline_mode<synchronous>, transform_indices = @transform_6, window_bounds = array<i64: 128, 1>}, {pipeline_mode = #tpu.pipeline_mode<synchronous>, transform_indices = @transform_7, window_bounds = array<i64: 128, 8>}, {pipeline_mode = #tpu.pipeline_mode<synchronous>, transform_indices = @transform_8, window_bounds = array<i64: 128, 1>}, {pipeline_mode = #tpu.pipeline_mode<synchronous>, transform_indices = @transform_9, window_bounds = array<i64: 128, 128>}, {pipeline_mode = #tpu.pipeline_mode<synchronous>, transform_indices = @transform_10, window_bounds = array<i64: 128, 128>}, {pipeline_mode = #tpu.pipeline_mode<synchronous>, transform_indices = @transform_11, window_bounds = array<i64: 256, 128>}, {pipeline_mode = #tpu.pipeline_mode<synchronous>, transform_indices = @transform_12, window_bounds = array<i64: 256, 128>}, {pipeline_mode = #tpu.pipeline_mode<synchronous>, transform_indices = @transform_13, window_bounds = array<i64: 128, 128>}, {pipeline_mode = #tpu.pipeline_mode<synchronous>, transform_indices = @transform_14, window_bounds = array<i64: 128, 128>}, {pipeline_mode = #tpu.pipeline_mode<synchronous>, transform_indices = @transform_15, window_bounds = array<i64: 128, 1>}, {transform_indices = @transform_16, window_bounds = array<i64: 2>}, {transform_indices = @transform_17, window_bounds = array<i64: 1, 128, 128>}]} {
    %c0 = arith.constant 0 : index
    %c0_0 = arith.constant 0 : index
    %c0_1 = arith.constant 0 : index
    %0 = vector.load %arg7[%c0, %c0_0, %c0_1] : memref<1x128x4xf32, #tpu.memory_space<vmem>>, vector<1x128x4xf32>
    %1 = vector.shape_cast %0 : vector<1x128x4xf32> to vector<128x4xf32>
    %2 = vector.extract_strided_slice %1 {offsets = [0, 0], sizes = [128, 1], strides = [1, 1]} : vector<128x4xf32> to vector<128x1xf32>
    %3 = vector.extract_strided_slice %1 {offsets = [0, 1], sizes = [128, 1], strides = [1, 1]} : vector<128x4xf32> to vector<128x1xf32>
    %4 = vector.extract_strided_slice %1 {offsets = [0, 2], sizes = [128, 1], strides = [1, 1]} : vector<128x4xf32> to vector<128x1xf32>
    %5 = vector.extract_strided_slice %1 {offsets = [0, 3], sizes = [128, 1], strides = [1, 1]} : vector<128x4xf32> to vector<128x1xf32>
    %c0_2 = arith.constant 0 : index
    %c0_3 = arith.constant 0 : index
    %6 = vector.load %arg9[%c0_2, %c0_3] : memref<128x1xf32, #tpu.memory_space<vmem>>, vector<128x1xf32>
    %c0_4 = arith.constant 0 : index
    %c0_5 = arith.constant 0 : index
    %7 = vector.load %arg11[%c0_4, %c0_5] : memref<128x1xf32, #tpu.memory_space<vmem>>, vector<128x1xf32>
    %c0_i32 = arith.constant 0 : i32
    %8 = arith.cmpi eq, %arg2, %c0_i32 : i32
    %9 = arith.extui %8 : i1 to i32
    %c0_i32_6 = arith.constant 0 : i32
    %10 = arith.cmpi ne, %9, %c0_i32_6 : i32
    scf.if %10 {
      %c0_61 = arith.constant 0 : index
      %c0_62 = arith.constant 0 : index
      %94 = vector.load %arg8[%c0_61, %c0_62] : memref<128x8xf32, #tpu.memory_space<vmem>>, vector<128x8xf32>
      %c0_63 = arith.constant 0 : index
      %c0_64 = arith.constant 0 : index
      %c0_65 = arith.constant 0 : index
      %95 = vector.load %arg3[%c0_63, %c0_64, %c0_65] : memref<1x8x128xf32, #tpu.memory_space<vmem>>, vector<1x8x128xf32>
      %96 = vector.shape_cast %95 : vector<1x8x128xf32> to vector<8x128xf32>
      %cst_66 = arith.constant dense<0.000000e+00> : vector<128x128xf32>
      %97 = tpu.matmul %94, %96, %cst_66 {dimension_numbers = #tpu.dot_dimension_numbers<[1], [0], [0], [1], [0, 0, 1, 1], [], []>} : vector<128x8xf32>, vector<8x128xf32>, vector<128x128xf32> -> vector<128x128xf32>
      %98 = vector.broadcast %6 : vector<128x1xf32> to vector<128x128xf32>
      %99 = arith.addf %97, %98 : vector<128x128xf32>
      %c0_67 = arith.constant 0 : index
      %c0_68 = arith.constant 0 : index
      %100 = vector.load %arg10[%c0_67, %c0_68] : memref<128x8xf32, #tpu.memory_space<vmem>>, vector<128x8xf32>
      %c0_69 = arith.constant 0 : index
      %c0_70 = arith.constant 0 : index
      %c0_71 = arith.constant 0 : index
      %101 = vector.load %arg4[%c0_69, %c0_70, %c0_71] : memref<1x8x128xf32, #tpu.memory_space<vmem>>, vector<1x8x128xf32>
      %102 = vector.shape_cast %101 : vector<1x8x128xf32> to vector<8x128xf32>
      %cst_72 = arith.constant dense<0.000000e+00> : vector<128x128xf32>
      %103 = tpu.matmul %100, %102, %cst_72 {dimension_numbers = #tpu.dot_dimension_numbers<[1], [0], [0], [1], [0, 0, 1, 1], [], []>} : vector<128x8xf32>, vector<8x128xf32>, vector<128x128xf32> -> vector<128x128xf32>
      %104 = vector.broadcast %7 : vector<128x1xf32> to vector<128x128xf32>
      %105 = arith.addf %103, %104 : vector<128x128xf32>
      %c0_73 = arith.constant 0 : index
      %c0_74 = arith.constant 0 : index
      %106 = vector.load %arg21[%c0_73, %c0_74] : memref<128x128xf32, #tpu.memory_space<vmem>>, vector<128x128xf32>
      tpu.vector_store %arg21[%c0_73, %c0_74], %99 {strides = array<i32>} : memref<128x128xf32, #tpu.memory_space<vmem>>, vector<128x128xf32>,
      %c0_75 = arith.constant 0 : index
      %c0_76 = arith.constant 0 : index
      %107 = vector.load %arg22[%c0_75, %c0_76] : memref<128x128xf32, #tpu.memory_space<vmem>>, vector<128x128xf32>
      tpu.vector_store %arg22[%c0_75, %c0_76], %105 {strides = array<i32>} : memref<128x128xf32, #tpu.memory_space<vmem>>, vector<128x128xf32>,
      %c0_77 = arith.constant 0 : index
      %c0_78 = arith.constant 0 : index
      %108 = vector.load %arg12[%c0_77, %c0_78] : memref<128x128xf32, #tpu.memory_space<vmem>>, vector<128x128xf32>
      %109 = vector.broadcast %2 : vector<128x1xf32> to vector<128x128xf32>
      %110 = arith.subf %99, %109 : vector<128x128xf32>
      %cst_79 = arith.constant dense<0.000000e+00> : vector<128x128xf32>
      %111 = tpu.matmul %108, %110, %cst_79 {dimension_numbers = #tpu.dot_dimension_numbers<[1], [0], [0], [1], [0, 0, 1, 1], [], []>} : vector<128x128xf32>, vector<128x128xf32>, vector<128x128xf32> -> vector<128x128xf32>
      %c0_80 = arith.constant 0 : index
      %c0_81 = arith.constant 0 : index
      %112 = vector.load %arg13[%c0_80, %c0_81] : memref<128x128xf32, #tpu.memory_space<vmem>>, vector<128x128xf32>
      %113 = vector.broadcast %3 : vector<128x1xf32> to vector<128x128xf32>
      %114 = arith.subf %105, %113 : vector<128x128xf32>
      %cst_82 = arith.constant dense<0.000000e+00> : vector<128x128xf32>
      %115 = tpu.matmul %112, %114, %cst_82 {dimension_numbers = #tpu.dot_dimension_numbers<[1], [0], [0], [1], [0, 0, 1, 1], [], []>} : vector<128x128xf32>, vector<128x128xf32>, vector<128x128xf32> -> vector<128x128xf32>
      %116 = tpu.transpose %111, [1, 0] : vector<128x128xf32> -> vector<128x128xf32>
      %117 = arith.truncf %116 : vector<128x128xf32> to vector<128x128xbf16>
      %c0_83 = arith.constant 0 : index
      %c0_84 = arith.constant 0 : index
      %118 = vector.load %arg23[%c0_83, %c0_84] : memref<128x128xbf16, #tpu.memory_space<vmem>>, vector<128x128xbf16>
      tpu.vector_store %arg23[%c0_83, %c0_84], %117 {strides = array<i32>} : memref<128x128xbf16, #tpu.memory_space<vmem>>, vector<128x128xbf16>,
      %119 = tpu.transpose %115, [1, 0] : vector<128x128xf32> -> vector<128x128xf32>
      %120 = arith.truncf %119 : vector<128x128xf32> to vector<128x128xbf16>
      %c0_85 = arith.constant 0 : index
      %c0_86 = arith.constant 0 : index
      %121 = vector.load %arg24[%c0_85, %c0_86] : memref<128x128xbf16, #tpu.memory_space<vmem>>, vector<128x128xbf16>
      tpu.vector_store %arg24[%c0_85, %c0_86], %120 {strides = array<i32>} : memref<128x128xbf16, #tpu.memory_space<vmem>>, vector<128x128xbf16>,
      %cst_87 = arith.constant 0xFF800000 : f32
      %122 = vector.broadcast %cst_87 : f32 to vector<128x1xf32>
      %c0_88 = arith.constant 0 : index
      %c0_89 = arith.constant 0 : index
      %123 = vector.load %arg25[%c0_88, %c0_89] : memref<128x1xf32, #tpu.memory_space<vmem>>, vector<128x1xf32>
      tpu.vector_store %arg25[%c0_88, %c0_89], %122 {strides = array<i32>} : memref<128x1xf32, #tpu.memory_space<vmem>>, vector<128x1xf32>,
      %cst_90 = arith.constant 0xFF800000 : f32
      %124 = vector.broadcast %cst_90 : f32 to vector<128x1xf32>
      %c0_91 = arith.constant 0 : index
      %c0_92 = arith.constant 0 : index
      %125 = vector.load %arg27[%c0_91, %c0_92] : memref<128x1xf32, #tpu.memory_space<vmem>>, vector<128x1xf32>
      tpu.vector_store %arg27[%c0_91, %c0_92], %124 {strides = array<i32>} : memref<128x1xf32, #tpu.memory_space<vmem>>, vector<128x1xf32>,
      %cst_93 = arith.constant 0.000000e+00 : f32
      %126 = vector.broadcast %cst_93 : f32 to vector<128x1xf32>
      %c0_94 = arith.constant 0 : index
      %c0_95 = arith.constant 0 : index
      %127 = vector.load %arg26[%c0_94, %c0_95] : memref<128x1xf32, #tpu.memory_space<vmem>>, vector<128x1xf32>
      tpu.vector_store %arg26[%c0_94, %c0_95], %126 {strides = array<i32>} : memref<128x1xf32, #tpu.memory_space<vmem>>, vector<128x1xf32>,
      %cst_96 = arith.constant 0.000000e+00 : f32
      %128 = vector.broadcast %cst_96 : f32 to vector<128x1xf32>
      %c0_97 = arith.constant 0 : index
      %c0_98 = arith.constant 0 : index
      %129 = vector.load %arg28[%c0_97, %c0_98] : memref<128x1xf32, #tpu.memory_space<vmem>>, vector<128x1xf32>
      tpu.vector_store %arg28[%c0_97, %c0_98], %128 {strides = array<i32>} : memref<128x1xf32, #tpu.memory_space<vmem>>, vector<128x1xf32>,
      %cst_99 = arith.constant 0.000000e+00 : f32
      %130 = vector.broadcast %cst_99 : f32 to vector<128x128xf32>
      %c0_100 = arith.constant 0 : index
      %c0_101 = arith.constant 0 : index
      %131 = vector.load %arg29[%c0_100, %c0_101] : memref<128x128xf32, #tpu.memory_space<vmem>>, vector<128x128xf32>
      tpu.vector_store %arg29[%c0_100, %c0_101], %130 {strides = array<i32>} : memref<128x128xf32, #tpu.memory_space<vmem>>, vector<128x128xf32>,
      %cst_102 = arith.constant 0.000000e+00 : f32
      %132 = vector.broadcast %cst_102 : f32 to vector<128x128xf32>
      %c0_103 = arith.constant 0 : index
      %c0_104 = arith.constant 0 : index
      %133 = vector.load %arg30[%c0_103, %c0_104] : memref<128x128xf32, #tpu.memory_space<vmem>>, vector<128x128xf32>
      tpu.vector_store %arg30[%c0_103, %c0_104], %132 {strides = array<i32>} : memref<128x128xf32, #tpu.memory_space<vmem>>, vector<128x128xf32>,
    } else {
    }
    %c0_7 = arith.constant 0 : index
    %c0_8 = arith.constant 0 : index
    %11 = vector.load %arg8[%c0_7, %c0_8] : memref<128x8xf32, #tpu.memory_space<vmem>>, vector<128x8xf32>
    %c0_9 = arith.constant 0 : index
    %c0_10 = arith.constant 0 : index
    %c0_11 = arith.constant 0 : index
    %12 = vector.load %arg5[%c0_9, %c0_10, %c0_11] : memref<1x8x128xf32, #tpu.memory_space<vmem>>, vector<1x8x128xf32>
    %13 = vector.shape_cast %12 : vector<1x8x128xf32> to vector<8x128xf32>
    %cst = arith.constant dense<0.000000e+00> : vector<128x128xf32>
    %14 = tpu.matmul %11, %13, %cst {dimension_numbers = #tpu.dot_dimension_numbers<[1], [0], [0], [1], [0, 0, 1, 1], [], []>} : vector<128x8xf32>, vector<8x128xf32>, vector<128x128xf32> -> vector<128x128xf32>
    %15 = arith.subf %6, %2 : vector<128x1xf32>
    %16 = vector.broadcast %15 : vector<128x1xf32> to vector<128x128xf32>
    %17 = arith.addf %14, %16 : vector<128x128xf32>
    %c0_12 = arith.constant 0 : index
    %c0_13 = arith.constant 0 : index
    %18 = vector.load %arg10[%c0_12, %c0_13] : memref<128x8xf32, #tpu.memory_space<vmem>>, vector<128x8xf32>
    %c0_14 = arith.constant 0 : index
    %c0_15 = arith.constant 0 : index
    %c0_16 = arith.constant 0 : index
    %19 = vector.load %arg6[%c0_14, %c0_15, %c0_16] : memref<1x8x128xf32, #tpu.memory_space<vmem>>, vector<1x8x128xf32>
    %20 = vector.shape_cast %19 : vector<1x8x128xf32> to vector<8x128xf32>
    %cst_17 = arith.constant dense<0.000000e+00> : vector<128x128xf32>
    %21 = tpu.matmul %18, %20, %cst_17 {dimension_numbers = #tpu.dot_dimension_numbers<[1], [0], [0], [1], [0, 0, 1, 1], [], []>} : vector<128x8xf32>, vector<8x128xf32>, vector<128x128xf32> -> vector<128x128xf32>
    %22 = arith.subf %7, %3 : vector<128x1xf32>
    %23 = vector.broadcast %22 : vector<128x1xf32> to vector<128x128xf32>
    %24 = arith.addf %21, %23 : vector<128x128xf32>
    %c0_18 = arith.constant 0 : index
    %c0_19 = arith.constant 0 : index
    %25 = vector.load %arg14[%c0_18, %c0_19] : memref<256x128xf32, #tpu.memory_space<vmem>>, vector<256x128xf32>
    %cst_20 = arith.constant dense<0.000000e+00> : vector<256x128xf32>
    %26 = tpu.matmul %25, %24, %cst_20 {dimension_numbers = #tpu.dot_dimension_numbers<[1], [0], [0], [1], [0, 0, 1, 1], [], []>} : vector<256x128xf32>, vector<128x128xf32>, vector<256x128xf32> -> vector<256x128xf32>
    %c0_21 = arith.constant 0 : index
    %c0_22 = arith.constant 0 : index
    %27 = vector.load %arg15[%c0_21, %c0_22] : memref<256x128xf32, #tpu.memory_space<vmem>>, vector<256x128xf32>
    %cst_23 = arith.constant dense<0.000000e+00> : vector<256x128xf32>
    %28 = tpu.matmul %27, %17, %cst_23 {dimension_numbers = #tpu.dot_dimension_numbers<[1], [0], [0], [1], [0, 0, 1, 1], [], []>} : vector<256x128xf32>, vector<128x128xf32>, vector<256x128xf32> -> vector<256x128xf32>
    %29 = vector.extract_strided_slice %26 {offsets = [0, 0], sizes = [128, 128], strides = [1, 1]} : vector<256x128xf32> to vector<128x128xf32>
    %30 = arith.truncf %29 : vector<128x128xf32> to vector<128x128xbf16>
    %31 = vector.extract_strided_slice %26 {offsets = [128, 0], sizes = [128, 128], strides = [1, 1]} : vector<256x128xf32> to vector<128x128xf32>
    %32 = vector.broadcast %4 : vector<128x1xf32> to vector<128x128xf32>
    %33 = arith.addf %31, %32 : vector<128x128xf32>
    %34 = arith.truncf %33 : vector<128x128xf32> to vector<128x128xbf16>
    %35 = vector.extract_strided_slice %28 {offsets = [0, 0], sizes = [128, 128], strides = [1, 1]} : vector<256x128xf32> to vector<128x128xf32>
    %36 = arith.truncf %35 : vector<128x128xf32> to vector<128x128xbf16>
    %37 = vector.extract_strided_slice %28 {offsets = [128, 0], sizes = [128, 128], strides = [1, 1]} : vector<256x128xf32> to vector<128x128xf32>
    %38 = vector.broadcast %5 : vector<128x1xf32> to vector<128x128xf32>
    %39 = arith.addf %37, %38 : vector<128x128xf32>
    %40 = arith.truncf %39 : vector<128x128xf32> to vector<128x128xbf16>
    %c0_24 = arith.constant 0 : index
    %c0_25 = arith.constant 0 : index
    %41 = vector.load %arg23[%c0_24, %c0_25] : memref<128x128xbf16, #tpu.memory_space<vmem>>, vector<128x128xbf16>
    %cst_26 = arith.constant dense<0.000000e+00> : vector<128x128xf32>
    %42 = tpu.matmul %41, %30, %cst_26 {dimension_numbers = #tpu.dot_dimension_numbers<[1], [0], [0], [1], [0, 0, 1, 1], [], []>} : vector<128x128xbf16>, vector<128x128xbf16>, vector<128x128xf32> -> vector<128x128xf32>
    %c0_27 = arith.constant 0 : index
    %c0_28 = arith.constant 0 : index
    %43 = vector.load %arg25[%c0_27, %c0_28] : memref<128x1xf32, #tpu.memory_space<vmem>>, vector<128x1xf32>
    %cst_29 = arith.constant dense<0xFF800000> : vector<128xf32>
    %44 = vector.multi_reduction <maximumf>, %42, %cst_29 [1] : vector<128x128xf32> to vector<128xf32>
    %45 = vector.shape_cast %44 : vector<128xf32> to vector<128x1xf32>
    %46 = arith.maximumf %43, %45 : vector<128x1xf32>
    %47 = arith.subf %43, %46 : vector<128x1xf32>
    %48 = math.exp %47 : vector<128x1xf32>
    %49 = vector.broadcast %46 : vector<128x1xf32> to vector<128x128xf32>
    %50 = arith.subf %42, %49 : vector<128x128xf32>
    %51 = math.exp %50 : vector<128x128xf32>
    %c0_30 = arith.constant 0 : index
    %c0_31 = arith.constant 0 : index
    %52 = vector.load %arg26[%c0_30, %c0_31] : memref<128x1xf32, #tpu.memory_space<vmem>>, vector<128x1xf32>
    %53 = arith.mulf %48, %52 : vector<128x1xf32>
    %cst_32 = arith.constant dense<0.000000e+00> : vector<128xf32>
    %54 = vector.multi_reduction <add>, %51, %cst_32 [1] : vector<128x128xf32> to vector<128xf32>
    %55 = vector.shape_cast %54 : vector<128xf32> to vector<128x1xf32>
    %56 = arith.addf %53, %55 : vector<128x1xf32>
    %c0_33 = arith.constant 0 : index
    %c0_34 = arith.constant 0 : index
    %57 = vector.load %arg26[%c0_33, %c0_34] : memref<128x1xf32, #tpu.memory_space<vmem>>, vector<128x1xf32>
    tpu.vector_store %arg26[%c0_33, %c0_34], %56 {strides = array<i32>} : memref<128x1xf32, #tpu.memory_space<vmem>>, vector<128x1xf32>,
    %58 = arith.truncf %51 : vector<128x128xf32> to vector<128x128xbf16>
    %cst_35 = arith.constant dense<0.000000e+00> : vector<128x128xf32>
    %59 = tpu.matmul %58, %34, %cst_35 {dimension_numbers = #tpu.dot_dimension_numbers<[1], [1], [0], [0], [0, 0, 1, 0], [], []>} : vector<128x128xbf16>, vector<128x128xbf16>, vector<128x128xf32> -> vector<128x128xf32>
    %c0_36 = arith.constant 0 : index
    %c0_37 = arith.constant 0 : index
    %60 = vector.load %arg29[%c0_36, %c0_37] : memref<128x128xf32, #tpu.memory_space<vmem>>, vector<128x128xf32>
    %61 = vector.broadcast %48 : vector<128x1xf32> to vector<128x128xf32>
    %62 = arith.mulf %61, %60 : vector<128x128xf32>
    %63 = arith.addf %62, %59 : vector<128x128xf32>
    %c0_38 = arith.constant 0 : index
    %c0_39 = arith.constant 0 : index
    %64 = vector.load %arg29[%c0_38, %c0_39] : memref<128x128xf32, #tpu.memory_space<vmem>>, vector<128x128xf32>
    tpu.vector_store %arg29[%c0_38, %c0_39], %63 {strides = array<i32>} : memref<128x128xf32, #tpu.memory_space<vmem>>, vector<128x128xf32>,
    %c0_40 = arith.constant 0 : index
    %c0_41 = arith.constant 0 : index
    %65 = vector.load %arg25[%c0_40, %c0_41] : memref<128x1xf32, #tpu.memory_space<vmem>>, vector<128x1xf32>
    tpu.vector_store %arg25[%c0_40, %c0_41], %46 {strides = array<i32>} : memref<128x1xf32, #tpu.memory_space<vmem>>, vector<128x1xf32>,
    %c0_42 = arith.constant 0 : index
    %c0_43 = arith.constant 0 : index
    %66 = vector.load %arg24[%c0_42, %c0_43] : memref<128x128xbf16, #tpu.memory_space<vmem>>, vector<128x128xbf16>
    %cst_44 = arith.constant dense<0.000000e+00> : vector<128x128xf32>
    %67 = tpu.matmul %66, %36, %cst_44 {dimension_numbers = #tpu.dot_dimension_numbers<[1], [0], [0], [1], [0, 0, 1, 1], [], []>} : vector<128x128xbf16>, vector<128x128xbf16>, vector<128x128xf32> -> vector<128x128xf32>
    %c0_45 = arith.constant 0 : index
    %c0_46 = arith.constant 0 : index
    %68 = vector.load %arg27[%c0_45, %c0_46] : memref<128x1xf32, #tpu.memory_space<vmem>>, vector<128x1xf32>
    %cst_47 = arith.constant dense<0xFF800000> : vector<128xf32>
    %69 = vector.multi_reduction <maximumf>, %67, %cst_47 [1] : vector<128x128xf32> to vector<128xf32>
    %70 = vector.shape_cast %69 : vector<128xf32> to vector<128x1xf32>
    %71 = arith.maximumf %68, %70 : vector<128x1xf32>
    %72 = arith.subf %68, %71 : vector<128x1xf32>
    %73 = math.exp %72 : vector<128x1xf32>
    %74 = vector.broadcast %71 : vector<128x1xf32> to vector<128x128xf32>
    %75 = arith.subf %67, %74 : vector<128x128xf32>
    %76 = math.exp %75 : vector<128x128xf32>
    %c0_48 = arith.constant 0 : index
    %c0_49 = arith.constant 0 : index
    %77 = vector.load %arg28[%c0_48, %c0_49] : memref<128x1xf32, #tpu.memory_space<vmem>>, vector<128x1xf32>
    %78 = arith.mulf %73, %77 : vector<128x1xf32>
    %cst_50 = arith.constant dense<0.000000e+00> : vector<128xf32>
    %79 = vector.multi_reduction <add>, %76, %cst_50 [1] : vector<128x128xf32> to vector<128xf32>
    %80 = vector.shape_cast %79 : vector<128xf32> to vector<128x1xf32>
    %81 = arith.addf %78, %80 : vector<128x1xf32>
    %c0_51 = arith.constant 0 : index
    %c0_52 = arith.constant 0 : index
    %82 = vector.load %arg28[%c0_51, %c0_52] : memref<128x1xf32, #tpu.memory_space<vmem>>, vector<128x1xf32>
    tpu.vector_store %arg28[%c0_51, %c0_52], %81 {strides = array<i32>} : memref<128x1xf32, #tpu.memory_space<vmem>>, vector<128x1xf32>,
    %83 = arith.truncf %76 : vector<128x128xf32> to vector<128x128xbf16>
    %cst_53 = arith.constant dense<0.000000e+00> : vector<128x128xf32>
    %84 = tpu.matmul %83, %40, %cst_53 {dimension_numbers = #tpu.dot_dimension_numbers<[1], [1], [0], [0], [0, 0, 1, 0], [], []>} : vector<128x128xbf16>, vector<128x128xbf16>, vector<128x128xf32> -> vector<128x128xf32>
    %c0_54 = arith.constant 0 : index
    %c0_55 = arith.constant 0 : index
    %85 = vector.load %arg30[%c0_54, %c0_55] : memref<128x128xf32, #tpu.memory_space<vmem>>, vector<128x128xf32>
    %86 = vector.broadcast %73 : vector<128x1xf32> to vector<128x128xf32>
    %87 = arith.mulf %86, %85 : vector<128x128xf32>
    %88 = arith.addf %87, %84 : vector<128x128xf32>
    %c0_56 = arith.constant 0 : index
    %c0_57 = arith.constant 0 : index
    %89 = vector.load %arg30[%c0_56, %c0_57] : memref<128x128xf32, #tpu.memory_space<vmem>>, vector<128x128xf32>
    tpu.vector_store %arg30[%c0_56, %c0_57], %88 {strides = array<i32>} : memref<128x128xf32, #tpu.memory_space<vmem>>, vector<128x128xf32>,
    %c0_58 = arith.constant 0 : index
    %c0_59 = arith.constant 0 : index
    %90 = vector.load %arg27[%c0_58, %c0_59] : memref<128x1xf32, #tpu.memory_space<vmem>>, vector<128x1xf32>
    tpu.vector_store %arg27[%c0_58, %c0_59], %71 {strides = array<i32>} : memref<128x1xf32, #tpu.memory_space<vmem>>, vector<128x1xf32>,
    %c1_i32 = arith.constant 1 : i32
    %91 = arith.cmpi eq, %arg2, %c1_i32 : i32
    %92 = arith.extui %91 : i1 to i32
    %c0_i32_60 = arith.constant 0 : i32
    %93 = arith.cmpi ne, %92, %c0_i32_60 : i32
    scf.if %93 {
      %c0_61 = arith.constant 0 : index
      %c0_62 = arith.constant 0 : index
      %94 = vector.load %arg26[%c0_61, %c0_62] : memref<128x1xf32, #tpu.memory_space<vmem>>, vector<128x1xf32>
      %95 = tpu.reciprocal %94 {approx = true} : vector<128x1xf32> -> vector<128x1xf32>
      %c0_63 = arith.constant 0 : index
      %96 = memref.load %arg19[%c0_63] : memref<2xf32, #tpu.memory_space<smem>>
      %97 = vector.broadcast %96 : f32 to vector<128x1xf32>
      %98 = arith.mulf %95, %97 : vector<128x1xf32>
      %c0_64 = arith.constant 0 : index
      %c0_65 = arith.constant 0 : index
      %99 = vector.load %arg28[%c0_64, %c0_65] : memref<128x1xf32, #tpu.memory_space<vmem>>, vector<128x1xf32>
      %100 = tpu.reciprocal %99 {approx = true} : vector<128x1xf32> -> vector<128x1xf32>
      %c1 = arith.constant 1 : index
      %101 = memref.load %arg19[%c1] : memref<2xf32, #tpu.memory_space<smem>>
      %102 = vector.broadcast %101 : f32 to vector<128x1xf32>
      %103 = arith.mulf %100, %102 : vector<128x1xf32>
      %c0_66 = arith.constant 0 : index
      %c0_67 = arith.constant 0 : index
      %104 = vector.load %arg29[%c0_66, %c0_67] : memref<128x128xf32, #tpu.memory_space<vmem>>, vector<128x128xf32>
      %105 = vector.broadcast %98 : vector<128x1xf32> to vector<128x128xf32>
      %106 = arith.mulf %104, %105 : vector<128x128xf32>
      %c0_68 = arith.constant 0 : index
      %c0_69 = arith.constant 0 : index
      %107 = vector.load %arg30[%c0_68, %c0_69] : memref<128x128xf32, #tpu.memory_space<vmem>>, vector<128x128xf32>
      %108 = vector.broadcast %103 : vector<128x1xf32> to vector<128x128xf32>
      %109 = arith.mulf %107, %108 : vector<128x128xf32>
      %c0_70 = arith.constant 0 : index
      %c0_71 = arith.constant 0 : index
      %110 = vector.load %arg21[%c0_70, %c0_71] : memref<128x128xf32, #tpu.memory_space<vmem>>, vector<128x128xf32>
      %111 = tpu.transpose %106, [1, 0] : vector<128x128xf32> -> vector<128x128xf32>
      %112 = arith.addf %110, %111 : vector<128x128xf32>
      %c0_72 = arith.constant 0 : index
      %c0_73 = arith.constant 0 : index
      %113 = vector.load %arg22[%c0_72, %c0_73] : memref<128x128xf32, #tpu.memory_space<vmem>>, vector<128x128xf32>
      %114 = tpu.transpose %109, [1, 0] : vector<128x128xf32> -> vector<128x128xf32>
      %115 = arith.addf %113, %114 : vector<128x128xf32>
      %c0_74 = arith.constant 0 : index
      %c0_75 = arith.constant 0 : index
      %116 = vector.load %arg16[%c0_74, %c0_75] : memref<128x128xf32, #tpu.memory_space<vmem>>, vector<128x128xf32>
      %cst_76 = arith.constant dense<0.000000e+00> : vector<128x128xf32>
      %117 = tpu.matmul %116, %112, %cst_76 {dimension_numbers = #tpu.dot_dimension_numbers<[1], [0], [0], [1], [0, 0, 1, 1], [], []>} : vector<128x128xf32>, vector<128x128xf32>, vector<128x128xf32> -> vector<128x128xf32>
      %c0_77 = arith.constant 0 : index
      %c0_78 = arith.constant 0 : index
      %118 = vector.load %arg17[%c0_77, %c0_78] : memref<128x128xf32, #tpu.memory_space<vmem>>, vector<128x128xf32>
      %cst_79 = arith.constant dense<0.000000e+00> : vector<128x128xf32>
      %119 = tpu.matmul %118, %115, %cst_79 {dimension_numbers = #tpu.dot_dimension_numbers<[1], [0], [0], [1], [0, 0, 1, 1], [], []>} : vector<128x128xf32>, vector<128x128xf32>, vector<128x128xf32> -> vector<128x128xf32>
      %120 = arith.addf %117, %119 : vector<128x128xf32>
      %c0_80 = arith.constant 0 : index
      %c0_81 = arith.constant 0 : index
      %121 = vector.load %arg18[%c0_80, %c0_81] : memref<128x1xf32, #tpu.memory_space<vmem>>, vector<128x1xf32>
      %122 = vector.broadcast %121 : vector<128x1xf32> to vector<128x128xf32>
      %123 = arith.addf %120, %122 : vector<128x128xf32>
      %c0_82 = arith.constant 0 : index
      %c0_83 = arith.constant 0 : index
      %c0_84 = arith.constant 0 : index
      %124 = vector.load %arg20[%c0_82, %c0_83, %c0_84] : memref<1x128x128xf32, #tpu.memory_space<vmem>>, vector<1x128x128xf32>
      %125 = vector.shape_cast %124 : vector<1x128x128xf32> to vector<128x128xf32>
      %126 = vector.shape_cast %123 : vector<128x128xf32> to vector<1x128x128xf32>
      tpu.vector_store %arg20[%c0_82, %c0_83, %c0_84], %126 {strides = array<i32>} : memref<1x128x128xf32, #tpu.memory_space<vmem>>, vector<1x128x128xf32>,
    } else {
    }
    return
  }
  func.func @transform_0(%arg0: i32, %arg1: i32, %arg2: i32) -> (i32, i32, i32) {
    %c0_i32 = arith.constant 0 : i32
    %c0_i32_0 = arith.constant 0 : i32
    return %arg0, %c0_i32, %arg1 : i32, i32, i32
  }
  func.func @transform_1(%arg0: i32, %arg1: i32, %arg2: i32) -> (i32, i32, i32) {
    %c0_i32 = arith.constant 0 : i32
    %c0_i32_0 = arith.constant 0 : i32
    return %arg0, %c0_i32, %arg1 : i32, i32, i32
  }
  func.func @transform_2(%arg0: i32, %arg1: i32, %arg2: i32) -> (i32, i32, i32) {
    %c0_i32 = arith.constant 0 : i32
    %c0_i32_0 = arith.constant 0 : i32
    return %arg0, %c0_i32, %arg2 : i32, i32, i32
  }
  func.func @transform_3(%arg0: i32, %arg1: i32, %arg2: i32) -> (i32, i32, i32) {
    %c0_i32 = arith.constant 0 : i32
    %c0_i32_0 = arith.constant 0 : i32
    return %arg0, %c0_i32, %arg2 : i32, i32, i32
  }
  func.func @transform_4(%arg0: i32, %arg1: i32, %arg2: i32) -> (i32, i32, i32) {
    %c0_i32 = arith.constant 0 : i32
    %c0_i32_0 = arith.constant 0 : i32
    %c0_i32_1 = arith.constant 0 : i32
    return %arg0, %c0_i32, %c0_i32_0 : i32, i32, i32
  }
  func.func @transform_5(%arg0: i32, %arg1: i32, %arg2: i32) -> (i32, i32) {
    %c0_i32 = arith.constant 0 : i32
    %c0_i32_0 = arith.constant 0 : i32
    %c0_i32_1 = arith.constant 0 : i32
    return %c0_i32, %c0_i32_0 : i32, i32
  }
  func.func @transform_6(%arg0: i32, %arg1: i32, %arg2: i32) -> (i32, i32) {
    %c0_i32 = arith.constant 0 : i32
    %c0_i32_0 = arith.constant 0 : i32
    %c0_i32_1 = arith.constant 0 : i32
    return %c0_i32, %c0_i32_0 : i32, i32
  }
  func.func @transform_7(%arg0: i32, %arg1: i32, %arg2: i32) -> (i32, i32) {
    %c0_i32 = arith.constant 0 : i32
    %c0_i32_0 = arith.constant 0 : i32
    %c0_i32_1 = arith.constant 0 : i32
    return %c0_i32, %c0_i32_0 : i32, i32
  }
  func.func @transform_8(%arg0: i32, %arg1: i32, %arg2: i32) -> (i32, i32) {
    %c0_i32 = arith.constant 0 : i32
    %c0_i32_0 = arith.constant 0 : i32
    %c0_i32_1 = arith.constant 0 : i32
    return %c0_i32, %c0_i32_0 : i32, i32
  }
  func.func @transform_9(%arg0: i32, %arg1: i32, %arg2: i32) -> (i32, i32) {
    %c0_i32 = arith.constant 0 : i32
    %c0_i32_0 = arith.constant 0 : i32
    %c0_i32_1 = arith.constant 0 : i32
    return %c0_i32, %c0_i32_0 : i32, i32
  }
  func.func @transform_10(%arg0: i32, %arg1: i32, %arg2: i32) -> (i32, i32) {
    %c0_i32 = arith.constant 0 : i32
    %c0_i32_0 = arith.constant 0 : i32
    %c0_i32_1 = arith.constant 0 : i32
    return %c0_i32, %c0_i32_0 : i32, i32
  }
  func.func @transform_11(%arg0: i32, %arg1: i32, %arg2: i32) -> (i32, i32) {
    %c0_i32 = arith.constant 0 : i32
    %c0_i32_0 = arith.constant 0 : i32
    %c0_i32_1 = arith.constant 0 : i32
    return %c0_i32, %c0_i32_0 : i32, i32
  }
  func.func @transform_12(%arg0: i32, %arg1: i32, %arg2: i32) -> (i32, i32) {
    %c0_i32 = arith.constant 0 : i32
    %c0_i32_0 = arith.constant 0 : i32
    %c0_i32_1 = arith.constant 0 : i32
    return %c0_i32, %c0_i32_0 : i32, i32
  }
  func.func @transform_13(%arg0: i32, %arg1: i32, %arg2: i32) -> (i32, i32) {
    %c0_i32 = arith.constant 0 : i32
    %c0_i32_0 = arith.constant 0 : i32
    %c0_i32_1 = arith.constant 0 : i32
    return %c0_i32, %c0_i32_0 : i32, i32
  }
  func.func @transform_14(%arg0: i32, %arg1: i32, %arg2: i32) -> (i32, i32) {
    %c0_i32 = arith.constant 0 : i32
    %c0_i32_0 = arith.constant 0 : i32
    %c0_i32_1 = arith.constant 0 : i32
    return %c0_i32, %c0_i32_0 : i32, i32
  }
  func.func @transform_15(%arg0: i32, %arg1: i32, %arg2: i32) -> (i32, i32) {
    %c0_i32 = arith.constant 0 : i32
    %c0_i32_0 = arith.constant 0 : i32
    %c0_i32_1 = arith.constant 0 : i32
    return %c0_i32, %c0_i32_0 : i32, i32
  }
  func.func @transform_16(%arg0: i32, %arg1: i32, %arg2: i32) -> i32 {
    %c0_i32 = arith.constant 0 : i32
    %c0_i32_0 = arith.constant 0 : i32
    return %c0_i32 : i32
  }
  func.func @transform_17(%arg0: i32, %arg1: i32, %arg2: i32) -> (i32, i32, i32) {
    %c0_i32 = arith.constant 0 : i32
    %c0_i32_0 = arith.constant 0 : i32
    return %arg0, %c0_i32, %arg1 : i32, i32, i32
  }
}

</mosaic_0001>

<llo_original>
// kernel: tpu_custom_call.1
$region0: #{tpu_custom_call.1}
  #allocation0 [shape = 'u32[]', space=smem, size = 0x4, offset = 0x4, fixed_abs, tag = 'smem constant byte address 0x4 - core index']
  #allocation1 [shape = 'u32[144,128]{1,0:T(1,128)}', space=vmem, size = 0x12000, scoped, tag = 'internal scratch']
  #allocation2 [shape = 'f32[128,128]{1,0:T(8,128)}', space=vmem, size = 0x10000, scoped, tag = 'scratch operand']
  #allocation3 [shape = 'f32[128,128]{1,0:T(8,128)}', space=vmem, size = 0x10000, scoped, tag = 'scratch operand']
  #allocation4 [shape = 'bf16[128,128]{1,0:T(16,128)(2,1)}', space=vmem, size = 0x8000, scoped, tag = 'scratch operand']
  #allocation5 [shape = 'bf16[128,128]{1,0:T(16,128)(2,1)}', space=vmem, size = 0x8000, scoped, tag = 'scratch operand']
  #allocation6 [shape = 'f32[128,1]{1,0:T(8,128)}', space=vmem, size = 0x10000, scoped, tag = 'scratch operand']
  #allocation7 [shape = 'f32[128,1]{1,0:T(8,128)}', space=vmem, size = 0x10000, scoped, tag = 'scratch operand']
  #allocation8 [shape = 'f32[128,1]{1,0:T(8,128)}', space=vmem, size = 0x10000, scoped, tag = 'scratch operand']
  #allocation9 [shape = 'f32[128,1]{1,0:T(8,128)}', space=vmem, size = 0x10000, scoped, tag = 'scratch operand']
  #allocation10 [shape = 'f32[128,128]{1,0:T(8,128)}', space=vmem, size = 0x10000, scoped, tag = 'scratch operand']
  #allocation11 [shape = 'f32[128,128]{1,0:T(8,128)}', space=vmem, size = 0x10000, scoped, tag = 'scratch operand']
  %s0 = inlined_call_operand.hbm [shape: f32[2,8,256], index: 0, kind: input, shape index: {}]
  %s1 = inlined_call_operand.hbm [shape: f32[2,8,256], index: 1, kind: input, shape index: {}]
  %s2 = inlined_call_operand.hbm [shape: f32[2,8,256], index: 2, kind: input, shape index: {}]
  %s3 = inlined_call_operand.vmem [shape: f32[2,8,256], index: 3, kind: input, shape index: {}]
  %s4 = inlined_call_operand.vmem [shape: f32[2,128,4], index: 4, kind: input, shape index: {}]
  %s5 = inlined_call_operand.vmem [shape: f32[128,8], index: 5, kind: input, shape index: {}]
  %s6 = inlined_call_operand.vmem [shape: f32[128,1], index: 6, kind: input, shape index: {}]
  %s7 = inlined_call_operand.vmem [shape: f32[128,8], index: 7, kind: input, shape index: {}]
  %s8 = inlined_call_operand.vmem [shape: f32[128,1], index: 8, kind: input, shape index: {}]
  %s9 = inlined_call_operand.vmem [shape: f32[128,128], index: 9, kind: input, shape index: {}]
  %s10 = inlined_call_operand.vmem [shape: f32[128,128], index: 10, kind: input, shape index: {}]
  %s11 = inlined_call_operand.vmem [shape: f32[256,128], index: 11, kind: input, shape index: {}]
  %s12 = inlined_call_operand.vmem [shape: f32[256,128], index: 12, kind: input, shape index: {}]
  %s13 = inlined_call_operand.vmem [shape: f32[128,128], index: 13, kind: input, shape index: {}]
  %s14 = inlined_call_operand.hbm [shape: f32[128,128], index: 14, kind: input, shape index: {}]
  %s15 = inlined_call_operand.vmem [shape: f32[128,1], index: 15, kind: input, shape index: {}]
  %s16 = inlined_call_operand.vmem [shape: f32[2], index: 16, kind: input, shape index: {}]
  %s17 = inlined_call_operand.hbm [shape: f32[2,128,256], index: 17, kind: output, shape index: {}]
  %s18 = sld [smem:[#allocation0]]
  $region129: #{tpu_custom_call.1} parent=0
    _
  %s20 = ssub.s32 1, %s18
  %s21 = scalar_select 0, %s20, %s18
  $region1: #{tpu_custom_call.1} parent=0
    #allocation12 [shape = 'u8[8192]{0}', space=vmem, size = 0x2000, scoped, tag = 'input window, operand 0']
    #allocation13 [shape = 's32[2]{0}', space=sflag, size = 0x8, scoped, tag = 'scoped memory for tpu_custom_call.1']
    #allocation14 [shape = 's32[2]{0}', space=sflag, size = 0x8, scoped, tag = 'scoped memory for tpu_custom_call.1']
    #allocation15 [shape = 's32[2]{0}', space=sflag, size = 0x8, scoped, tag = 'scoped memory for tpu_custom_call.1']
    #allocation16 [shape = 'u8[8192]{0}', space=vmem, size = 0x2000, scoped, tag = 'input window, operand 1']
    #allocation17 [shape = 's32[2]{0}', space=sflag, size = 0x8, scoped, tag = 'scoped memory for tpu_custom_call.1']
    #allocation18 [shape = 'u8[8192]{0}', space=vmem, size = 0x2000, scoped, tag = 'input window, operand 2']
    #allocation19 [shape = 'u8[65536]{0}', space=vmem, size = 0x10000, scoped, tag = 'input window, operand 14, single buffered']
    #allocation20 [shape = 's32[1]{0}', space=sflag, size = 0x4, scoped, tag = 'scoped memory for tpu_custom_call.1']
    #allocation21 [shape = 'u8[512]{0}', space=smem, size = 0x200, scoped, tag = 'input window, operand 16, single buffered']
    #allocation22 [shape = 'u8[131072]{0}', space=vmem, size = 0x20000, scoped, tag = 'output window, operand 0']
    %22 = vsyncpa [#allocation13], 0
    %s23 = scalar_lea.sflag [#allocation13], 1
    %24 = vsyncpa %s23, 0
    %25 = vsyncpa [#allocation17], 0
    %s26 = scalar_lea.sflag [#allocation17], 1
    %27 = vsyncpa %s26, 0
    %28 = vsyncpa [#allocation20], 0
    %29 = vsyncpa [#allocation15], 0
    %30 = vsyncpa [#allocation14], 0
    %s31 = scalar_lea.sflag [#allocation14], 1
    %32 = vsyncpa %s31, 0
    loop: start=0, step=1, limit=10
    $region2: #{tpu_custom_call.1} parent=1 // loop_pre_header
      _
    $region3: #{tpu_custom_call.1} parent=1 // loop_header
      %s34 = sphi 0, %s38
      %p35 = scmp.ge.s32.totalorder %s34, 10
      %s41 = sphi 0, %s60
      %s42 = sphi 0, %s56
      %s43 = sphi 0, %s52
      %s44 = sphi 0, %s41
      %s45 = sphi 0, %s42
      %s46 = sphi 0, %s43
      %s47 = sphi 0, %s44
      %s48 = sphi 0, %s45
      %s49 = sphi 0, %s46
      %s65 = sphi 0, %s67
      %s68 = sphi 0, %s65
      %s69 = sphi 0, %s68
      %s85 = sphi 0, %s69
      %s93 = sphi 0, %s95
      %s96 = sphi 0, %s93
      %s97 = sphi 0, %s96
      %s113 = sphi 0, %s97
      %s121 = sphi 0, %s123
      %s124 = sphi 0, %s121
      %s125 = sphi 0, %s124
      %s141 = sphi 0, %s125
      %s149 = sphi 0, %s151
      %s152 = sphi 0, %s149
      %s153 = sphi 0, %s152
      %s169 = sphi 0, %s153
      %s175 = sphi 0, %s177
      %s178 = sphi 0, %s175
      %s179 = sphi 0, %s178
      %s195 = sphi 0, %s179
      %s199 = sphi 0, %s199
      %s201 = sphi 0, %s199
      %s202 = sphi 0, %s201
      %s216 = sphi 0, %s202
      %s220 = sphi 0, %s220
      %s222 = sphi 0, %s220
      %s223 = sphi 0, %s222
      %s237 = sphi 0, %s223
      %s241 = sphi 0, %s241
      %s243 = sphi 0, %s241
      %s244 = sphi 0, %s243
      %s258 = sphi 0, %s244
      %s262 = sphi 0, %s262
      %s264 = sphi 0, %s262
      %s265 = sphi 0, %s264
      %s279 = sphi 0, %s265
      %s283 = sphi 0, %s283
      %s285 = sphi 0, %s283
      %s286 = sphi 0, %s285
      %s300 = sphi 0, %s286
      %s304 = sphi 0, %s304
      %s306 = sphi 0, %s304
      %s307 = sphi 0, %s306
      %s321 = sphi 0, %s307
      %s325 = sphi 0, %s325
      %s327 = sphi 0, %s325
      %s328 = sphi 0, %s327
      %s342 = sphi 0, %s328
      %s346 = sphi 0, %s346
      %s348 = sphi 0, %s346
      %s349 = sphi 0, %s348
      %s363 = sphi 0, %s349
      %s367 = sphi 0, %s367
      %s369 = sphi 0, %s367
      %s370 = sphi 0, %s369
      %s384 = sphi 0, %s370
      %s388 = sphi 0, %s388
      %s390 = sphi 0, %s388
      %s391 = sphi 0, %s390
      %s405 = sphi 0, %s391
      %s409 = sphi 0, %s409
      %s411 = sphi 0, %s409
      %s412 = sphi 0, %s411
      %s426 = sphi 0, %s412
      %s430 = sphi 0, %s430
      %s432 = sphi 0, %s430
      %s433 = sphi 0, %s432
      %s447 = sphi 0, %s433
      %s455 = sphi 0, %s457
      %s458 = sphi 0, %s455
      %s459 = sphi 0, %s458
      %s475 = sphi 0, %s459
    $region4: #{tpu_custom_call.1} parent=1 // loop_header_branch
      %37 = sbr.rel (%p35) target = $region8
    $region5: #{tpu_custom_call.1} parent=1 // loop_body
      %s39 = ssub.s32 %s34, 1
      %s40 = ssub.s32 %s34, 2
      %s50 = sadd.s32 1, %s43
      %p51 = scmp.ge.s32.totalorder %s50, 2
      %s52 = scalar_select %p51, 0, %s50
      %s53 = sadd.s32 1, %s42
      %s54 = scalar_select %p51, %s53, %s42
      %p55 = scmp.ge.s32.totalorder %s54, 2
      %s56 = scalar_select %p55, 0, %s54
      %s57 = sadd.s32 1, %s41
      %s58 = scalar_select %p55, %s57, %s41
      %p59 = scmp.ge.s32.totalorder %s58, 2
      %s60 = scalar_select %p59, 0, %s58
      %s61 = ssub.s32 %s41, %s60
      %s62 = ssub.s32 %s42, %s56
      %s63 = sor.u32 %s61, %s62
      %p64 = scmp.eq.s32.totalorder %s63, 0
      %s66 = sadd.s32 %s65, 1
      %s67 = scalar_select %p64, %s65, %s66
      %p70 = pneg %p64
      %p71 = scmp.eq.s32.totalorder %s34, 7
      %p72 = por %p70, %p71
      %p73 = scmp.ne.s32.totalorder %s65, %s68
      %p74 = scmp.eq.s32.totalorder %s34, 0
      %p75 = por %p73, %p74
      %p76 = scmp.ne.s32.totalorder %s65, %s68
      %p77 = scmp.eq.s32.totalorder %s39, 7
      %p78 = por %p76, %p77
      %p79 = scmp.ne.s32.totalorder %s68, %s69
      %p80 = scmp.eq.s32.totalorder %s39, 0
      %p81 = por %p79, %p80
      %p82 = scmp.ne.s32.totalorder %s68, %s69
      %p83 = scmp.eq.s32.totalorder %s40, 7
      %p84 = por %p82, %p83
      %p86 = scmp.ne.s32.totalorder %s69, %s85
      %p87 = scmp.eq.s32.totalorder %s40, 0
      %p88 = por %p86, %p87
      %s89 = ssub.s32 %s41, %s60
      %s90 = ssub.s32 %s42, %s56
      %s91 = sor.u32 %s89, %s90
      %p92 = scmp.eq.s32.totalorder %s91, 0
      %s94 = sadd.s32 %s93, 1
      %s95 = scalar_select %p92, %s93, %s94
      %p98 = pneg %p92
      %p99 = scmp.eq.s32.totalorder %s34, 7
      %p100 = por %p98, %p99
      %p101 = scmp.ne.s32.totalorder %s93, %s96
      %p102 = scmp.eq.s32.totalorder %s34, 0
      %p103 = por %p101, %p102
      %p104 = scmp.ne.s32.totalorder %s93, %s96
      %p105 = scmp.eq.s32.totalorder %s39, 7
      %p106 = por %p104, %p105
      %p107 = scmp.ne.s32.totalorder %s96, %s97
      %p108 = scmp.eq.s32.totalorder %s39, 0
      %p109 = por %p107, %p108
      %p110 = scmp.ne.s32.totalorder %s96, %s97
      %p111 = scmp.eq.s32.totalorder %s40, 7
      %p112 = por %p110, %p111
      %p114 = scmp.ne.s32.totalorder %s97, %s113
      %p115 = scmp.eq.s32.totalorder %s40, 0
      %p116 = por %p114, %p115
      %s117 = ssub.s32 %s41, %s60
      %s118 = ssub.s32 %s43, %s52
      %s119 = sor.u32 %s117, %s118
      %p120 = scmp.eq.s32.totalorder %s119, 0
      %s122 = sadd.s32 %s121, 1
      %s123 = scalar_select %p120, %s121, %s122
      %p126 = pneg %p120
      %p127 = scmp.eq.s32.totalorder %s34, 7
      %p128 = por %p126, %p127
      %p129 = scmp.ne.s32.totalorder %s121, %s124
      %p130 = scmp.eq.s32.totalorder %s34, 0
      %p131 = por %p129, %p130
      %p132 = scmp.ne.s32.totalorder %s121, %s124
      %p133 = scmp.eq.s32.totalorder %s39, 7
      %p134 = por %p132, %p133
      %p135 = scmp.ne.s32.totalorder %s124, %s125
      %p136 = scmp.eq.s32.totalorder %s39, 0
      %p137 = por %p135, %p136
      %p138 = scmp.ne.s32.totalorder %s124, %s125
      %p139 = scmp.eq.s32.totalorder %s40, 7
      %p140 = por %p138, %p139
      %p142 = scmp.ne.s32.totalorder %s125, %s141
      %p143 = scmp.eq.s32.totalorder %s40, 0
      %p144 = por %p142, %p143
      %s145 = ssub.s32 %s41, %s60
      %s146 = ssub.s32 %s43, %s52
      %s147 = sor.u32 %s145, %s146
      %p148 = scmp.eq.s32.totalorder %s147, 0
      %s150 = sadd.s32 %s149, 1
      %s151 = scalar_select %p148, %s149, %s150
      %p154 = pneg %p148
      %p155 = scmp.eq.s32.totalorder %s34, 7
      %p156 = por %p154, %p155
      %p157 = scmp.ne.s32.totalorder %s149, %s152
      %p158 = scmp.eq.s32.totalorder %s34, 0
      %p159 = por %p157, %p158
      %p160 = scmp.ne.s32.totalorder %s149, %s152
      %p161 = scmp.eq.s32.totalorder %s39, 7
      %p162 = por %p160, %p161
      %p163 = scmp.ne.s32.totalorder %s152, %s153
      %p164 = scmp.eq.s32.totalorder %s39, 0
      %p165 = por %p163, %p164
      %p166 = scmp.ne.s32.totalorder %s152, %s153
      %p167 = scmp.eq.s32.totalorder %s40, 7
      %p168 = por %p166, %p167
      %p170 = scmp.ne.s32.totalorder %s153, %s169
      %p171 = scmp.eq.s32.totalorder %s40, 0
      %p172 = por %p170, %p171
      %s173 = ssub.s32 %s41, %s60
      %p174 = scmp.eq.s32.totalorder %s173, 0
      %s176 = sadd.s32 %s175, 1
      %s177 = scalar_select %p174, %s175, %s176
      %p180 = pneg %p174
      %p181 = scmp.eq.s32.totalorder %s34, 7
      %p182 = por %p180, %p181
      %p183 = scmp.ne.s32.totalorder %s175, %s178
      %p184 = scmp.eq.s32.totalorder %s34, 0
      %p185 = por %p183, %p184
      %p186 = scmp.ne.s32.totalorder %s175, %s178
      %p187 = scmp.eq.s32.totalorder %s39, 7
      %p188 = por %p186, %p187
      %p189 = scmp.ne.s32.totalorder %s178, %s179
      %p190 = scmp.eq.s32.totalorder %s39, 0
      %p191 = por %p189, %p190
      %p192 = scmp.ne.s32.totalorder %s178, %s179
      %p193 = scmp.eq.s32.totalorder %s40, 7
      %p194 = por %p192, %p193
      %p196 = scmp.ne.s32.totalorder %s179, %s195
      %p197 = scmp.eq.s32.totalorder %s40, 0
      %p198 = por %p196, %p197
      %s200 = sadd.s32 %s199, 1
      %p203 = scmp.eq.s32.totalorder %s34, 7
      %p204 = scmp.ne.s32.totalorder %s199, %s201
      %p205 = scmp.eq.s32.totalorder %s34, 0
      %p206 = por %p204, %p205
      %p207 = scmp.ne.s32.totalorder %s199, %s201
      %p208 = scmp.eq.s32.totalorder %s39, 7
      %p209 = por %p207, %p208
      %p210 = scmp.ne.s32.totalorder %s201, %s202
      %p211 = scmp.eq.s32.totalorder %s39, 0
      %p212 = por %p210, %p211
      %p213 = scmp.ne.s32.totalorder %s201, %s202
      %p214 = scmp.eq.s32.totalorder %s40, 7
      %p215 = por %p213, %p214
      %p217 = scmp.ne.s32.totalorder %s202, %s216
      %p218 = scmp.eq.s32.totalorder %s40, 0
      %p219 = por %p217, %p218
      %s221 = sadd.s32 %s220, 1
      %p224 = scmp.eq.s32.totalorder %s34, 7
      %p225 = scmp.ne.s32.totalorder %s220, %s222
      %p226 = scmp.eq.s32.totalorder %s34, 0
      %p227 = por %p225, %p226
      %p228 = scmp.ne.s32.totalorder %s220, %s222
      %p229 = scmp.eq.s32.totalorder %s39, 7
      %p230 = por %p228, %p229
      %p231 = scmp.ne.s32.totalorder %s222, %s223
      %p232 = scmp.eq.s32.totalorder %s39, 0
      %p233 = por %p231, %p232
      %p234 = scmp.ne.s32.totalorder %s222, %s223
      %p235 = scmp.eq.s32.totalorder %s40, 7
      %p236 = por %p234, %p235
      %p238 = scmp.ne.s32.totalorder %s223, %s237
      %p239 = scmp.eq.s32.totalorder %s40, 0
      %p240 = por %p238, %p239
      %s242 = sadd.s32 %s241, 1
      %p245 = scmp.eq.s32.totalorder %s34, 7
      %p246 = scmp.ne.s32.totalorder %s241, %s243
      %p247 = scmp.eq.s32.totalorder %s34, 0
      %p248 = por %p246, %p247
      %p249 = scmp.ne.s32.totalorder %s241, %s243
      %p250 = scmp.eq.s32.totalorder %s39, 7
      %p251 = por %p249, %p250
      %p252 = scmp.ne.s32.totalorder %s243, %s244
      %p253 = scmp.eq.s32.totalorder %s39, 0
      %p254 = por %p252, %p253
      %p255 = scmp.ne.s32.totalorder %s243, %s244
      %p256 = scmp.eq.s32.totalorder %s40, 7
      %p257 = por %p255, %p256
      %p259 = scmp.ne.s32.totalorder %s244, %s258
      %p260 = scmp.eq.s32.totalorder %s40, 0
      %p261 = por %p259, %p260
      %s263 = sadd.s32 %s262, 1
      %p266 = scmp.eq.s32.totalorder %s34, 7
      %p267 = scmp.ne.s32.totalorder %s262, %s264
      %p268 = scmp.eq.s32.totalorder %s34, 0
      %p269 = por %p267, %p268
      %p270 = scmp.ne.s32.totalorder %s262, %s264
      %p271 = scmp.eq.s32.totalorder %s39, 7
      %p272 = por %p270, %p271
      %p273 = scmp.ne.s32.totalorder %s264, %s265
      %p274 = scmp.eq.s32.totalorder %s39, 0
      %p275 = por %p273, %p274
      %p276 = scmp.ne.s32.totalorder %s264, %s265
      %p277 = scmp.eq.s32.totalorder %s40, 7
      %p278 = por %p276, %p277
      %p280 = scmp.ne.s32.totalorder %s265, %s279
      %p281 = scmp.eq.s32.totalorder %s40, 0
      %p282 = por %p280, %p281
      %s284 = sadd.s32 %s283, 1
      %p287 = scmp.eq.s32.totalorder %s34, 7
      %p288 = scmp.ne.s32.totalorder %s283, %s285
      %p289 = scmp.eq.s32.totalorder %s34, 0
      %p290 = por %p288, %p289
      %p291 = scmp.ne.s32.totalorder %s283, %s285
      %p292 = scmp.eq.s32.totalorder %s39, 7
      %p293 = por %p291, %p292
      %p294 = scmp.ne.s32.totalorder %s285, %s286
      %p295 = scmp.eq.s32.totalorder %s39, 0
      %p296 = por %p294, %p295
      %p297 = scmp.ne.s32.totalorder %s285, %s286
      %p298 = scmp.eq.s32.totalorder %s40, 7
      %p299 = por %p297, %p298
      %p301 = scmp.ne.s32.totalorder %s286, %s300
      %p302 = scmp.eq.s32.totalorder %s40, 0
      %p303 = por %p301, %p302
      %s305 = sadd.s32 %s304, 1
      %p308 = scmp.eq.s32.totalorder %s34, 7
      %p309 = scmp.ne.s32.totalorder %s304, %s306
      %p310 = scmp.eq.s32.totalorder %s34, 0
      %p311 = por %p309, %p310
      %p312 = scmp.ne.s32.totalorder %s304, %s306
      %p313 = scmp.eq.s32.totalorder %s39, 7
      %p314 = por %p312, %p313
      %p315 = scmp.ne.s32.totalorder %s306, %s307
      %p316 = scmp.eq.s32.totalorder %s39, 0
      %p317 = por %p315, %p316
      %p318 = scmp.ne.s32.totalorder %s306, %s307
      %p319 = scmp.eq.s32.totalorder %s40, 7
      %p320 = por %p318, %p319
      %p322 = scmp.ne.s32.totalorder %s307, %s321
      %p323 = scmp.eq.s32.totalorder %s40, 0
      %p324 = por %p322, %p323
      %s326 = sadd.s32 %s325, 1
      %p329 = scmp.eq.s32.totalorder %s34, 7
      %p330 = scmp.ne.s32.totalorder %s325, %s327
      %p331 = scmp.eq.s32.totalorder %s34, 0
      %p332 = por %p330, %p331
      %p333 = scmp.ne.s32.totalorder %s325, %s327
      %p334 = scmp.eq.s32.totalorder %s39, 7
      %p335 = por %p333, %p334
      %p336 = scmp.ne.s32.totalorder %s327, %s328
      %p337 = scmp.eq.s32.totalorder %s39, 0
      %p338 = por %p336, %p337
      %p339 = scmp.ne.s32.totalorder %s327, %s328
      %p340 = scmp.eq.s32.totalorder %s40, 7
      %p341 = por %p339, %p340
      %p343 = scmp.ne.s32.totalorder %s328, %s342
      %p344 = scmp.eq.s32.totalorder %s40, 0
      %p345 = por %p343, %p344
      %s347 = sadd.s32 %s346, 1
      %p350 = scmp.eq.s32.totalorder %s34, 7
      %p351 = scmp.ne.s32.totalorder %s346, %s348
      %p352 = scmp.eq.s32.totalorder %s34, 0
      %p353 = por %p351, %p352
      %p354 = scmp.ne.s32.totalorder %s346, %s348
      %p355 = scmp.eq.s32.totalorder %s39, 7
      %p356 = por %p354, %p355
      %p357 = scmp.ne.s32.totalorder %s348, %s349
      %p358 = scmp.eq.s32.totalorder %s39, 0
      %p359 = por %p357, %p358
      %p360 = scmp.ne.s32.totalorder %s348, %s349
      %p361 = scmp.eq.s32.totalorder %s40, 7
      %p362 = por %p360, %p361
      %p364 = scmp.ne.s32.totalorder %s349, %s363
      %p365 = scmp.eq.s32.totalorder %s40, 0
      %p366 = por %p364, %p365
      %s368 = sadd.s32 %s367, 1
      %p371 = scmp.eq.s32.totalorder %s34, 7
      %p372 = scmp.ne.s32.totalorder %s367, %s369
      %p373 = scmp.eq.s32.totalorder %s34, 0
      %p374 = por %p372, %p373
      %p375 = scmp.ne.s32.totalorder %s367, %s369
      %p376 = scmp.eq.s32.totalorder %s39, 7
      %p377 = por %p375, %p376
      %p378 = scmp.ne.s32.totalorder %s369, %s370
      %p379 = scmp.eq.s32.totalorder %s39, 0
      %p380 = por %p378, %p379
      %p381 = scmp.ne.s32.totalorder %s369, %s370
      %p382 = scmp.eq.s32.totalorder %s40, 7
      %p383 = por %p381, %p382
      %p385 = scmp.ne.s32.totalorder %s370, %s384
      %p386 = scmp.eq.s32.totalorder %s40, 0
      %p387 = por %p385, %p386
      %s389 = sadd.s32 %s388, 1
      %p392 = scmp.eq.s32.totalorder %s34, 7
      %p393 = scmp.ne.s32.totalorder %s388, %s390
      %p394 = scmp.eq.s32.totalorder %s34, 0
      %p395 = por %p393, %p394
      %p396 = scmp.ne.s32.totalorder %s388, %s390
      %p397 = scmp.eq.s32.totalorder %s39, 7
      %p398 = por %p396, %p397
      %p399 = scmp.ne.s32.totalorder %s390, %s391
      %p400 = scmp.eq.s32.totalorder %s39, 0
      %p401 = por %p399, %p400
      %p402 = scmp.ne.s32.totalorder %s390, %s391
      %p403 = scmp.eq.s32.totalorder %s40, 7
      %p404 = por %p402, %p403
      %p406 = scmp.ne.s32.totalorder %s391, %s405
      %p407 = scmp.eq.s32.totalorder %s40, 0
      %p408 = por %p406, %p407
      %s410 = sadd.s32 %s409, 1
      %p413 = scmp.eq.s32.totalorder %s34, 7
      %p414 = scmp.ne.s32.totalorder %s409, %s411
      %p415 = scmp.eq.s32.totalorder %s34, 0
      %p416 = por %p414, %p415
      %p417 = scmp.ne.s32.totalorder %s409, %s411
      %p418 = scmp.eq.s32.totalorder %s39, 7
      %p419 = por %p417, %p418
      %p420 = scmp.ne.s32.totalorder %s411, %s412
      %p421 = scmp.eq.s32.totalorder %s39, 0
      %p422 = por %p420, %p421
      %p423 = scmp.ne.s32.totalorder %s411, %s412
      %p424 = scmp.eq.s32.totalorder %s40, 7
      %p425 = por %p423, %p424
      %p427 = scmp.ne.s32.totalorder %s412, %s426
      %p428 = scmp.eq.s32.totalorder %s40, 0
      %p429 = por %p427, %p428
      %s431 = sadd.s32 %s430, 1
      %p434 = scmp.eq.s32.totalorder %s34, 7
      %p435 = scmp.ne.s32.totalorder %s430, %s432
      %p436 = scmp.eq.s32.totalorder %s34, 0
      %p437 = por %p435, %p436
      %p438 = scmp.ne.s32.totalorder %s430, %s432
      %p439 = scmp.eq.s32.totalorder %s39, 7
      %p440 = por %p438, %p439
      %p441 = scmp.ne.s32.totalorder %s432, %s433
      %p442 = scmp.eq.s32.totalorder %s39, 0
      %p443 = por %p441, %p442
      %p444 = scmp.ne.s32.totalorder %s432, %s433
      %p445 = scmp.eq.s32.totalorder %s40, 7
      %p446 = por %p444, %p445
      %p448 = scmp.ne.s32.totalorder %s433, %s447
      %p449 = scmp.eq.s32.totalorder %s40, 0
      %p450 = por %p448, %p449
      %s451 = ssub.s32 %s41, %s60
      %s452 = ssub.s32 %s42, %s56
      %s453 = sor.u32 %s451, %s452
      %p454 = scmp.eq.s32.totalorder %s453, 0
      %s456 = sadd.s32 %s455, 1
      %s457 = scalar_select %p454, %s455, %s456
      %p460 = pneg %p454
      %p461 = scmp.eq.s32.totalorder %s34, 7
      %p462 = por %p460, %p461
      %p463 = scmp.ne.s32.totalorder %s455, %s458
      %p464 = scmp.eq.s32.totalorder %s34, 0
      %p465 = por %p463, %p464
      %p466 = scmp.ne.s32.totalorder %s455, %s458
      %p467 = scmp.eq.s32.totalorder %s39, 7
      %p468 = por %p466, %p467
      %p469 = scmp.ne.s32.totalorder %s458, %s459
      %p470 = scmp.eq.s32.totalorder %s39, 0
      %p471 = por %p469, %p470
      %p472 = scmp.ne.s32.totalorder %s458, %s459
      %p473 = scmp.eq.s32.totalorder %s40, 7
      %p474 = por %p472, %p473
      %p476 = scmp.ne.s32.totalorder %s459, %s475
      %p477 = scmp.eq.s32.totalorder %s40, 0
      %p478 = por %p476, %p477
      %p479 = scmp.le.s32.totalorder 1, %s34
      %p480 = scmp.lt.s32.totalorder %s34, 9
      %p481 = pnand %p479, %p480
      %p482 = pneg %p481
      // Predicated region
      $region9: #{tpu_custom_call.1} parent=5 // pred_check
        _
      $region10: #{tpu_custom_call.1} parent=5 // pred_check_branch
        %484 = sbr.rel (%p481) target = $region12
      $region11: #{tpu_custom_call.1} parent=5 // pred_region
        %s485 = ssub.s32 %s34, 1
        // Predicated region
        $region13: #{tpu_custom_call.1} parent=11 // pred_check
          %p486 = pneg %p212
        $region14: #{tpu_custom_call.1} parent=11 // pred_check_branch
          %488 = sbr.rel (%p486) target = $region16
        $region15: #{tpu_custom_call.1} parent=11 // pred_region
          _
        $region16: #{tpu_custom_call.1} parent=11 // pred_fallthru
          _
        // Predicated region
        $region17: #{tpu_custom_call.1} parent=11 // pred_check
          %p489 = pneg %p233
        $region18: #{tpu_custom_call.1} parent=11 // pred_check_branch
          %491 = sbr.rel (%p489) target = $region20
        $region19: #{tpu_custom_call.1} parent=11 // pred_region
          _
        $region20: #{tpu_custom_call.1} parent=11 // pred_fallthru
          _
        // Predicated region
        $region21: #{tpu_custom_call.1} parent=11 // pred_check
          %p492 = pneg %p254
        $region22: #{tpu_custom_call.1} parent=11 // pred_check_branch
          %494 = sbr.rel (%p492) target = $region24
        $region23: #{tpu_custom_call.1} parent=11 // pred_region
          _
        $region24: #{tpu_custom_call.1} parent=11 // pred_fallthru
          _
        // Predicated region
        $region25: #{tpu_custom_call.1} parent=11 // pred_check
          %p495 = pneg %p275
        $region26: #{tpu_custom_call.1} parent=11 // pred_check_branch
          %497 = sbr.rel (%p495) target = $region28
        $region27: #{tpu_custom_call.1} parent=11 // pred_region
          _
        $region28: #{tpu_custom_call.1} parent=11 // pred_fallthru
          _
        // Predicated region
        $region29: #{tpu_custom_call.1} parent=11 // pred_check
          %p498 = pneg %p296
        $region30: #{tpu_custom_call.1} parent=11 // pred_check_branch
          %500 = sbr.rel (%p498) target = $region32
        $region31: #{tpu_custom_call.1} parent=11 // pred_region
          _
        $region32: #{tpu_custom_call.1} parent=11 // pred_fallthru
          _
        // Predicated region
        $region33: #{tpu_custom_call.1} parent=11 // pred_check
          %p501 = pneg %p317
        $region34: #{tpu_custom_call.1} parent=11 // pred_check_branch
          %503 = sbr.rel (%p501) target = $region36
        $region35: #{tpu_custom_call.1} parent=11 // pred_region
          _
        $region36: #{tpu_custom_call.1} parent=11 // pred_fallthru
          _
        // Predicated region
        $region37: #{tpu_custom_call.1} parent=11 // pred_check
          %p504 = pneg %p338
        $region38: #{tpu_custom_call.1} parent=11 // pred_check_branch
          %506 = sbr.rel (%p504) target = $region40
        $region39: #{tpu_custom_call.1} parent=11 // pred_region
          _
        $region40: #{tpu_custom_call.1} parent=11 // pred_fallthru
          _
        // Predicated region
        $region41: #{tpu_custom_call.1} parent=11 // pred_check
          %p507 = pneg %p359
        $region42: #{tpu_custom_call.1} parent=11 // pred_check_branch
          %509 = sbr.rel (%p507) target = $region44
        $region43: #{tpu_custom_call.1} parent=11 // pred_region
          _
        $region44: #{tpu_custom_call.1} parent=11 // pred_fallthru
          _
        // Predicated region
        $region45: #{tpu_custom_call.1} parent=11 // pred_check
          %p510 = pneg %p380
        $region46: #{tpu_custom_call.1} parent=11 // pred_check_branch
          %512 = sbr.rel (%p510) target = $region48
        $region47: #{tpu_custom_call.1} parent=11 // pred_region
          _
        $region48: #{tpu_custom_call.1} parent=11 // pred_fallthru
          _
        // Predicated region
        $region49: #{tpu_custom_call.1} parent=11 // pred_check
          %p513 = pneg %p401
        $region50: #{tpu_custom_call.1} parent=11 // pred_check_branch
          %515 = sbr.rel (%p513) target = $region52
        $region51: #{tpu_custom_call.1} parent=11 // pred_region
          %s517 = ssub.s32 2048, 2048
          %518 = vsyncadd [#allocation20], %s517
          %s519 = sshll.u32 [#allocation19], 4
          %s520 = int_to_ptr.vmem [resolvable:$true] %s519
          %525 = dma.hbm_to_vmem [thread:$0]  %s14, 2048, %s520, [#allocation20], 128, 128, 8
        $region52: #{tpu_custom_call.1} parent=11 // pred_fallthru
          _
        // Predicated region
        $region53: #{tpu_custom_call.1} parent=11 // pred_check
          %p526 = pneg %p422
        $region54: #{tpu_custom_call.1} parent=11 // pred_check_branch
          %528 = sbr.rel (%p526) target = $region56
        $region55: #{tpu_custom_call.1} parent=11 // pred_region
          _
        $region56: #{tpu_custom_call.1} parent=11 // pred_fallthru
          _
        // Predicated region
        $region57: #{tpu_custom_call.1} parent=11 // pred_check
          %p529 = pneg %p443
        $region58: #{tpu_custom_call.1} parent=11 // pred_check_branch
          %531 = sbr.rel (%p529) target = $region60
        $region59: #{tpu_custom_call.1} parent=11 // pred_region
          %s533 = ssub.s32 16, 16
          %534 = vsyncadd [#allocation15], %s533
          %s536 = sshll.u32 %s16, 4
          %s537 = int_to_ptr.vmem [resolvable:$true] %s536
          %539 = dma.vmem_to_smem %s537, 16, [#allocation21], [#allocation15]
        $region60: #{tpu_custom_call.1} parent=11 // pred_fallthru
          _
      $region12: #{tpu_custom_call.1} parent=5 // pred_fallthru
        _
      %p540 = scmp.lt.s32.totalorder %s34, 8
      // Predicated region
      $region61: #{tpu_custom_call.1} parent=5 // pred_check
        %p541 = pneg %p540
      $region62: #{tpu_custom_call.1} parent=5 // pred_check_branch
        %543 = sbr.rel (%p541) target = $region64
      $region63: #{tpu_custom_call.1} parent=5 // pred_region
        // Predicated region
        $region65: #{tpu_custom_call.1} parent=63 // pred_check
          %p544 = pneg %p75
        $region66: #{tpu_custom_call.1} parent=63 // pred_check_branch
          %546 = sbr.rel (%p544) target = $region68
        $region67: #{tpu_custom_call.1} parent=63 // pred_region
          %s547 = sand.u32 %s65, 1
          %s548 = scalar_lea.sflag [#allocation13], %s547
          %s549 = sand.u32 %s65, 1
          %s550 = smul.addr %s549, 8
          %s551 = scalar_lea.vmem [#allocation12], %s550
          %s553 = ssub.s32 128, 128
          %554 = vsyncadd %s548, %s553
          %s555 = smul.addr %s41, 2
          %s556 = sadd.s32 %s42, %s555
          %s557 = smul.addr %s556, 128
          %s558 = scalar_lea.hbm %s0, %s557
          %s560 = sshll.u32 %s551, 4
          %s561 = int_to_ptr.vmem [resolvable:$true] %s560
          %563 = dma.hbm_to_vmem [thread:$0]  %s558, 128, %s561, %s548
        $region68: #{tpu_custom_call.1} parent=63 // pred_fallthru
          _
        // Predicated region
        $region69: #{tpu_custom_call.1} parent=63 // pred_check
          %p564 = pneg %p103
        $region70: #{tpu_custom_call.1} parent=63 // pred_check_branch
          %566 = sbr.rel (%p564) target = $region72
        $region71: #{tpu_custom_call.1} parent=63 // pred_region
          %s567 = sand.u32 %s34, 1
          %s568 = scalar_lea.sflag [#allocation17], %s567
          %s569 = sand.u32 %s93, 1
          %s570 = smul.addr %s569, 8
          %s571 = scalar_lea.vmem [#allocation16], %s570
          %s573 = ssub.s32 128, 128
          %574 = vsyncadd %s568, %s573
          %s575 = smul.addr %s41, 2
          %s576 = sadd.s32 %s42, %s575
          %s577 = smul.addr %s576, 128
          %s578 = scalar_lea.hbm %s1, %s577
          %s580 = sshll.u32 %s571, 4
          %s581 = int_to_ptr.vmem [resolvable:$true] %s580
          %583 = dma.hbm_to_vmem [thread:$0]  %s578, 128, %s581, %s568
        $region72: #{tpu_custom_call.1} parent=63 // pred_fallthru
          _
        // Predicated region
        $region73: #{tpu_custom_call.1} parent=63 // pred_check
          %p584 = pneg %p131
        $region74: #{tpu_custom_call.1} parent=63 // pred_check_branch
          %586 = sbr.rel (%p584) target = $region76
        $region75: #{tpu_custom_call.1} parent=63 // pred_region
          %s587 = sand.u32 %s34, 1
          %s588 = scalar_lea.sflag [#allocation17], %s587
          %s589 = sand.u32 %s121, 1
          %s590 = smul.addr %s589, 8
          %s591 = scalar_lea.vmem [#allocation18], %s590
          %s593 = ssub.s32 128, 128
          %594 = vsyncadd %s588, %s593
          %s595 = smul.addr %s41, 2
          %s596 = sadd.s32 %s43, %s595
          %s597 = smul.addr %s596, 128
          %s598 = scalar_lea.hbm %s2, %s597
          %s600 = sshll.u32 %s591, 4
          %s601 = int_to_ptr.vmem [resolvable:$true] %s600
          %603 = dma.hbm_to_vmem [thread:$0]  %s598, 128, %s601, %s588
        $region76: #{tpu_custom_call.1} parent=63 // pred_fallthru
          _
        // Predicated region
        $region77: #{tpu_custom_call.1} parent=63 // pred_check
          %p604 = pneg %p159
        $region78: #{tpu_custom_call.1} parent=63 // pred_check_branch
          %606 = sbr.rel (%p604) target = $region80
        $region79: #{tpu_custom_call.1} parent=63 // pred_region
          %p607 = scmp.lt.s32.totalorder %s41, 1
          %s608 = scalar_select %p607, %s41, 1
          %p609 = scmp.lt.s32.totalorder %s43, 1
          %s610 = scalar_select %p609, %s43, 1
          %s611 = smul.addr %s608, 2
          %s612 = sadd.s32 %s610, %s611
          %s613 = smul.addr %s612, 8
          %s614 = scalar_lea.vmem %s3, %s613
        $region80: #{tpu_custom_call.1} parent=63 // pred_fallthru
          _
        // Predicated region
        $region81: #{tpu_custom_call.1} parent=63 // pred_check
          %p615 = pneg %p185
        $region82: #{tpu_custom_call.1} parent=63 // pred_check_branch
          %617 = sbr.rel (%p615) target = $region84
        $region83: #{tpu_custom_call.1} parent=63 // pred_region
          %p618 = scmp.lt.s32.totalorder %s41, 1
          %s619 = scalar_select %p618, %s41, 1
          %s620 = smul.addr %s619, 16
          %s621 = smul.addr %s620, 8
          %s622 = scalar_lea.vmem %s4, %s621
        $region84: #{tpu_custom_call.1} parent=63 // pred_fallthru
          _
      $region64: #{tpu_custom_call.1} parent=5 // pred_fallthru
        _
      %p623 = scmp.le.s32.totalorder 1, %s34
      %p624 = scmp.lt.s32.totalorder %s34, 9
      %p625 = pnand %p623, %p624
      %p626 = pneg %p625
      // Predicated region
      $region85: #{tpu_custom_call.1} parent=5 // pred_check
        _
      $region86: #{tpu_custom_call.1} parent=5 // pred_check_branch
        %628 = sbr.rel (%p625) target = $region88
      $region87: #{tpu_custom_call.1} parent=5 // pred_region
        %s629 = ssub.s32 %s34, 1
        %s630 = sand.u32 %s68, 1
        %s631 = scalar_lea.sflag [#allocation13], %s630
        %s632 = sand.u32 %s68, 1
        %s633 = smul.addr %s632, 8
        %s634 = scalar_lea.vmem [#allocation12], %s633
        // Predicated region
        $region89: #{tpu_custom_call.1} parent=87 // pred_check
          %p635 = pneg %p81
        $region90: #{tpu_custom_call.1} parent=87 // pred_check_branch
          %637 = sbr.rel (%p635) target = $region92
        $region91: #{tpu_custom_call.1} parent=87 // pred_region
          %638 = dma.done %s631, 128
        $region92: #{tpu_custom_call.1} parent=87 // pred_fallthru
          _
        %s639 = sand.u32 %s39, 1
        %s640 = scalar_lea.sflag [#allocation17], %s639
        %s641 = sand.u32 %s96, 1
        %s642 = smul.addr %s641, 8
        %s643 = scalar_lea.vmem [#allocation16], %s642
        // Predicated region
        $region93: #{tpu_custom_call.1} parent=87 // pred_check
          %p644 = pneg %p109
        $region94: #{tpu_custom_call.1} parent=87 // pred_check_branch
          %646 = sbr.rel (%p644) target = $region96
        $region95: #{tpu_custom_call.1} parent=87 // pred_region
          %647 = dma.done %s640, 128
        $region96: #{tpu_custom_call.1} parent=87 // pred_fallthru
          _
        %s648 = sand.u32 %s39, 1
        %s649 = scalar_lea.sflag [#allocation17], %s648
        %s650 = sand.u32 %s124, 1
        %s651 = smul.addr %s650, 8
        %s652 = scalar_lea.vmem [#allocation18], %s651
        // Predicated region
        $region97: #{tpu_custom_call.1} parent=87 // pred_check
          %p653 = pneg %p137
        $region98: #{tpu_custom_call.1} parent=87 // pred_check_branch
          %655 = sbr.rel (%p653) target = $region100
        $region99: #{tpu_custom_call.1} parent=87 // pred_region
          %656 = dma.done %s649, 128
        $region100: #{tpu_custom_call.1} parent=87 // pred_fallthru
          _
        // Predicated region
        $region101: #{tpu_custom_call.1} parent=87 // pred_check
          %p657 = pneg %p401
        $region102: #{tpu_custom_call.1} parent=87 // pred_check_branch
          %659 = sbr.rel (%p657) target = $region104
        $region103: #{tpu_custom_call.1} parent=87 // pred_region
          %660 = dma.done [#allocation20], 2048
        $region104: #{tpu_custom_call.1} parent=87 // pred_fallthru
          _
        // Predicated region
        $region105: #{tpu_custom_call.1} parent=87 // pred_check
          %p661 = pneg %p443
        $region106: #{tpu_custom_call.1} parent=87 // pred_check_branch
          %663 = sbr.rel (%p661) target = $region108
        $region107: #{tpu_custom_call.1} parent=87 // pred_region
          %664 = dma.done [#allocation15], 16
        $region108: #{tpu_custom_call.1} parent=87 // pred_fallthru
          _
        %665 = sfence
        %s666 = sand.u32 %s68, 1
        %s667 = scalar_lea.sflag [#allocation13], %s666
        %s668 = sand.u32 %s68, 1
        %s669 = smul.addr %s668, 8
        %s670 = scalar_lea.vmem [#allocation12], %s669
        %p671 = pneg %p81
        %p672 = pneg %p78
        %s673 = sand.u32 %s39, 1
        %s674 = scalar_lea.sflag [#allocation17], %s673
        %s675 = sand.u32 %s96, 1
        %s676 = smul.addr %s675, 8
        %s677 = scalar_lea.vmem [#allocation16], %s676
        %p678 = pneg %p109
        %p679 = pneg %p106
        %s680 = sand.u32 %s39, 1
        %s681 = scalar_lea.sflag [#allocation17], %s680
        %s682 = sand.u32 %s124, 1
        %s683 = smul.addr %s682, 8
        %s684 = scalar_lea.vmem [#allocation18], %s683
        %p685 = pneg %p137
        %p686 = pneg %p134
        %p687 = scmp.lt.s32.totalorder %s44, 1
        %s688 = scalar_select %p687, %s44, 1
        %p689 = scmp.lt.s32.totalorder %s46, 1
        %s690 = scalar_select %p689, %s46, 1
        %s691 = smul.addr %s688, 2
        %s692 = sadd.s32 %s690, %s691
        %s693 = smul.addr %s692, 8
        %s694 = scalar_lea.vmem %s3, %s693
        %p695 = pneg %p165
        %p696 = pneg %p162
        %p697 = scmp.lt.s32.totalorder %s44, 1
        %s698 = scalar_select %p697, %s44, 1
        %s699 = smul.addr %s698, 16
        %s700 = smul.addr %s699, 8
        %s701 = scalar_lea.vmem %s4, %s700
        %p702 = pneg %p191
        %p703 = pneg %p188
        %p704 = pneg %p212
        %p705 = pneg %p209
        %p706 = pneg %p233
        %p707 = pneg %p230
        %p708 = pneg %p254
        %p709 = pneg %p251
        %p710 = pneg %p275
        %p711 = pneg %p272
        %p712 = pneg %p296
        %p713 = pneg %p293
        %p714 = pneg %p317
        %p715 = pneg %p314
        %p716 = pneg %p338
        %p717 = pneg %p335
        %p718 = pneg %p359
        %p719 = pneg %p356
        %p720 = pneg %p380
        %p721 = pneg %p377
        %p722 = pneg %p401
        %p723 = pneg %p398
        %p724 = pneg %p422
        %p725 = pneg %p419
        %p726 = pneg %p443
        %p727 = pneg %p440
        %p728 = pneg %p471
        %p729 = pneg %p468
        %s730 = sand.u32 %s458, 1
        %s731 = scalar_lea.sflag [#allocation14], %s730
        %s732 = sand.u32 %s458, 1
        %s733 = smul.addr %s732, 128
        %s734 = scalar_lea.vmem [#allocation22], %s733
        %p735 = scmp.lt.s32.totalorder %s44, 1
        %s736 = scalar_select %p735, %s44, 1
        %p737 = scmp.lt.s32.totalorder %s46, 1
        %s738 = scalar_select %p737, %s46, 1
        %s739 = smul.addr %s736, 2
        %s740 = sadd.s32 %s738, %s739
        %s741 = smul.addr %s740, 8
        %s742 = scalar_lea.vmem %s3, %s741
        %p743 = scmp.lt.s32.totalorder %s44, 1
        %s744 = scalar_select %p743, %s44, 1
        %s745 = smul.addr %s744, 16
        %s746 = smul.addr %s745, 8
        %s747 = scalar_lea.vmem %s4, %s746
        %v749 = vld [vmem:[%s747] sm:$0xff]
        %v750 = vld [vmem:[%s747 + $0x8] sm:$0xff]
        %v751 = vld [vmem:[%s747 + $0x10] sm:$0xff]
        %v752 = vld [vmem:[%s747 + $0x18] sm:$0xff]
        %v753 = vld [vmem:[%s747 + $0x20] sm:$0xff]
        %v754 = vld [vmem:[%s747 + $0x28] sm:$0xff]
        %v755 = vld [vmem:[%s747 + $0x30] sm:$0xff]
        %v756 = vld [vmem:[%s747 + $0x38] sm:$0xff]
        %v757 = vld [vmem:[%s747 + $0x40] sm:$0xff]
        %v758 = vld [vmem:[%s747 + $0x48] sm:$0xff]
        %v759 = vld [vmem:[%s747 + $0x50] sm:$0xff]
        %v760 = vld [vmem:[%s747 + $0x58] sm:$0xff]
        %v761 = vld [vmem:[%s747 + $0x60] sm:$0xff]
        %v762 = vld [vmem:[%s747 + $0x68] sm:$0xff]
        %v763 = vld [vmem:[%s747 + $0x70] sm:$0xff]
        %v764 = vld [vmem:[%s747 + $0x78] sm:$0xff]
        %v765 = vld [vmem:[%s6] sm:$0xff]
        %v766 = vld [vmem:[%s6 + $0x8] sm:$0xff]
        %v767 = vld [vmem:[%s6 + $0x10] sm:$0xff]
        %v768 = vld [vmem:[%s6 + $0x18] sm:$0xff]
        %v769 = vld [vmem:[%s6 + $0x20] sm:$0xff]
        %v770 = vld [vmem:[%s6 + $0x28] sm:$0xff]
        %v771 = vld [vmem:[%s6 + $0x30] sm:$0xff]
        %v772 = vld [vmem:[%s6 + $0x38] sm:$0xff]
        %v773 = vld [vmem:[%s6 + $0x40] sm:$0xff]
        %v774 = vld [vmem:[%s6 + $0x48] sm:$0xff]
        %v775 = vld [vmem:[%s6 + $0x50] sm:$0xff]
        %v776 = vld [vmem:[%s6 + $0x58] sm:$0xff]
        %v777 = vld [vmem:[%s6 + $0x60] sm:$0xff]
        %v778 = vld [vmem:[%s6 + $0x68] sm:$0xff]
        %v779 = vld [vmem:[%s6 + $0x70] sm:$0xff]
        %v780 = vld [vmem:[%s6 + $0x78] sm:$0xff]
        %v781 = vld [vmem:[%s8] sm:$0xff]
        %v782 = vld [vmem:[%s8 + $0x8] sm:$0xff]
        %v783 = vld [vmem:[%s8 + $0x10] sm:$0xff]
        %v784 = vld [vmem:[%s8 + $0x18] sm:$0xff]
        %v785 = vld [vmem:[%s8 + $0x20] sm:$0xff]
        %v786 = vld [vmem:[%s8 + $0x28] sm:$0xff]
        %v787 = vld [vmem:[%s8 + $0x30] sm:$0xff]
        %v788 = vld [vmem:[%s8 + $0x38] sm:$0xff]
        %v789 = vld [vmem:[%s8 + $0x40] sm:$0xff]
        %v790 = vld [vmem:[%s8 + $0x48] sm:$0xff]
        %v791 = vld [vmem:[%s8 + $0x50] sm:$0xff]
        %v792 = vld [vmem:[%s8 + $0x58] sm:$0xff]
        %v793 = vld [vmem:[%s8 + $0x60] sm:$0xff]
        %v794 = vld [vmem:[%s8 + $0x68] sm:$0xff]
        %v795 = vld [vmem:[%s8 + $0x70] sm:$0xff]
        %v796 = vld [vmem:[%s8 + $0x78] sm:$0xff]
        %p797 = scmp.eq.s32.totalorder %s46, 0
        // Predicated region
        $region109: #{tpu_custom_call.1} parent=87 // pred_check
          %p798 = pneg %p797
        $region110: #{tpu_custom_call.1} parent=87 // pred_check_branch
          %800 = sbr.rel (%p798) target = $region112
        $region111: #{tpu_custom_call.1} parent=87 // pred_region
          %v801 = vld [vmem:[%s5] sm:$0xff]
          %v802 = vld [vmem:[%s5 + $0x8] sm:$0xff]
          %v803 = vld [vmem:[%s5 + $0x10] sm:$0xff]
          %v804 = vld [vmem:[%s5 + $0x18] sm:$0xff]
          %v805 = vld [vmem:[%s5 + $0x20] sm:$0xff]
          %v806 = vld [vmem:[%s5 + $0x28] sm:$0xff]
          %v807 = vld [vmem:[%s5 + $0x30] sm:$0xff]
          %v808 = vld [vmem:[%s5 + $0x38] sm:$0xff]
          %v809 = vld [vmem:[%s5 + $0x40] sm:$0xff]
          %v810 = vld [vmem:[%s5 + $0x48] sm:$0xff]
          %v811 = vld [vmem:[%s5 + $0x50] sm:$0xff]
          %v812 = vld [vmem:[%s5 + $0x58] sm:$0xff]
          %v813 = vld [vmem:[%s5 + $0x60] sm:$0xff]
          %v814 = vld [vmem:[%s5 + $0x68] sm:$0xff]
          %v815 = vld [vmem:[%s5 + $0x70] sm:$0xff]
          %v816 = vld [vmem:[%s5 + $0x78] sm:$0xff]
          %v817 = vld [vmem:[%s634] sm:$0xff]
          %819 = vset.pattern.permute.xlu0 0
          %820 = vperm.xlu0 %819, %v765
          %v821 = vpop.permute.xlu0 %820
          %824 = vset.pattern.permute.xlu0 0
          %825 = vperm.xlu0 %824, %v766
          %v826 = vpop.permute.xlu0 %825
          %829 = vset.pattern.permute.xlu0 0
          %830 = vperm.xlu0 %829, %v767
          %v831 = vpop.permute.xlu0 %830
          %834 = vset.pattern.permute.xlu0 0
          %835 = vperm.xlu0 %834, %v768
          %v836 = vpop.permute.xlu0 %835
          %839 = vset.pattern.permute.xlu0 0
          %840 = vperm.xlu0 %839, %v769
          %v841 = vpop.permute.xlu0 %840
          %844 = vset.pattern.permute.xlu0 0
          %845 = vperm.xlu0 %844, %v770
          %v846 = vpop.permute.xlu0 %845
          %849 = vset.pattern.permute.xlu0 0
          %850 = vperm.xlu0 %849, %v771
          %v851 = vpop.permute.xlu0 %850
          %854 = vset.pattern.permute.xlu0 0
          %855 = vperm.xlu0 %854, %v772
          %v856 = vpop.permute.xlu0 %855
          %859 = vset.pattern.permute.xlu0 0
          %860 = vperm.xlu0 %859, %v773
          %v861 = vpop.permute.xlu0 %860
          %864 = vset.pattern.permute.xlu0 0
          %865 = vperm.xlu0 %864, %v774
          %v866 = vpop.permute.xlu0 %865
          %869 = vset.pattern.permute.xlu0 0
          %870 = vperm.xlu0 %869, %v775
          %v871 = vpop.permute.xlu0 %870
          %874 = vset.pattern.permute.xlu0 0
          %875 = vperm.xlu0 %874, %v776
          %v876 = vpop.permute.xlu0 %875
          %879 = vset.pattern.permute.xlu0 0
          %880 = vperm.xlu0 %879, %v777
          %v881 = vpop.permute.xlu0 %880
          %884 = vset.pattern.permute.xlu0 0
          %885 = vperm.xlu0 %884, %v778
          %v886 = vpop.permute.xlu0 %885
          %889 = vset.pattern.permute.xlu0 0
          %890 = vperm.xlu0 %889, %v779
          %v891 = vpop.permute.xlu0 %890
          %894 = vset.pattern.permute.xlu0 0
          %895 = vperm.xlu0 %894, %v780
          %v896 = vpop.permute.xlu0 %895
          %vm898 = vcmask 64512
          %v900 = vsel %vm898, %v801, 0
          %v903 = vsel %vm898, %v802, 0
          %v906 = vsel %vm898, %v803, 0
          %v909 = vsel %vm898, %v804, 0
          %v912 = vsel %vm898, %v805, 0
          %v915 = vsel %vm898, %v806, 0
          %v918 = vsel %vm898, %v807, 0
          %v921 = vsel %vm898, %v808, 0
          %v924 = vsel %vm898, %v809, 0
          %v927 = vsel %vm898, %v810, 0
          %v930 = vsel %vm898, %v811, 0
          %v933 = vsel %vm898, %v812, 0
          %v936 = vsel %vm898, %v813, 0
          %v939 = vsel %vm898, %v814, 0
          %v942 = vsel %vm898, %v815, 0
          %v945 = vsel %vm898, %v816, 0
          %947 = vmatprep.subr.mxu0 0.0
          %948 = vmatpush1.msra.mxu0 %v817
          %949 = vmatprep.subr.mxu0 0.0
          %950 = vmatpush1.msra.mxu0 0.0
          %951 = vmatprep.subr.mxu0 0.0
          %952 = vmatpush1.msra.mxu0 0.0
          %953 = vmatprep.subr.mxu0 0.0
          %954 = vmatpush1.msra.mxu0 0.0
          %955 = vmatprep.subr.mxu0 0.0
          %956 = vmatpush1.msra.mxu0 0.0
          %957 = vmatprep.subr.mxu0 0.0
          %958 = vmatpush1.msra.mxu0 0.0
          %959 = vmatprep.subr.mxu0 0.0
          %960 = vmatpush1.msra.mxu0 0.0
          %961 = vmatprep.subr.mxu0 0.0
          %962 = vmatpush1.msra.mxu0 0.0
          %963 = vmatprep.subr.mxu0 0.0
          %964 = vmatpush1.msra.mxu0 0.0
          %965 = vmatprep.subr.mxu0 0.0
          %966 = vmatpush1.msra.mxu0 0.0
          %967 = vmatprep.subr.mxu0 0.0
          %968 = vmatpush1.msra.mxu0 0.0
          %969 = vmatprep.subr.mxu0 0.0
          %970 = vmatpush1.msra.mxu0 0.0
          %971 = vmatprep.subr.mxu0 0.0
          %972 = vmatpush1.msra.mxu0 0.0
          %973 = vmatprep.subr.mxu0 0.0
          %974 = vmatpush1.msra.mxu0 0.0
          %975 = vmatprep.subr.mxu0 0.0
          %976 = vmatpush1.msra.mxu0 0.0
          %977 = vmatprep.subr.mxu0 0.0
          %978 = vmatpush1.msra.mxu0 0.0
          %979 = vmatprep.subr.mxu0 0.0
          %980 = vmatpush1.msra.mxu0 0.0
          %981 = vmatprep.subr.mxu0 0.0
          %982 = vmatpush1.msra.mxu0 0.0
          %983 = vmatprep.subr.mxu0 0.0
          %984 = vmatpush1.msra.mxu0 0.0
          %985 = vmatprep.subr.mxu0 0.0
          %986 = vmatpush1.msra.mxu0 0.0
          %987 = vmatprep.subr.mxu0 0.0
          %988 = vmatpush1.msra.mxu0 0.0
          %989 = vmatprep.subr.mxu0 0.0
          %990 = vmatpush1.msra.mxu0 0.0
          %991 = vmatprep.subr.mxu0 0.0
          %992 = vmatpush1.msra.mxu0 0.0
          %993 = vmatprep.subr.mxu0 0.0
          %994 = vmatpush1.msra.mxu0 0.0
          %995 = vmatprep.subr.mxu0 0.0
          %996 = vmatpush1.msra.mxu0 0.0
          %997 = vmatprep.subr.mxu0 0.0
          %998 = vmatpush1.msra.mxu0 0.0
          %999 = vmatprep.subr.mxu0 0.0
          %1000 = vmatpush1.msra.mxu0 0.0
          %1001 = vmatprep.subr.mxu0 0.0
          %1002 = vmatpush1.msra.mxu0 0.0
          %1003 = vmatprep.subr.mxu0 0.0
          %1004 = vmatpush1.msra.mxu0 0.0
          %1005 = vmatprep.subr.mxu0 0.0
          %1006 = vmatpush1.msra.mxu0 0.0
          %1007 = vmatprep.subr.mxu0 0.0
          %1008 = vmatpush1.msra.mxu0 0.0
          %1009 = vmatprep.subr.mxu0 0.0
          %1010 = vmatpush1.msra.mxu0 0.0
          %1011 = vmatprep.mubr.f32.mxu0 0.0
          %1012 = vmatmul.mubr.f32.gmra.mrb[0].mxu0 %v900
          %v1013 = vpop.f32.mrb[0].mxu0
          %v1014 = vadd.f32 %v821, %v1013
          %v1015 = vpop.f32.mrb[0].mxu0
          %1016 = vmatprep.mubr.f32.mxu0 0.0
          %1017 = vmatmul.mubr.f32.gmra.mrb[0].mxu0 %v903
          %v1018 = vpop.f32.mrb[0].mxu0
          %v1019 = vadd.f32 %v826, %v1018
          %v1020 = vpop.f32.mrb[0].mxu0
          %1021 = vmatprep.mubr.f32.mxu0 0.0
          %1022 = vmatmul.mubr.f32.gmra.mrb[0].mxu0 %v906
          %v1023 = vpop.f32.mrb[0].mxu0
          %v1024 = vadd.f32 %v831, %v1023
          %v1025 = vpop.f32.mrb[0].mxu0
          %1026 = vmatprep.mubr.f32.mxu0 0.0
          %1027 = vmatmul.mubr.f32.gmra.mrb[0].mxu0 %v909
          %v1028 = vpop.f32.mrb[0].mxu0
          %v1029 = vadd.f32 %v836, %v1028
          %v1030 = vpop.f32.mrb[0].mxu0
          %1031 = vmatprep.mubr.f32.mxu0 0.0
          %1032 = vmatmul.mubr.f32.gmra.mrb[0].mxu0 %v912
          %v1033 = vpop.f32.mrb[0].mxu0
          %v1034 = vadd.f32 %v841, %v1033
          %v1035 = vpop.f32.mrb[0].mxu0
          %1036 = vmatprep.mubr.f32.mxu0 0.0
          %1037 = vmatmul.mubr.f32.gmra.mrb[0].mxu0 %v915
          %v1038 = vpop.f32.mrb[0].mxu0
          %v1039 = vadd.f32 %v846, %v1038
          %v1040 = vpop.f32.mrb[0].mxu0
          %1041 = vmatprep.mubr.f32.mxu0 0.0
          %1042 = vmatmul.mubr.f32.gmra.mrb[0].mxu0 %v918
          %v1043 = vpop.f32.mrb[0].mxu0
          %v1044 = vadd.f32 %v851, %v1043
          %v1045 = vpop.f32.mrb[0].mxu0
          %1046 = vmatprep.mubr.f32.mxu0 0.0
          %1047 = vmatmul.mubr.f32.gmra.mrb[0].mxu0 %v921
          %v1048 = vpop.f32.mrb[0].mxu0
          %v1049 = vadd.f32 %v856, %v1048
          %v1050 = vpop.f32.mrb[0].mxu0
          %1051 = vmatprep.mubr.f32.mxu0 0.0
          %1052 = vmatmul.mubr.f32.gmra.mrb[0].mxu0 %v924
          %v1053 = vpop.f32.mrb[0].mxu0
          %v1054 = vadd.f32 %v861, %v1053
          %v1055 = vpop.f32.mrb[0].mxu0
          %1056 = vmatprep.mubr.f32.mxu0 0.0
          %1057 = vmatmul.mubr.f32.gmra.mrb[0].mxu0 %v927
          %v1058 = vpop.f32.mrb[0].mxu0
          %v1059 = vadd.f32 %v866, %v1058
          %v1060 = vpop.f32.mrb[0].mxu0
          %1061 = vmatprep.mubr.f32.mxu0 0.0
          %1062 = vmatmul.mubr.f32.gmra.mrb[0].mxu0 %v930
          %v1063 = vpop.f32.mrb[0].mxu0
          %v1064 = vadd.f32 %v871, %v1063
          %v1065 = vpop.f32.mrb[0].mxu0
          %1066 = vmatprep.mubr.f32.mxu0 0.0
          %1067 = vmatmul.mubr.f32.gmra.mrb[0].mxu0 %v933
          %v1068 = vpop.f32.mrb[0].mxu0
          %v1069 = vadd.f32 %v876, %v1068
          %v1070 = vpop.f32.mrb[0].mxu0
          %1071 = vmatprep.mubr.f32.mxu0 0.0
          %1072 = vmatmul.mubr.f32.gmra.mrb[0].mxu0 %v936
          %v1073 = vpop.f32.mrb[0].mxu0
          %v1074 = vadd.f32 %v881, %v1073
          %v1075 = vpop.f32.mrb[0].mxu0
          %1076 = vmatprep.mubr.f32.mxu0 0.0
          %1077 = vmatmul.mubr.f32.gmra.mrb[0].mxu0 %v939
          %v1078 = vpop.f32.mrb[0].mxu0
          %v1079 = vadd.f32 %v886, %v1078
          %v1080 = vpop.f32.mrb[0].mxu0
          %1081 = vmatprep.mubr.f32.mxu0 0.0
          %1082 = vmatmul.mubr.f32.gmra.mrb[0].mxu0 %v942
          %v1083 = vpop.f32.mrb[0].mxu0
          %v1084 = vadd.f32 %v891, %v1083
          %v1085 = vpop.f32.mrb[0].mxu0
          %1086 = vmatprep.mubr.f32.mxu0 0.0
          %1087 = vmatmul.mubr.f32.gmra.mrb[0].mxu0 %v945
          %v1088 = vpop.f32.mrb[0].mxu0
          %v1089 = vadd.f32 %v896, %v1088
          %v1090 = vpop.f32.mrb[0].mxu0
          %1091 = vdwg.mxu0
          %v1092 = vld [vmem:[%s7] sm:$0xff]
          %v1093 = vld [vmem:[%s7 + $0x8] sm:$0xff]
          %v1094 = vld [vmem:[%s7 + $0x10] sm:$0xff]
          %v1095 = vld [vmem:[%s7 + $0x18] sm:$0xff]
          %v1096 = vld [vmem:[%s7 + $0x20] sm:$0xff]
          %v1097 = vld [vmem:[%s7 + $0x28] sm:$0xff]
          %v1098 = vld [vmem:[%s7 + $0x30] sm:$0xff]
          %v1099 = vld [vmem:[%s7 + $0x38] sm:$0xff]
          %v1100 = vld [vmem:[%s7 + $0x40] sm:$0xff]
          %v1101 = vld [vmem:[%s7 + $0x48] sm:$0xff]
          %v1102 = vld [vmem:[%s7 + $0x50] sm:$0xff]
          %v1103 = vld [vmem:[%s7 + $0x58] sm:$0xff]
          %v1104 = vld [vmem:[%s7 + $0x60] sm:$0xff]
          %v1105 = vld [vmem:[%s7 + $0x68] sm:$0xff]
          %v1106 = vld [vmem:[%s7 + $0x70] sm:$0xff]
          %v1107 = vld [vmem:[%s7 + $0x78] sm:$0xff]
          %v1108 = vld [vmem:[%s643] sm:$0xff]
          %1110 = vset.pattern.permute.xlu0 0
          %1111 = vperm.xlu0 %1110, %v781
          %v1112 = vpop.permute.xlu0 %1111
          %1115 = vset.pattern.permute.xlu0 0
          %1116 = vperm.xlu0 %1115, %v782
          %v1117 = vpop.permute.xlu0 %1116
          %1120 = vset.pattern.permute.xlu0 0
          %1121 = vperm.xlu0 %1120, %v783
          %v1122 = vpop.permute.xlu0 %1121
          %1125 = vset.pattern.permute.xlu0 0
          %1126 = vperm.xlu0 %1125, %v784
          %v1127 = vpop.permute.xlu0 %1126
          %1130 = vset.pattern.permute.xlu0 0
          %1131 = vperm.xlu0 %1130, %v785
          %v1132 = vpop.permute.xlu0 %1131
          %1135 = vset.pattern.permute.xlu0 0
          %1136 = vperm.xlu0 %1135, %v786
          %v1137 = vpop.permute.xlu0 %1136
          %1140 = vset.pattern.permute.xlu0 0
          %1141 = vperm.xlu0 %1140, %v787
          %v1142 = vpop.permute.xlu0 %1141
          %1145 = vset.pattern.permute.xlu0 0
          %1146 = vperm.xlu0 %1145, %v788
          %v1147 = vpop.permute.xlu0 %1146
          %1150 = vset.pattern.permute.xlu0 0
          %1151 = vperm.xlu0 %1150, %v789
          %v1152 = vpop.permute.xlu0 %1151
          %1155 = vset.pattern.permute.xlu0 0
          %1156 = vperm.xlu0 %1155, %v790
          %v1157 = vpop.permute.xlu0 %1156
          %1160 = vset.pattern.permute.xlu0 0
          %1161 = vperm.xlu0 %1160, %v791
          %v1162 = vpop.permute.xlu0 %1161
          %1165 = vset.pattern.permute.xlu0 0
          %1166 = vperm.xlu0 %1165, %v792
          %v1167 = vpop.permute.xlu0 %1166
          %1170 = vset.pattern.permute.xlu0 0
          %1171 = vperm.xlu0 %1170, %v793
          %v1172 = vpop.permute.xlu0 %1171
          %1175 = vset.pattern.permute.xlu0 0
          %1176 = vperm.xlu0 %1175, %v794
          %v1177 = vpop.permute.xlu0 %1176
          %1180 = vset.pattern.permute.xlu0 0
          %1181 = vperm.xlu0 %1180, %v795
          %v1182 = vpop.permute.xlu0 %1181
          %1185 = vset.pattern.permute.xlu0 0
          %1186 = vperm.xlu0 %1185, %v796
          %v1187 = vpop.permute.xlu0 %1186
          %v1190 = vsel %vm898, %v1092, 0
          %v1193 = vsel %vm898, %v1093, 0
          %v1196 = vsel %vm898, %v1094, 0
          %v1199 = vsel %vm898, %v1095, 0
          %v1202 = vsel %vm898, %v1096, 0
          %v1205 = vsel %vm898, %v1097, 0
          %v1208 = vsel %vm898, %v1098, 0
          %v1211 = vsel %vm898, %v1099, 0
          %v1214 = vsel %vm898, %v1100, 0
          %v1217 = vsel %vm898, %v1101, 0
          %v1220 = vsel %vm898, %v1102, 0
          %v1223 = vsel %vm898, %v1103, 0
          %v1226 = vsel %vm898, %v1104, 0
          %v1229 = vsel %vm898, %v1105, 0
          %v1232 = vsel %vm898, %v1106, 0
          %v1235 = vsel %vm898, %v1107, 0
          %1237 = vmatprep.subr.mxu0 0.0
          %1238 = vmatpush1.msra.mxu0 %v1108
          %1239 = vmatprep.subr.mxu0 0.0
          %1240 = vmatpush1.msra.mxu0 0.0
          %1241 = vmatprep.subr.mxu0 0.0
          %1242 = vmatpush1.msra.mxu0 0.0
          %1243 = vmatprep.subr.mxu0 0.0
          %1244 = vmatpush1.msra.mxu0 0.0
          %1245 = vmatprep.subr.mxu0 0.0
          %1246 = vmatpush1.msra.mxu0 0.0
          %1247 = vmatprep.subr.mxu0 0.0
          %1248 = vmatpush1.msra.mxu0 0.0
          %1249 = vmatprep.subr.mxu0 0.0
          %1250 = vmatpush1.msra.mxu0 0.0
          %1251 = vmatprep.subr.mxu0 0.0
          %1252 = vmatpush1.msra.mxu0 0.0
          %1253 = vmatprep.subr.mxu0 0.0
          %1254 = vmatpush1.msra.mxu0 0.0
          %1255 = vmatprep.subr.mxu0 0.0
          %1256 = vmatpush1.msra.mxu0 0.0
          %1257 = vmatprep.subr.mxu0 0.0
          %1258 = vmatpush1.msra.mxu0 0.0
          %1259 = vmatprep.subr.mxu0 0.0
          %1260 = vmatpush1.msra.mxu0 0.0
          %1261 = vmatprep.subr.mxu0 0.0
          %1262 = vmatpush1.msra.mxu0 0.0
          %1263 = vmatprep.subr.mxu0 0.0
          %1264 = vmatpush1.msra.mxu0 0.0
          %1265 = vmatprep.subr.mxu0 0.0
          %1266 = vmatpush1.msra.mxu0 0.0
          %1267 = vmatprep.subr.mxu0 0.0
          %1268 = vmatpush1.msra.mxu0 0.0
          %1269 = vmatprep.subr.mxu0 0.0
          %1270 = vmatpush1.msra.mxu0 0.0
          %1271 = vmatprep.subr.mxu0 0.0
          %1272 = vmatpush1.msra.mxu0 0.0
          %1273 = vmatprep.subr.mxu0 0.0
          %1274 = vmatpush1.msra.mxu0 0.0
          %1275 = vmatprep.subr.mxu0 0.0
          %1276 = vmatpush1.msra.mxu0 0.0
          %1277 = vmatprep.subr.mxu0 0.0
          %1278 = vmatpush1.msra.mxu0 0.0
          %1279 = vmatprep.subr.mxu0 0.0
          %1280 = vmatpush1.msra.mxu0 0.0
          %1281 = vmatprep.subr.mxu0 0.0
          %1282 = vmatpush1.msra.mxu0 0.0
          %1283 = vmatprep.subr.mxu0 0.0
          %1284 = vmatpush1.msra.mxu0 0.0
          %1285 = vmatprep.subr.mxu0 0.0
          %1286 = vmatpush1.msra.mxu0 0.0
          %1287 = vmatprep.subr.mxu0 0.0
          %1288 = vmatpush1.msra.mxu0 0.0
          %1289 = vmatprep.subr.mxu0 0.0
          %1290 = vmatpush1.msra.mxu0 0.0
          %1291 = vmatprep.subr.mxu0 0.0
          %1292 = vmatpush1.msra.mxu0 0.0
          %1293 = vmatprep.subr.mxu0 0.0
          %1294 = vmatpush1.msra.mxu0 0.0
          %1295 = vmatprep.subr.mxu0 0.0
          %1296 = vmatpush1.msra.mxu0 0.0
          %1297 = vmatprep.subr.mxu0 0.0
          %1298 = vmatpush1.msra.mxu0 0.0
          %1299 = vmatprep.subr.mxu0 0.0
          %1300 = vmatpush1.msra.mxu0 0.0
          %1301 = vmatprep.mubr.f32.mxu0 0.0
          %1302 = vmatmul.mubr.f32.gmra.mrb[0].mxu0 %v1190
          %v1303 = vpop.f32.mrb[0].mxu0
          %v1304 = vadd.f32 %v1112, %v1303
          %v1305 = vpop.f32.mrb[0].mxu0
          %1306 = vmatprep.mubr.f32.mxu0 0.0
          %1307 = vmatmul.mubr.f32.gmra.mrb[0].mxu0 %v1193
          %v1308 = vpop.f32.mrb[0].mxu0
          %v1309 = vadd.f32 %v1117, %v1308
          %v1310 = vpop.f32.mrb[0].mxu0
          %1311 = vmatprep.mubr.f32.mxu0 0.0
          %1312 = vmatmul.mubr.f32.gmra.mrb[0].mxu0 %v1196
          %v1313 = vpop.f32.mrb[0].mxu0
          %v1314 = vadd.f32 %v1122, %v1313
          %v1315 = vpop.f32.mrb[0].mxu0
          %1316 = vmatprep.mubr.f32.mxu0 0.0
          %1317 = vmatmul.mubr.f32.gmra.mrb[0].mxu0 %v1199
          %v1318 = vpop.f32.mrb[0].mxu0
          %v1319 = vadd.f32 %v1127, %v1318
          %v1320 = vpop.f32.mrb[0].mxu0
          %1321 = vmatprep.mubr.f32.mxu0 0.0
          %1322 = vmatmul.mubr.f32.gmra.mrb[0].mxu0 %v1202
          %v1323 = vpop.f32.mrb[0].mxu0
          %v1324 = vadd.f32 %v1132, %v1323
          %v1325 = vpop.f32.mrb[0].mxu0
          %1326 = vmatprep.mubr.f32.mxu0 0.0
          %1327 = vmatmul.mubr.f32.gmra.mrb[0].mxu0 %v1205
          %v1328 = vpop.f32.mrb[0].mxu0
          %v1329 = vadd.f32 %v1137, %v1328
          %v1330 = vpop.f32.mrb[0].mxu0
          %1331 = vmatprep.mubr.f32.mxu0 0.0
          %1332 = vmatmul.mubr.f32.gmra.mrb[0].mxu0 %v1208
          %v1333 = vpop.f32.mrb[0].mxu0
          %v1334 = vadd.f32 %v1142, %v1333
          %v1335 = vpop.f32.mrb[0].mxu0
          %1336 = vmatprep.mubr.f32.mxu0 0.0
          %1337 = vmatmul.mubr.f32.gmra.mrb[0].mxu0 %v1211
          %v1338 = vpop.f32.mrb[0].mxu0
          %v1339 = vadd.f32 %v1147, %v1338
          %v1340 = vpop.f32.mrb[0].mxu0
          %1341 = vmatprep.mubr.f32.mxu0 0.0
          %1342 = vmatmul.mubr.f32.gmra.mrb[0].mxu0 %v1214
          %v1343 = vpop.f32.mrb[0].mxu0
          %v1344 = vadd.f32 %v1152, %v1343
          %v1345 = vpop.f32.mrb[0].mxu0
          %1346 = vmatprep.mubr.f32.mxu0 0.0
          %1347 = vmatmul.mubr.f32.gmra.mrb[0].mxu0 %v1217
          %v1348 = vpop.f32.mrb[0].mxu0
          %v1349 = vadd.f32 %v1157, %v1348
          %v1350 = vpop.f32.mrb[0].mxu0
          %1351 = vmatprep.mubr.f32.mxu0 0.0
          %1352 = vmatmul.mubr.f32.gmra.mrb[0].mxu0 %v1220
          %v1353 = vpop.f32.mrb[0].mxu0
          %v1354 = vadd.f32 %v1162, %v1353
          %v1355 = vpop.f32.mrb[0].mxu0
          %1356 = vmatprep.mubr.f32.mxu0 0.0
          %1357 = vmatmul.mubr.f32.gmra.mrb[0].mxu0 %v1223
          %v1358 = vpop.f32.mrb[0].mxu0
          %v1359 = vadd.f32 %v1167, %v1358
          %v1360 = vpop.f32.mrb[0].mxu0
          %1361 = vmatprep.mubr.f32.mxu0 0.0
          %1362 = vmatmul.mubr.f32.gmra.mrb[0].mxu0 %v1226
          %v1363 = vpop.f32.mrb[0].mxu0
          %v1364 = vadd.f32 %v1172, %v1363
          %v1365 = vpop.f32.mrb[0].mxu0
          %1366 = vmatprep.mubr.f32.mxu0 0.0
          %1367 = vmatmul.mubr.f32.gmra.mrb[0].mxu0 %v1229
          %v1368 = vpop.f32.mrb[0].mxu0
          %v1369 = vadd.f32 %v1177, %v1368
          %v1370 = vpop.f32.mrb[0].mxu0
          %1371 = vmatprep.mubr.f32.mxu0 0.0
          %1372 = vmatmul.mubr.f32.gmra.mrb[0].mxu0 %v1232
          %v1373 = vpop.f32.mrb[0].mxu0
          %v1374 = vadd.f32 %v1182, %v1373
          %v1375 = vpop.f32.mrb[0].mxu0
          %1376 = vmatprep.mubr.f32.mxu0 0.0
          %1377 = vmatmul.mubr.f32.gmra.mrb[0].mxu0 %v1235
          %v1378 = vpop.f32.mrb[0].mxu0
          %v1379 = vadd.f32 %v1187, %v1378
          %v1380 = vpop.f32.mrb[0].mxu0
          %1381 = vdwg.mxu0
          %1382 = vst [vmem:[#allocation2] sm:$0xff] %v1014
          %1383 = vst [vmem:[#allocation2 + $0x8] sm:$0xff] %v1019
          %1384 = vst [vmem:[#allocation2 + $0x10] sm:$0xff] %v1024
          %1385 = vst [vmem:[#allocation2 + $0x18] sm:$0xff] %v1029
          %1386 = vst [vmem:[#allocation2 + $0x20] sm:$0xff] %v1034
          %1387 = vst [vmem:[#allocation2 + $0x28] sm:$0xff] %v1039
          %1388 = vst [vmem:[#allocation2 + $0x30] sm:$0xff] %v1044
          %1389 = vst [vmem:[#allocation2 + $0x38] sm:$0xff] %v1049
          %1390 = vst [vmem:[#allocation2 + $0x40] sm:$0xff] %v1054
          %1391 = vst [vmem:[#allocation2 + $0x48] sm:$0xff] %v1059
          %1392 = vst [vmem:[#allocation2 + $0x50] sm:$0xff] %v1064
          %1393 = vst [vmem:[#allocation2 + $0x58] sm:$0xff] %v1069
          %1394 = vst [vmem:[#allocation2 + $0x60] sm:$0xff] %v1074
          %1395 = vst [vmem:[#allocation2 + $0x68] sm:$0xff] %v1079
          %1396 = vst [vmem:[#allocation2 + $0x70] sm:$0xff] %v1084
          %1397 = vst [vmem:[#allocation2 + $0x78] sm:$0xff] %v1089
          %1398 = vst [vmem:[#allocation3] sm:$0xff] %v1304
          %1399 = vst [vmem:[#allocation3 + $0x8] sm:$0xff] %v1309
          %1400 = vst [vmem:[#allocation3 + $0x10] sm:$0xff] %v1314
          %1401 = vst [vmem:[#allocation3 + $0x18] sm:$0xff] %v1319
          %1402 = vst [vmem:[#allocation3 + $0x20] sm:$0xff] %v1324
          %1403 = vst [vmem:[#allocation3 + $0x28] sm:$0xff] %v1329
          %1404 = vst [vmem:[#allocation3 + $0x30] sm:$0xff] %v1334
          %1405 = vst [vmem:[#allocation3 + $0x38] sm:$0xff] %v1339
          %1406 = vst [vmem:[#allocation3 + $0x40] sm:$0xff] %v1344
          %1407 = vst [vmem:[#allocation3 + $0x48] sm:$0xff] %v1349
          %1408 = vst [vmem:[#allocation3 + $0x50] sm:$0xff] %v1354
          %1409 = vst [vmem:[#allocation3 + $0x58] sm:$0xff] %v1359
          %1410 = vst [vmem:[#allocation3 + $0x60] sm:$0xff] %v1364
          %1411 = vst [vmem:[#allocation3 + $0x68] sm:$0xff] %v1369
          %1412 = vst [vmem:[#allocation3 + $0x70] sm:$0xff] %v1374
          %1413 = vst [vmem:[#allocation3 + $0x78] sm:$0xff] %v1379
          %v1414 = vld [vmem:[%s9] sm:$0xff]
          %v1415 = vld [vmem:[%s9 + $0x8] sm:$0xff]
          %v1416 = vld [vmem:[%s9 + $0x10] sm:$0xff]
          %v1417 = vld [vmem:[%s9 + $0x18] sm:$0xff]
          %v1418 = vld [vmem:[%s9 + $0x20] sm:$0xff]
          %v1419 = vld [vmem:[%s9 + $0x28] sm:$0xff]
          %v1420 = vld [vmem:[%s9 + $0x30] sm:$0xff]
          %v1421 = vld [vmem:[%s9 + $0x38] sm:$0xff]
          %v1422 = vld [vmem:[%s9 + $0x40] sm:$0xff]
          %v1423 = vld [vmem:[%s9 + $0x48] sm:$0xff]
          %v1424 = vld [vmem:[%s9 + $0x50] sm:$0xff]
          %v1425 = vld [vmem:[%s9 + $0x58] sm:$0xff]
          %v1426 = vld [vmem:[%s9 + $0x60] sm:$0xff]
          %v1427 = vld [vmem:[%s9 + $0x68] sm:$0xff]
          %v1428 = vld [vmem:[%s9 + $0x70] sm:$0xff]
          %v1429 = vld [vmem:[%s9 + $0x78] sm:$0xff]
          %1431 = vset.pattern.permute.xlu0 0
          %1432 = vperm.xlu0 %1431, %v749
          %v1433 = vpop.permute.xlu0 %1432
          %1436 = vset.pattern.permute.xlu0 0
          %1437 = vperm.xlu0 %1436, %v750
          %v1438 = vpop.permute.xlu0 %1437
          %1441 = vset.pattern.permute.xlu0 0
          %1442 = vperm.xlu0 %1441, %v751
          %v1443 = vpop.permute.xlu0 %1442
          %1446 = vset.pattern.permute.xlu0 0
          %1447 = vperm.xlu0 %1446, %v752
          %v1448 = vpop.permute.xlu0 %1447
          %1451 = vset.pattern.permute.xlu0 0
          %1452 = vperm.xlu0 %1451, %v753
          %v1453 = vpop.permute.xlu0 %1452
          %1456 = vset.pattern.permute.xlu0 0
          %1457 = vperm.xlu0 %1456, %v754
          %v1458 = vpop.permute.xlu0 %1457
          %1461 = vset.pattern.permute.xlu0 0
          %1462 = vperm.xlu0 %1461, %v755
          %v1463 = vpop.permute.xlu0 %1462
          %1466 = vset.pattern.permute.xlu0 0
          %1467 = vperm.xlu0 %1466, %v756
          %v1468 = vpop.permute.xlu0 %1467
          %1471 = vset.pattern.permute.xlu0 0
          %1472 = vperm.xlu0 %1471, %v757
          %v1473 = vpop.permute.xlu0 %1472
          %1476 = vset.pattern.permute.xlu0 0
          %1477 = vperm.xlu0 %1476, %v758
          %v1478 = vpop.permute.xlu0 %1477
          %1481 = vset.pattern.permute.xlu0 0
          %1482 = vperm.xlu0 %1481, %v759
          %v1483 = vpop.permute.xlu0 %1482
          %1486 = vset.pattern.permute.xlu0 0
          %1487 = vperm.xlu0 %1486, %v760
          %v1488 = vpop.permute.xlu0 %1487
          %1491 = vset.pattern.permute.xlu0 0
          %1492 = vperm.xlu0 %1491, %v761
          %v1493 = vpop.permute.xlu0 %1492
          %1496 = vset.pattern.permute.xlu0 0
          %1497 = vperm.xlu0 %1496, %v762
          %v1498 = vpop.permute.xlu0 %1497
          %1501 = vset.pattern.permute.xlu0 0
          %1502 = vperm.xlu0 %1501, %v763
          %v1503 = vpop.permute.xlu0 %1502
          %1506 = vset.pattern.permute.xlu0 0
          %1507 = vperm.xlu0 %1506, %v764
          %v1508 = vpop.permute.xlu0 %1507
          %v1510 = vsub.f32 %v1014, %v1433
          %v1511 = vsub.f32 %v1019, %v1438
          %v1512 = vsub.f32 %v1024, %v1443
          %v1513 = vsub.f32 %v1029, %v1448
          %v1514 = vsub.f32 %v1034, %v1453
          %v1515 = vsub.f32 %v1039, %v1458
          %v1516 = vsub.f32 %v1044, %v1463
          %v1517 = vsub.f32 %v1049, %v1468
          %v1518 = vsub.f32 %v1054, %v1473
          %v1519 = vsub.f32 %v1059, %v1478
          %v1520 = vsub.f32 %v1064, %v1483
          %v1521 = vsub.f32 %v1069, %v1488
          %v1522 = vsub.f32 %v1074, %v1493
          %v1523 = vsub.f32 %v1079, %v1498
          %v1524 = vsub.f32 %v1084, %v1503
          %v1525 = vsub.f32 %v1089, %v1508
          %1526 = vmatprep.subr.mxu0 0.0
          %1527 = vmatpush1.msra.mxu0 %v1510
          %1528 = vmatprep.subr.mxu0 0.0
          %1529 = vmatpush1.msra.mxu0 %v1511
          %1530 = vmatprep.subr.mxu0 0.0
          %1531 = vmatpush1.msra.mxu0 %v1512
          %1532 = vmatprep.subr.mxu0 0.0
          %1533 = vmatpush1.msra.mxu0 %v1513
          %1534 = vmatprep.subr.mxu0 0.0
          %1535 = vmatpush1.msra.mxu0 %v1514
          %1536 = vmatprep.subr.mxu0 0.0
          %1537 = vmatpush1.msra.mxu0 %v1515
          %1538 = vmatprep.subr.mxu0 0.0
          %1539 = vmatpush1.msra.mxu0 %v1516
          %1540 = vmatprep.subr.mxu0 0.0
          %1541 = vmatpush1.msra.mxu0 %v1517
          %1542 = vmatprep.subr.mxu0 0.0
          %1543 = vmatpush1.msra.mxu0 %v1518
          %1544 = vmatprep.subr.mxu0 0.0
          %1545 = vmatpush1.msra.mxu0 %v1519
          %1546 = vmatprep.subr.mxu0 0.0
          %1547 = vmatpush1.msra.mxu0 %v1520
          %1548 = vmatprep.subr.mxu0 0.0
          %1549 = vmatpush1.msra.mxu0 %v1521
          %1550 = vmatprep.subr.mxu0 0.0
          %1551 = vmatpush1.msra.mxu0 %v1522
          %1552 = vmatprep.subr.mxu0 0.0
          %1553 = vmatpush1.msra.mxu0 %v1523
          %1554 = vmatprep.subr.mxu0 0.0
          %1555 = vmatpush1.msra.mxu0 %v1524
          %1556 = vmatprep.subr.mxu0 0.0
          %1557 = vmatpush1.msra.mxu0 %v1525
          %1558 = vmatprep.subr.mxu0 0.0
          %1559 = vmatpush1.msra.mxu0 0.0
          %1560 = vmatprep.subr.mxu0 0.0
          %1561 = vmatpush1.msra.mxu0 0.0
          %1562 = vmatprep.subr.mxu0 0.0
          %1563 = vmatpush1.msra.mxu0 0.0
          %1564 = vmatprep.subr.mxu0 0.0
          %1565 = vmatpush1.msra.mxu0 0.0
          %1566 = vmatprep.subr.mxu0 0.0
          %1567 = vmatpush1.msra.mxu0 0.0
          %1568 = vmatprep.subr.mxu0 0.0
          %1569 = vmatpush1.msra.mxu0 0.0
          %1570 = vmatprep.subr.mxu0 0.0
          %1571 = vmatpush1.msra.mxu0 0.0
          %1572 = vmatprep.subr.mxu0 0.0
          %1573 = vmatpush1.msra.mxu0 0.0
          %1574 = vmatprep.subr.mxu0 0.0
          %1575 = vmatpush1.msra.mxu0 0.0
          %1576 = vmatprep.subr.mxu0 0.0
          %1577 = vmatpush1.msra.mxu0 0.0
          %1578 = vmatprep.subr.mxu0 0.0
          %1579 = vmatpush1.msra.mxu0 0.0
          %1580 = vmatprep.subr.mxu0 0.0
          %1581 = vmatpush1.msra.mxu0 0.0
          %1582 = vmatprep.subr.mxu0 0.0
          %1583 = vmatpush1.msra.mxu0 0.0
          %1584 = vmatprep.subr.mxu0 0.0
          %1585 = vmatpush1.msra.mxu0 0.0
          %1586 = vmatprep.subr.mxu0 0.0
          %1587 = vmatpush1.msra.mxu0 0.0
          %1588 = vmatprep.subr.mxu0 0.0
          %1589 = vmatpush1.msra.mxu0 0.0
          %1590 = vmatprep.mubr.f32.mxu0 0.0
          %1591 = vmatmul.mubr.f32.gmra.mrb[0].mxu0 %v1414
          %v1592 = vpop.f32.mrb[0].mxu0
          %v1593 = vadd.f32 0.0, %v1592
          %v1594 = vpop.f32.mrb[0].mxu0
          %1595 = vmatprep.mubr.f32.mxu0 0.0
          %1596 = vmatmul.mubr.f32.gmra.mrb[0].mxu0 %v1415
          %v1597 = vpop.f32.mrb[0].mxu0
          %v1598 = vadd.f32 0.0, %v1597
          %v1599 = vpop.f32.mrb[0].mxu0
          %1600 = vmatprep.mubr.f32.mxu0 0.0
          %1601 = vmatmul.mubr.f32.gmra.mrb[0].mxu0 %v1416
          %v1602 = vpop.f32.mrb[0].mxu0
          %v1603 = vadd.f32 0.0, %v1602
          %v1604 = vpop.f32.mrb[0].mxu0
          %1605 = vmatprep.mubr.f32.mxu0 0.0
          %1606 = vmatmul.mubr.f32.gmra.mrb[0].mxu0 %v1417
          %v1607 = vpop.f32.mrb[0].mxu0
          %v1608 = vadd.f32 0.0, %v1607
          %v1609 = vpop.f32.mrb[0].mxu0
          %1610 = vmatprep.mubr.f32.mxu0 0.0
          %1611 = vmatmul.mubr.f32.gmra.mrb[0].mxu0 %v1418
          %v1612 = vpop.f32.mrb[0].mxu0
          %v1613 = vadd.f32 0.0, %v1612
          %v1614 = vpop.f32.mrb[0].mxu0
          %1615 = vmatprep.mubr.f32.mxu0 0.0
          %1616 = vmatmul.mubr.f32.gmra.mrb[0].mxu0 %v1419
          %v1617 = vpop.f32.mrb[0].mxu0
          %v1618 = vadd.f32 0.0, %v1617
          %v1619 = vpop.f32.mrb[0].mxu0
          %1620 = vmatprep.mubr.f32.mxu0 0.0
          %1621 = vmatmul.mubr.f32.gmra.mrb[0].mxu0 %v1420
          %v1622 = vpop.f32.mrb[0].mxu0
          %v1623 = vadd.f32 0.0, %v1622
          %v1624 = vpop.f32.mrb[0].mxu0
          %1625 = vmatprep.mubr.f32.mxu0 0.0
          %1626 = vmatmul.mubr.f32.gmra.mrb[0].mxu0 %v1421
          %v1627 = vpop.f32.mrb[0].mxu0
          %v1628 = vadd.f32 0.0, %v1627
          %v1629 = vpop.f32.mrb[0].mxu0
          %1630 = vmatprep.mubr.f32.mxu0 0.0
          %1631 = vmatmul.mubr.f32.gmra.mrb[0].mxu0 %v1422
          %v1632 = vpop.f32.mrb[0].mxu0
          %v1633 = vadd.f32 0.0, %v1632
          %v1634 = vpop.f32.mrb[0].mxu0
          %1635 = vmatprep.mubr.f32.mxu0 0.0
          %1636 = vmatmul.mubr.f32.gmra.mrb[0].mxu0 %v1423
          %v1637 = vpop.f32.mrb[0].mxu0
          %v1638 = vadd.f32 0.0, %v1637
          %v1639 = vpop.f32.mrb[0].mxu0
          %1640 = vmatprep.mubr.f32.mxu0 0.0
          %1641 = vmatmul.mubr.f32.gmra.mrb[0].mxu0 %v1424
          %v1642 = vpop.f32.mrb[0].mxu0
          %v1643 = vadd.f32 0.0, %v1642
          %v1644 = vpop.f32.mrb[0].mxu0
          %1645 = vmatprep.mubr.f32.mxu0 0.0
          %1646 = vmatmul.mubr.f32.gmra.mrb[0].mxu0 %v1425
          %v1647 = vpop.f32.mrb[0].mxu0
          %v1648 = vadd.f32 0.0, %v1647
          %v1649 = vpop.f32.mrb[0].mxu0
          %1650 = vmatprep.mubr.f32.mxu0 0.0
          %1651 = vmatmul.mubr.f32.gmra.mrb[0].mxu0 %v1426
          %v1652 = vpop.f32.mrb[0].mxu0
          %v1653 = vadd.f32 0.0, %v1652
          %v1654 = vpop.f32.mrb[0].mxu0
          %1655 = vmatprep.mubr.f32.mxu0 0.0
          %1656 = vmatmul.mubr.f32.gmra.mrb[0].mxu0 %v1427
          %v1657 = vpop.f32.mrb[0].mxu0
          %v1658 = vadd.f32 0.0, %v1657
          %v1659 = vpop.f32.mrb[0].mxu0
          %1660 = vmatprep.mubr.f32.mxu0 0.0
          %1661 = vmatmul.mubr.f32.gmra.mrb[0].mxu0 %v1428
          %v1662 = vpop.f32.mrb[0].mxu0
          %v1663 = vadd.f32 0.0, %v1662
          %v1664 = vpop.f32.mrb[0].mxu0
          %1665 = vmatprep.mubr.f32.mxu0 0.0
          %1666 = vmatmul.mubr.f32.gmra.mrb[0].mxu0 %v1429
          %v1667 = vpop.f32.mrb[0].mxu0
          %v1668 = vadd.f32 0.0, %v1667
          %v1669 = vpop.f32.mrb[0].mxu0
          %1670 = vdwg.mxu0
          %v1671 = vld [vmem:[%s10] sm:$0xff]
          %v1672 = vld [vmem:[%s10 + $0x8] sm:$0xff]
          %v1673 = vld [vmem:[%s10 + $0x10] sm:$0xff]
          %v1674 = vld [vmem:[%s10 + $0x18] sm:$0xff]
          %v1675 = vld [vmem:[%s10 + $0x20] sm:$0xff]
          %v1676 = vld [vmem:[%s10 + $0x28] sm:$0xff]
          %v1677 = vld [vmem:[%s10 + $0x30] sm:$0xff]
          %v1678 = vld [vmem:[%s10 + $0x38] sm:$0xff]
          %v1679 = vld [vmem:[%s10 + $0x40] sm:$0xff]
          %v1680 = vld [vmem:[%s10 + $0x48] sm:$0xff]
          %v1681 = vld [vmem:[%s10 + $0x50] sm:$0xff]
          %v1682 = vld [vmem:[%s10 + $0x58] sm:$0xff]
          %v1683 = vld [vmem:[%s10 + $0x60] sm:$0xff]
          %v1684 = vld [vmem:[%s10 + $0x68] sm:$0xff]
          %v1685 = vld [vmem:[%s10 + $0x70] sm:$0xff]
          %v1686 = vld [vmem:[%s10 + $0x78] sm:$0xff]
          %1687 = vset.pattern.permute.xlu0 1
          %1688 = vperm.xlu0 %1687, %v749
          %v1689 = vpop.permute.xlu0 %1688
          %1691 = vset.pattern.permute.xlu0 1
          %1692 = vperm.xlu0 %1691, %v750
          %v1693 = vpop.permute.xlu0 %1692
          %1695 = vset.pattern.permute.xlu0 1
          %1696 = vperm.xlu0 %1695, %v751
          %v1697 = vpop.permute.xlu0 %1696
          %1699 = vset.pattern.permute.xlu0 1
          %1700 = vperm.xlu0 %1699, %v752
          %v1701 = vpop.permute.xlu0 %1700
          %1703 = vset.pattern.permute.xlu0 1
          %1704 = vperm.xlu0 %1703, %v753
          %v1705 = vpop.permute.xlu0 %1704
          %1707 = vset.pattern.permute.xlu0 1
          %1708 = vperm.xlu0 %1707, %v754
          %v1709 = vpop.permute.xlu0 %1708
          %1711 = vset.pattern.permute.xlu0 1
          %1712 = vperm.xlu0 %1711, %v755
          %v1713 = vpop.permute.xlu0 %1712
          %1715 = vset.pattern.permute.xlu0 1
          %1716 = vperm.xlu0 %1715, %v756
          %v1717 = vpop.permute.xlu0 %1716
          %1719 = vset.pattern.permute.xlu0 1
          %1720 = vperm.xlu0 %1719, %v757
          %v1721 = vpop.permute.xlu0 %1720
          %1723 = vset.pattern.permute.xlu0 1
          %1724 = vperm.xlu0 %1723, %v758
          %v1725 = vpop.permute.xlu0 %1724
          %1727 = vset.pattern.permute.xlu0 1
          %1728 = vperm.xlu0 %1727, %v759
          %v1729 = vpop.permute.xlu0 %1728
          %1731 = vset.pattern.permute.xlu0 1
          %1732 = vperm.xlu0 %1731, %v760
          %v1733 = vpop.permute.xlu0 %1732
          %1735 = vset.pattern.permute.xlu0 1
          %1736 = vperm.xlu0 %1735, %v761
          %v1737 = vpop.permute.xlu0 %1736
          %1739 = vset.pattern.permute.xlu0 1
          %1740 = vperm.xlu0 %1739, %v762
          %v1741 = vpop.permute.xlu0 %1740
          %1743 = vset.pattern.permute.xlu0 1
          %1744 = vperm.xlu0 %1743, %v763
          %v1745 = vpop.permute.xlu0 %1744
          %1747 = vset.pattern.permute.xlu0 1
          %1748 = vperm.xlu0 %1747, %v764
          %v1749 = vpop.permute.xlu0 %1748
          %v1751 = vsub.f32 %v1304, %v1689
          %v1752 = vsub.f32 %v1309, %v1693
          %v1753 = vsub.f32 %v1314, %v1697
          %v1754 = vsub.f32 %v1319, %v1701
          %v1755 = vsub.f32 %v1324, %v1705
          %v1756 = vsub.f32 %v1329, %v1709
          %v1757 = vsub.f32 %v1334, %v1713
          %v1758 = vsub.f32 %v1339, %v1717
          %v1759 = vsub.f32 %v1344, %v1721
          %v1760 = vsub.f32 %v1349, %v1725
          %v1761 = vsub.f32 %v1354, %v1729
          %v1762 = vsub.f32 %v1359, %v1733
          %v1763 = vsub.f32 %v1364, %v1737
          %v1764 = vsub.f32 %v1369, %v1741
          %v1765 = vsub.f32 %v1374, %v1745
          %v1766 = vsub.f32 %v1379, %v1749
          %1767 = vmatprep.subr.mxu0 0.0
          %1768 = vmatpush1.msra.mxu0 %v1751
          %1769 = vmatprep.subr.mxu0 0.0
          %1770 = vmatpush1.msra.mxu0 %v1752
          %1771 = vmatprep.subr.mxu0 0.0
          %1772 = vmatpush1.msra.mxu0 %v1753
          %1773 = vmatprep.subr.mxu0 0.0
          %1774 = vmatpush1.msra.mxu0 %v1754
          %1775 = vmatprep.subr.mxu0 0.0
          %1776 = vmatpush1.msra.mxu0 %v1755
          %1777 = vmatprep.subr.mxu0 0.0
          %1778 = vmatpush1.msra.mxu0 %v1756
          %1779 = vmatprep.subr.mxu0 0.0
          %1780 = vmatpush1.msra.mxu0 %v1757
          %1781 = vmatprep.subr.mxu0 0.0
          %1782 = vmatpush1.msra.mxu0 %v1758
          %1783 = vmatprep.subr.mxu0 0.0
          %1784 = vmatpush1.msra.mxu0 %v1759
          %1785 = vmatprep.subr.mxu0 0.0
          %1786 = vmatpush1.msra.mxu0 %v1760
          %1787 = vmatprep.subr.mxu0 0.0
          %1788 = vmatpush1.msra.mxu0 %v1761
          %1789 = vmatprep.subr.mxu0 0.0
          %1790 = vmatpush1.msra.mxu0 %v1762
          %1791 = vmatprep.subr.mxu0 0.0
          %1792 = vmatpush1.msra.mxu0 %v1763
          %1793 = vmatprep.subr.mxu0 0.0
          %1794 = vmatpush1.msra.mxu0 %v1764
          %1795 = vmatprep.subr.mxu0 0.0
          %1796 = vmatpush1.msra.mxu0 %v1765
          %1797 = vmatprep.subr.mxu0 0.0
          %1798 = vmatpush1.msra.mxu0 %v1766
          %1799 = vmatprep.subr.mxu0 0.0
          %1800 = vmatpush1.msra.mxu0 0.0
          %1801 = vmatprep.subr.mxu0 0.0
          %1802 = vmatpush1.msra.mxu0 0.0
          %1803 = vmatprep.subr.mxu0 0.0
          %1804 = vmatpush1.msra.mxu0 0.0
          %1805 = vmatprep.subr.mxu0 0.0
          %1806 = vmatpush1.msra.mxu0 0.0
          %1807 = vmatprep.subr.mxu0 0.0
          %1808 = vmatpush1.msra.mxu0 0.0
          %1809 = vmatprep.subr.mxu0 0.0
          %1810 = vmatpush1.msra.mxu0 0.0
          %1811 = vmatprep.subr.mxu0 0.0
          %1812 = vmatpush1.msra.mxu0 0.0
          %1813 = vmatprep.subr.mxu0 0.0
          %1814 = vmatpush1.msra.mxu0 0.0
          %1815 = vmatprep.subr.mxu0 0.0
          %1816 = vmatpush1.msra.mxu0 0.0
          %1817 = vmatprep.subr.mxu0 0.0
          %1818 = vmatpush1.msra.mxu0 0.0
          %1819 = vmatprep.subr.mxu0 0.0
          %1820 = vmatpush1.msra.mxu0 0.0
          %1821 = vmatprep.subr.mxu0 0.0
          %1822 = vmatpush1.msra.mxu0 0.0
          %1823 = vmatprep.subr.mxu0 0.0
          %1824 = vmatpush1.msra.mxu0 0.0
          %1825 = vmatprep.subr.mxu0 0.0
          %1826 = vmatpush1.msra.mxu0 0.0
          %1827 = vmatprep.subr.mxu0 0.0
          %1828 = vmatpush1.msra.mxu0 0.0
          %1829 = vmatprep.subr.mxu0 0.0
          %1830 = vmatpush1.msra.mxu0 0.0
          %1831 = vmatprep.mubr.f32.mxu0 0.0
          %1832 = vmatmul.mubr.f32.gmra.mrb[0].mxu0 %v1671
          %v1833 = vpop.f32.mrb[0].mxu0
          %v1834 = vadd.f32 0.0, %v1833
          %v1835 = vpop.f32.mrb[0].mxu0
          %1836 = vmatprep.mubr.f32.mxu0 0.0
          %1837 = vmatmul.mubr.f32.gmra.mrb[0].mxu0 %v1672
          %v1838 = vpop.f32.mrb[0].mxu0
          %v1839 = vadd.f32 0.0, %v1838
          %v1840 = vpop.f32.mrb[0].mxu0
          %1841 = vmatprep.mubr.f32.mxu0 0.0
          %1842 = vmatmul.mubr.f32.gmra.mrb[0].mxu0 %v1673
          %v1843 = vpop.f32.mrb[0].mxu0
          %v1844 = vadd.f32 0.0, %v1843
          %v1845 = vpop.f32.mrb[0].mxu0
          %1846 = vmatprep.mubr.f32.mxu0 0.0
          %1847 = vmatmul.mubr.f32.gmra.mrb[0].mxu0 %v1674
          %v1848 = vpop.f32.mrb[0].mxu0
          %v1849 = vadd.f32 0.0, %v1848
          %v1850 = vpop.f32.mrb[0].mxu0
          %1851 = vmatprep.mubr.f32.mxu0 0.0
          %1852 = vmatmul.mubr.f32.gmra.mrb[0].mxu0 %v1675
          %v1853 = vpop.f32.mrb[0].mxu0
          %v1854 = vadd.f32 0.0, %v1853
          %v1855 = vpop.f32.mrb[0].mxu0
          %1856 = vmatprep.mubr.f32.mxu0 0.0
          %1857 = vmatmul.mubr.f32.gmra.mrb[0].mxu0 %v1676
          %v1858 = vpop.f32.mrb[0].mxu0
          %v1859 = vadd.f32 0.0, %v1858
          %v1860 = vpop.f32.mrb[0].mxu0
          %1861 = vmatprep.mubr.f32.mxu0 0.0
          %1862 = vmatmul.mubr.f32.gmra.mrb[0].mxu0 %v1677
          %v1863 = vpop.f32.mrb[0].mxu0
          %v1864 = vadd.f32 0.0, %v1863
          %v1865 = vpop.f32.mrb[0].mxu0
          %1866 = vmatprep.mubr.f32.mxu0 0.0
          %1867 = vmatmul.mubr.f32.gmra.mrb[0].mxu0 %v1678
          %v1868 = vpop.f32.mrb[0].mxu0
          %v1869 = vadd.f32 0.0, %v1868
          %v1870 = vpop.f32.mrb[0].mxu0
          %1871 = vmatprep.mubr.f32.mxu0 0.0
          %1872 = vmatmul.mubr.f32.gmra.mrb[0].mxu0 %v1679
          %v1873 = vpop.f32.mrb[0].mxu0
          %v1874 = vadd.f32 0.0, %v1873
          %v1875 = vpop.f32.mrb[0].mxu0
          %1876 = vmatprep.mubr.f32.mxu0 0.0
          %1877 = vmatmul.mubr.f32.gmra.mrb[0].mxu0 %v1680
          %v1878 = vpop.f32.mrb[0].mxu0
          %v1879 = vadd.f32 0.0, %v1878
          %v1880 = vpop.f32.mrb[0].mxu0
          %1881 = vmatprep.mubr.f32.mxu0 0.0
          %1882 = vmatmul.mubr.f32.gmra.mrb[0].mxu0 %v1681
          %v1883 = vpop.f32.mrb[0].mxu0
          %v1884 = vadd.f32 0.0, %v1883
          %v1885 = vpop.f32.mrb[0].mxu0
          %1886 = vmatprep.mubr.f32.mxu0 0.0
          %1887 = vmatmul.mubr.f32.gmra.mrb[0].mxu0 %v1682
          %v1888 = vpop.f32.mrb[0].mxu0
          %v1889 = vadd.f32 0.0, %v1888
          %v1890 = vpop.f32.mrb[0].mxu0
          %1891 = vmatprep.mubr.f32.mxu0 0.0
          %1892 = vmatmul.mubr.f32.gmra.mrb[0].mxu0 %v1683
          %v1893 = vpop.f32.mrb[0].mxu0
          %v1894 = vadd.f32 0.0, %v1893
          %v1895 = vpop.f32.mrb[0].mxu0
          %1896 = vmatprep.mubr.f32.mxu0 0.0
          %1897 = vmatmul.mubr.f32.gmra.mrb[0].mxu0 %v1684
          %v1898 = vpop.f32.mrb[0].mxu0
          %v1899 = vadd.f32 0.0, %v1898
          %v1900 = vpop.f32.mrb[0].mxu0
          %1901 = vmatprep.mubr.f32.mxu0 0.0
          %1902 = vmatmul.mubr.f32.gmra.mrb[0].mxu0 %v1685
          %v1903 = vpop.f32.mrb[0].mxu0
          %v1904 = vadd.f32 0.0, %v1903
          %v1905 = vpop.f32.mrb[0].mxu0
          %1906 = vmatprep.mubr.f32.mxu0 0.0
          %1907 = vmatmul.mubr.f32.gmra.mrb[0].mxu0 %v1686
          %v1908 = vpop.f32.mrb[0].mxu0
          %v1909 = vadd.f32 0.0, %v1908
          %v1910 = vpop.f32.mrb[0].mxu0
          %1911 = vdwg.mxu0
          %1912 = vxpose.xlu0.b32.start [1/16] %v1593, 128
          %1913 = vxpose.xlu0.b32.cont [2/16] %v1598, 128
          %1914 = vxpose.xlu0.b32.cont [3/16] %v1603, 128
          %1915 = vxpose.xlu0.b32.cont [4/16] %v1608, 128
          %1916 = vxpose.xlu0.b32.cont [5/16] %v1613, 128
          %1917 = vxpose.xlu0.b32.cont [6/16] %v1618, 128
          %1918 = vxpose.xlu0.b32.cont [7/16] %v1623, 128
          %1919 = vxpose.xlu0.b32.cont [8/16] %v1628, 128
          %1920 = vxpose.xlu0.b32.cont [9/16] %v1633, 128
          %1921 = vxpose.xlu0.b32.cont [10/16] %v1638, 128
          %1922 = vxpose.xlu0.b32.cont [11/16] %v1643, 128
          %1923 = vxpose.xlu0.b32.cont [12/16] %v1648, 128
          %1924 = vxpose.xlu0.b32.cont [13/16] %v1653, 128
          %1925 = vxpose.xlu0.b32.cont [14/16] %v1658, 128
          %1926 = vxpose.xlu0.b32.cont [15/16] %v1663, 128
          %1927 = vxpose.xlu0.b32.end [16/16] %v1668, 128
          %v1928 = vpop.trf.xlu0
          %v1929 = vpop.trf.xlu0
          %v1930 = vpop.trf.xlu0
          %v1931 = vpop.trf.xlu0
          %v1932 = vpop.trf.xlu0
          %v1933 = vpop.trf.xlu0
          %v1934 = vpop.trf.xlu0
          %v1935 = vpop.trf.xlu0
          %v1936 = vpop.trf.xlu0
          %v1937 = vpop.trf.xlu0
          %v1938 = vpop.trf.xlu0
          %v1939 = vpop.trf.xlu0
          %v1940 = vpop.trf.xlu0
          %v1941 = vpop.trf.xlu0
          %v1942 = vpop.trf.xlu0
          %v1943 = vpop.trf.xlu0
          %v1944 = vpack.c.bf16 %v1929, %v1928
          %v1945 = vpack.c.bf16 %v1931, %v1930
          %v1946 = vpack.c.bf16 %v1933, %v1932
          %v1947 = vpack.c.bf16 %v1935, %v1934
          %v1948 = vpack.c.bf16 %v1937, %v1936
          %v1949 = vpack.c.bf16 %v1939, %v1938
          %v1950 = vpack.c.bf16 %v1941, %v1940
          %v1951 = vpack.c.bf16 %v1943, %v1942
          %1952 = vst [vmem:[#allocation4] sm:$0xff] %v1944
          %1953 = vst [vmem:[#allocation4 + $0x8] sm:$0xff] %v1945
          %1954 = vst [vmem:[#allocation4 + $0x10] sm:$0xff] %v1946
          %1955 = vst [vmem:[#allocation4 + $0x18] sm:$0xff] %v1947
          %1956 = vst [vmem:[#allocation4 + $0x20] sm:$0xff] %v1948
          %1957 = vst [vmem:[#allocation4 + $0x28] sm:$0xff] %v1949
          %1958 = vst [vmem:[#allocation4 + $0x30] sm:$0xff] %v1950
          %1959 = vst [vmem:[#allocation4 + $0x38] sm:$0xff] %v1951
          %1960 = vxpose.xlu0.b32.start [1/16] %v1834, 128
          %1961 = vxpose.xlu0.b32.cont [2/16] %v1839, 128
          %1962 = vxpose.xlu0.b32.cont [3/16] %v1844, 128
          %1963 = vxpose.xlu0.b32.cont [4/16] %v1849, 128
          %1964 = vxpose.xlu0.b32.cont [5/16] %v1854, 128
          %1965 = vxpose.xlu0.b32.cont [6/16] %v1859, 128
          %1966 = vxpose.xlu0.b32.cont [7/16] %v1864, 128
          %1967 = vxpose.xlu0.b32.cont [8/16] %v1869, 128
          %1968 = vxpose.xlu0.b32.cont [9/16] %v1874, 128
          %1969 = vxpose.xlu0.b32.cont [10/16] %v1879, 128
          %1970 = vxpose.xlu0.b32.cont [11/16] %v1884, 128
          %1971 = vxpose.xlu0.b32.cont [12/16] %v1889, 128
          %1972 = vxpose.xlu0.b32.cont [13/16] %v1894, 128
          %1973 = vxpose.xlu0.b32.cont [14/16] %v1899, 128
          %1974 = vxpose.xlu0.b32.cont [15/16] %v1904, 128
          %1975 = vxpose.xlu0.b32.end [16/16] %v1909, 128
          %v1976 = vpop.trf.xlu0
          %v1977 = vpop.trf.xlu0
          %v1978 = vpop.trf.xlu0
          %v1979 = vpop.trf.xlu0
          %v1980 = vpop.trf.xlu0
          %v1981 = vpop.trf.xlu0
          %v1982 = vpop.trf.xlu0
          %v1983 = vpop.trf.xlu0
          %v1984 = vpop.trf.xlu0
          %v1985 = vpop.trf.xlu0
          %v1986 = vpop.trf.xlu0
          %v1987 = vpop.trf.xlu0
          %v1988 = vpop.trf.xlu0
          %v1989 = vpop.trf.xlu0
          %v1990 = vpop.trf.xlu0
          %v1991 = vpop.trf.xlu0
          %v1992 = vpack.c.bf16 %v1977, %v1976
          %v1993 = vpack.c.bf16 %v1979, %v1978
          %v1994 = vpack.c.bf16 %v1981, %v1980
          %v1995 = vpack.c.bf16 %v1983, %v1982
          %v1996 = vpack.c.bf16 %v1985, %v1984
          %v1997 = vpack.c.bf16 %v1987, %v1986
          %v1998 = vpack.c.bf16 %v1989, %v1988
          %v1999 = vpack.c.bf16 %v1991, %v1990
          %2000 = vst [vmem:[#allocation5] sm:$0xff] %v1992
          %2001 = vst [vmem:[#allocation5 + $0x8] sm:$0xff] %v1993
          %2002 = vst [vmem:[#allocation5 + $0x10] sm:$0xff] %v1994
          %2003 = vst [vmem:[#allocation5 + $0x18] sm:$0xff] %v1995
          %2004 = vst [vmem:[#allocation5 + $0x20] sm:$0xff] %v1996
          %2005 = vst [vmem:[#allocation5 + $0x28] sm:$0xff] %v1997
          %2006 = vst [vmem:[#allocation5 + $0x30] sm:$0xff] %v1998
          %2007 = vst [vmem:[#allocation5 + $0x38] sm:$0xff] %v1999
          %vm2008 = vcmask 7168
          %2009 = vst.msk [vmem:[#allocation6] sm:$0xff] %vm2008, -inf
          %2010 = vst.msk [vmem:[#allocation6 + $0x8] sm:$0xff] %vm2008, -inf
          %2011 = vst.msk [vmem:[#allocation6 + $0x10] sm:$0xff] %vm2008, -inf
          %2012 = vst.msk [vmem:[#allocation6 + $0x18] sm:$0xff] %vm2008, -inf
          %2013 = vst.msk [vmem:[#allocation6 + $0x20] sm:$0xff] %vm2008, -inf
          %2014 = vst.msk [vmem:[#allocation6 + $0x28] sm:$0xff] %vm2008, -inf
          %2015 = vst.msk [vmem:[#allocation6 + $0x30] sm:$0xff] %vm2008, -inf
          %2016 = vst.msk [vmem:[#allocation6 + $0x38] sm:$0xff] %vm2008, -inf
          %2017 = vst.msk [vmem:[#allocation6 + $0x40] sm:$0xff] %vm2008, -inf
          %2018 = vst.msk [vmem:[#allocation6 + $0x48] sm:$0xff] %vm2008, -inf
          %2019 = vst.msk [vmem:[#allocation6 + $0x50] sm:$0xff] %vm2008, -inf
          %2020 = vst.msk [vmem:[#allocation6 + $0x58] sm:$0xff] %vm2008, -inf
          %2021 = vst.msk [vmem:[#allocation6 + $0x60] sm:$0xff] %vm2008, -inf
          %2022 = vst.msk [vmem:[#allocation6 + $0x68] sm:$0xff] %vm2008, -inf
          %2023 = vst.msk [vmem:[#allocation6 + $0x70] sm:$0xff] %vm2008, -inf
          %2024 = vst.msk [vmem:[#allocation6 + $0x78] sm:$0xff] %vm2008, -inf
          %2025 = vst.msk [vmem:[#allocation8] sm:$0xff] %vm2008, -inf
          %2026 = vst.msk [vmem:[#allocation8 + $0x8] sm:$0xff] %vm2008, -inf
          %2027 = vst.msk [vmem:[#allocation8 + $0x10] sm:$0xff] %vm2008, -inf
          %2028 = vst.msk [vmem:[#allocation8 + $0x18] sm:$0xff] %vm2008, -inf
          %2029 = vst.msk [vmem:[#allocation8 + $0x20] sm:$0xff] %vm2008, -inf
          %2030 = vst.msk [vmem:[#allocation8 + $0x28] sm:$0xff] %vm2008, -inf
          %2031 = vst.msk [vmem:[#allocation8 + $0x30] sm:$0xff] %vm2008, -inf
          %2032 = vst.msk [vmem:[#allocation8 + $0x38] sm:$0xff] %vm2008, -inf
          %2033 = vst.msk [vmem:[#allocation8 + $0x40] sm:$0xff] %vm2008, -inf
          %2034 = vst.msk [vmem:[#allocation8 + $0x48] sm:$0xff] %vm2008, -inf
          %2035 = vst.msk [vmem:[#allocation8 + $0x50] sm:$0xff] %vm2008, -inf
          %2036 = vst.msk [vmem:[#allocation8 + $0x58] sm:$0xff] %vm2008, -inf
          %2037 = vst.msk [vmem:[#allocation8 + $0x60] sm:$0xff] %vm2008, -inf
          %2038 = vst.msk [vmem:[#allocation8 + $0x68] sm:$0xff] %vm2008, -inf
          %2039 = vst.msk [vmem:[#allocation8 + $0x70] sm:$0xff] %vm2008, -inf
          %2040 = vst.msk [vmem:[#allocation8 + $0x78] sm:$0xff] %vm2008, -inf
          %2041 = vst.msk [vmem:[#allocation7] sm:$0xff] %vm2008, 0.0
          %2042 = vst.msk [vmem:[#allocation7 + $0x8] sm:$0xff] %vm2008, 0.0
          %2043 = vst.msk [vmem:[#allocation7 + $0x10] sm:$0xff] %vm2008, 0.0
          %2044 = vst.msk [vmem:[#allocation7 + $0x18] sm:$0xff] %vm2008, 0.0
          %2045 = vst.msk [vmem:[#allocation7 + $0x20] sm:$0xff] %vm2008, 0.0
          %2046 = vst.msk [vmem:[#allocation7 + $0x28] sm:$0xff] %vm2008, 0.0
          %2047 = vst.msk [vmem:[#allocation7 + $0x30] sm:$0xff] %vm2008, 0.0
          %2048 = vst.msk [vmem:[#allocation7 + $0x38] sm:$0xff] %vm2008, 0.0
          %2049 = vst.msk [vmem:[#allocation7 + $0x40] sm:$0xff] %vm2008, 0.0
          %2050 = vst.msk [vmem:[#allocation7 + $0x48] sm:$0xff] %vm2008, 0.0
          %2051 = vst.msk [vmem:[#allocation7 + $0x50] sm:$0xff] %vm2008, 0.0
          %2052 = vst.msk [vmem:[#allocation7 + $0x58] sm:$0xff] %vm2008, 0.0
          %2053 = vst.msk [vmem:[#allocation7 + $0x60] sm:$0xff] %vm2008, 0.0
          %2054 = vst.msk [vmem:[#allocation7 + $0x68] sm:$0xff] %vm2008, 0.0
          %2055 = vst.msk [vmem:[#allocation7 + $0x70] sm:$0xff] %vm2008, 0.0
          %2056 = vst.msk [vmem:[#allocation7 + $0x78] sm:$0xff] %vm2008, 0.0
          %2057 = vst.msk [vmem:[#allocation9] sm:$0xff] %vm2008, 0.0
          %2058 = vst.msk [vmem:[#allocation9 + $0x8] sm:$0xff] %vm2008, 0.0
          %2059 = vst.msk [vmem:[#allocation9 + $0x10] sm:$0xff] %vm2008, 0.0
          %2060 = vst.msk [vmem:[#allocation9 + $0x18] sm:$0xff] %vm2008, 0.0
          %2061 = vst.msk [vmem:[#allocation9 + $0x20] sm:$0xff] %vm2008, 0.0
          %2062 = vst.msk [vmem:[#allocation9 + $0x28] sm:$0xff] %vm2008, 0.0
          %2063 = vst.msk [vmem:[#allocation9 + $0x30] sm:$0xff] %vm2008, 0.0
          %2064 = vst.msk [vmem:[#allocation9 + $0x38] sm:$0xff] %vm2008, 0.0
          %2065 = vst.msk [vmem:[#allocation9 + $0x40] sm:$0xff] %vm2008, 0.0
          %2066 = vst.msk [vmem:[#allocation9 + $0x48] sm:$0xff] %vm2008, 0.0
          %2067 = vst.msk [vmem:[#allocation9 + $0x50] sm:$0xff] %vm2008, 0.0
          %2068 = vst.msk [vmem:[#allocation9 + $0x58] sm:$0xff] %vm2008, 0.0
          %2069 = vst.msk [vmem:[#allocation9 + $0x60] sm:$0xff] %vm2008, 0.0
          %2070 = vst.msk [vmem:[#allocation9 + $0x68] sm:$0xff] %vm2008, 0.0
          %2071 = vst.msk [vmem:[#allocation9 + $0x70] sm:$0xff] %vm2008, 0.0
          %2072 = vst.msk [vmem:[#allocation9 + $0x78] sm:$0xff] %vm2008, 0.0
          %2073 = vst [vmem:[#allocation10] sm:$0xff] 0.0
          %2074 = vst [vmem:[#allocation10 + $0x8] sm:$0xff] 0.0
          %2075 = vst [vmem:[#allocation10 + $0x10] sm:$0xff] 0.0
          %2076 = vst [vmem:[#allocation10 + $0x18] sm:$0xff] 0.0
          %2077 = vst [vmem:[#allocation10 + $0x20] sm:$0xff] 0.0
          %2078 = vst [vmem:[#allocation10 + $0x28] sm:$0xff] 0.0
          %2079 = vst [vmem:[#allocation10 + $0x30] sm:$0xff] 0.0
          %2080 = vst [vmem:[#allocation10 + $0x38] sm:$0xff] 0.0
          %2081 = vst [vmem:[#allocation10 + $0x40] sm:$0xff] 0.0
          %2082 = vst [vmem:[#allocation10 + $0x48] sm:$0xff] 0.0
          %2083 = vst [vmem:[#allocation10 + $0x50] sm:$0xff] 0.0
          %2084 = vst [vmem:[#allocation10 + $0x58] sm:$0xff] 0.0
          %2085 = vst [vmem:[#allocation10 + $0x60] sm:$0xff] 0.0
          %2086 = vst [vmem:[#allocation10 + $0x68] sm:$0xff] 0.0
          %2087 = vst [vmem:[#allocation10 + $0x70] sm:$0xff] 0.0
          %2088 = vst [vmem:[#allocation10 + $0x78] sm:$0xff] 0.0
          %2089 = vst [vmem:[#allocation11] sm:$0xff] 0.0
          %2090 = vst [vmem:[#allocation11 + $0x8] sm:$0xff] 0.0
          %2091 = vst [vmem:[#allocation11 + $0x10] sm:$0xff] 0.0
          %2092 = vst [vmem:[#allocation11 + $0x18] sm:$0xff] 0.0
          %2093 = vst [vmem:[#allocation11 + $0x20] sm:$0xff] 0.0
          %2094 = vst [vmem:[#allocation11 + $0x28] sm:$0xff] 0.0
          %2095 = vst [vmem:[#allocation11 + $0x30] sm:$0xff] 0.0
          %2096 = vst [vmem:[#allocation11 + $0x38] sm:$0xff] 0.0
          %2097 = vst [vmem:[#allocation11 + $0x40] sm:$0xff] 0.0
          %2098 = vst [vmem:[#allocation11 + $0x48] sm:$0xff] 0.0
          %2099 = vst [vmem:[#allocation11 + $0x50] sm:$0xff] 0.0
          %2100 = vst [vmem:[#allocation11 + $0x58] sm:$0xff] 0.0
          %2101 = vst [vmem:[#allocation11 + $0x60] sm:$0xff] 0.0
          %2102 = vst [vmem:[#allocation11 + $0x68] sm:$0xff] 0.0
          %2103 = vst [vmem:[#allocation11 + $0x70] sm:$0xff] 0.0
          %2104 = vst [vmem:[#allocation11 + $0x78] sm:$0xff] 0.0
        $region112: #{tpu_custom_call.1} parent=87 // pred_fallthru
          _
        %v2105 = vld [vmem:[%s5] sm:$0xff]
        %v2106 = vld [vmem:[%s5 + $0x8] sm:$0xff]
        %v2107 = vld [vmem:[%s5 + $0x10] sm:$0xff]
        %v2108 = vld [vmem:[%s5 + $0x18] sm:$0xff]
        %v2109 = vld [vmem:[%s5 + $0x20] sm:$0xff]
        %v2110 = vld [vmem:[%s5 + $0x28] sm:$0xff]
        %v2111 = vld [vmem:[%s5 + $0x30] sm:$0xff]
        %v2112 = vld [vmem:[%s5 + $0x38] sm:$0xff]
        %v2113 = vld [vmem:[%s5 + $0x40] sm:$0xff]
        %v2114 = vld [vmem:[%s5 + $0x48] sm:$0xff]
        %v2115 = vld [vmem:[%s5 + $0x50] sm:$0xff]
        %v2116 = vld [vmem:[%s5 + $0x58] sm:$0xff]
        %v2117 = vld [vmem:[%s5 + $0x60] sm:$0xff]
        %v2118 = vld [vmem:[%s5 + $0x68] sm:$0xff]
        %v2119 = vld [vmem:[%s5 + $0x70] sm:$0xff]
        %v2120 = vld [vmem:[%s5 + $0x78] sm:$0xff]
        %v2121 = vld [vmem:[%s652] sm:$0xff]
        %v2122 = vsub.f32 %v765, %v749
        %v2123 = vsub.f32 %v766, %v750
        %v2124 = vsub.f32 %v767, %v751
        %v2125 = vsub.f32 %v768, %v752
        %v2126 = vsub.f32 %v769, %v753
        %v2127 = vsub.f32 %v770, %v754
        %v2128 = vsub.f32 %v771, %v755
        %v2129 = vsub.f32 %v772, %v756
        %v2130 = vsub.f32 %v773, %v757
        %v2131 = vsub.f32 %v774, %v758
        %v2132 = vsub.f32 %v775, %v759
        %v2133 = vsub.f32 %v776, %v760
        %v2134 = vsub.f32 %v777, %v761
        %v2135 = vsub.f32 %v778, %v762
        %v2136 = vsub.f32 %v779, %v763
        %v2137 = vsub.f32 %v780, %v764
        %2139 = vset.pattern.permute.xlu0 0
        %2140 = vperm.xlu0 %2139, %v2122
        %v2141 = vpop.permute.xlu0 %2140
        %2144 = vset.pattern.permute.xlu0 0
        %2145 = vperm.xlu0 %2144, %v2123
        %v2146 = vpop.permute.xlu0 %2145
        %2149 = vset.pattern.permute.xlu0 0
        %2150 = vperm.xlu0 %2149, %v2124
        %v2151 = vpop.permute.xlu0 %2150
        %2154 = vset.pattern.permute.xlu0 0
        %2155 = vperm.xlu0 %2154, %v2125
        %v2156 = vpop.permute.xlu0 %2155
        %2159 = vset.pattern.permute.xlu0 0
        %2160 = vperm.xlu0 %2159, %v2126
        %v2161 = vpop.permute.xlu0 %2160
        %2164 = vset.pattern.permute.xlu0 0
        %2165 = vperm.xlu0 %2164, %v2127
        %v2166 = vpop.permute.xlu0 %2165
        %2169 = vset.pattern.permute.xlu0 0
        %2170 = vperm.xlu0 %2169, %v2128
        %v2171 = vpop.permute.xlu0 %2170
        %2174 = vset.pattern.permute.xlu0 0
        %2175 = vperm.xlu0 %2174, %v2129
        %v2176 = vpop.permute.xlu0 %2175
        %2179 = vset.pattern.permute.xlu0 0
        %2180 = vperm.xlu0 %2179, %v2130
        %v2181 = vpop.permute.xlu0 %2180
        %2184 = vset.pattern.permute.xlu0 0
        %2185 = vperm.xlu0 %2184, %v2131
        %v2186 = vpop.permute.xlu0 %2185
        %2189 = vset.pattern.permute.xlu0 0
        %2190 = vperm.xlu0 %2189, %v2132
        %v2191 = vpop.permute.xlu0 %2190
        %2194 = vset.pattern.permute.xlu0 0
        %2195 = vperm.xlu0 %2194, %v2133
        %v2196 = vpop.permute.xlu0 %2195
        %2199 = vset.pattern.permute.xlu0 0
        %2200 = vperm.xlu0 %2199, %v2134
        %v2201 = vpop.permute.xlu0 %2200
        %2204 = vset.pattern.permute.xlu0 0
        %2205 = vperm.xlu0 %2204, %v2135
        %v2206 = vpop.permute.xlu0 %2205
        %2209 = vset.pattern.permute.xlu0 0
        %2210 = vperm.xlu0 %2209, %v2136
        %v2211 = vpop.permute.xlu0 %2210
        %2214 = vset.pattern.permute.xlu0 0
        %2215 = vperm.xlu0 %2214, %v2137
        %v2216 = vpop.permute.xlu0 %2215
        %vm2218 = vcmask 64512
        %v2220 = vsel %vm2218, %v2105, 0
        %v2223 = vsel %vm2218, %v2106, 0
        %v2226 = vsel %vm2218, %v2107, 0
        %v2229 = vsel %vm2218, %v2108, 0
        %v2232 = vsel %vm2218, %v2109, 0
        %v2235 = vsel %vm2218, %v2110, 0
        %v2238 = vsel %vm2218, %v2111, 0
        %v2241 = vsel %vm2218, %v2112, 0
        %v2244 = vsel %vm2218, %v2113, 0
        %v2247 = vsel %vm2218, %v2114, 0
        %v2250 = vsel %vm2218, %v2115, 0
        %v2253 = vsel %vm2218, %v2116, 0
        %v2256 = vsel %vm2218, %v2117, 0
        %v2259 = vsel %vm2218, %v2118, 0
        %v2262 = vsel %vm2218, %v2119, 0
        %v2265 = vsel %vm2218, %v2120, 0
        %2267 = vmatprep.subr.mxu0 0.0
        %2268 = vmatpush1.msra.mxu0 %v2121
        %2269 = vmatprep.subr.mxu0 0.0
        %2270 = vmatpush1.msra.mxu0 0.0
        %2271 = vmatprep.subr.mxu0 0.0
        %2272 = vmatpush1.msra.mxu0 0.0
        %2273 = vmatprep.subr.mxu0 0.0
        %2274 = vmatpush1.msra.mxu0 0.0
        %2275 = vmatprep.subr.mxu0 0.0
        %2276 = vmatpush1.msra.mxu0 0.0
        %2277 = vmatprep.subr.mxu0 0.0
        %2278 = vmatpush1.msra.mxu0 0.0
        %2279 = vmatprep.subr.mxu0 0.0
        %2280 = vmatpush1.msra.mxu0 0.0
        %2281 = vmatprep.subr.mxu0 0.0
        %2282 = vmatpush1.msra.mxu0 0.0
        %2283 = vmatprep.subr.mxu0 0.0
        %2284 = vmatpush1.msra.mxu0 0.0
        %2285 = vmatprep.subr.mxu0 0.0
        %2286 = vmatpush1.msra.mxu0 0.0
        %2287 = vmatprep.subr.mxu0 0.0
        %2288 = vmatpush1.msra.mxu0 0.0
        %2289 = vmatprep.subr.mxu0 0.0
        %2290 = vmatpush1.msra.mxu0 0.0
        %2291 = vmatprep.subr.mxu0 0.0
        %2292 = vmatpush1.msra.mxu0 0.0
        %2293 = vmatprep.subr.mxu0 0.0
        %2294 = vmatpush1.msra.mxu0 0.0
        %2295 = vmatprep.subr.mxu0 0.0
        %2296 = vmatpush1.msra.mxu0 0.0
        %2297 = vmatprep.subr.mxu0 0.0
        %2298 = vmatpush1.msra.mxu0 0.0
        %2299 = vmatprep.subr.mxu0 0.0
        %2300 = vmatpush1.msra.mxu0 0.0
        %2301 = vmatprep.subr.mxu0 0.0
        %2302 = vmatpush1.msra.mxu0 0.0
        %2303 = vmatprep.subr.mxu0 0.0
        %2304 = vmatpush1.msra.mxu0 0.0
        %2305 = vmatprep.subr.mxu0 0.0
        %2306 = vmatpush1.msra.mxu0 0.0
        %2307 = vmatprep.subr.mxu0 0.0
        %2308 = vmatpush1.msra.mxu0 0.0
        %2309 = vmatprep.subr.mxu0 0.0
        %2310 = vmatpush1.msra.mxu0 0.0
        %2311 = vmatprep.subr.mxu0 0.0
        %2312 = vmatpush1.msra.mxu0 0.0
        %2313 = vmatprep.subr.mxu0 0.0
        %2314 = vmatpush1.msra.mxu0 0.0
        %2315 = vmatprep.subr.mxu0 0.0
        %2316 = vmatpush1.msra.mxu0 0.0
        %2317 = vmatprep.subr.mxu0 0.0
        %2318 = vmatpush1.msra.mxu0 0.0
        %2319 = vmatprep.subr.mxu0 0.0
        %2320 = vmatpush1.msra.mxu0 0.0
        %2321 = vmatprep.subr.mxu0 0.0
        %2322 = vmatpush1.msra.mxu0 0.0
        %2323 = vmatprep.subr.mxu0 0.0
        %2324 = vmatpush1.msra.mxu0 0.0
        %2325 = vmatprep.subr.mxu0 0.0
        %2326 = vmatpush1.msra.mxu0 0.0
        %2327 = vmatprep.subr.mxu0 0.0
        %2328 = vmatpush1.msra.mxu0 0.0
        %2329 = vmatprep.subr.mxu0 0.0
        %2330 = vmatpush1.msra.mxu0 0.0
        %2331 = vmatprep.mubr.f32.mxu0 0.0
        %2332 = vmatmul.mubr.f32.gmra.mrb[0].mxu0 %v2220
        %v2333 = vpop.f32.mrb[0].mxu0
        %v2334 = vadd.f32 %v2141, %v2333
        %v2335 = vpop.f32.mrb[0].mxu0
        %2336 = vmatprep.mubr.f32.mxu0 0.0
        %2337 = vmatmul.mubr.f32.gmra.mrb[0].mxu0 %v2223
        %v2338 = vpop.f32.mrb[0].mxu0
        %v2339 = vadd.f32 %v2146, %v2338
        %v2340 = vpop.f32.mrb[0].mxu0
        %2341 = vmatprep.mubr.f32.mxu0 0.0
        %2342 = vmatmul.mubr.f32.gmra.mrb[0].mxu0 %v2226
        %v2343 = vpop.f32.mrb[0].mxu0
        %v2344 = vadd.f32 %v2151, %v2343
        %v2345 = vpop.f32.mrb[0].mxu0
        %2346 = vmatprep.mubr.f32.mxu0 0.0
        %2347 = vmatmul.mubr.f32.gmra.mrb[0].mxu0 %v2229
        %v2348 = vpop.f32.mrb[0].mxu0
        %v2349 = vadd.f32 %v2156, %v2348
        %v2350 = vpop.f32.mrb[0].mxu0
        %2351 = vmatprep.mubr.f32.mxu0 0.0
        %2352 = vmatmul.mubr.f32.gmra.mrb[0].mxu0 %v2232
        %v2353 = vpop.f32.mrb[0].mxu0
        %v2354 = vadd.f32 %v2161, %v2353
        %v2355 = vpop.f32.mrb[0].mxu0
        %2356 = vmatprep.mubr.f32.mxu0 0.0
        %2357 = vmatmul.mubr.f32.gmra.mrb[0].mxu0 %v2235
        %v2358 = vpop.f32.mrb[0].mxu0
        %v2359 = vadd.f32 %v2166, %v2358
        %v2360 = vpop.f32.mrb[0].mxu0
        %2361 = vmatprep.mubr.f32.mxu0 0.0
        %2362 = vmatmul.mubr.f32.gmra.mrb[0].mxu0 %v2238
        %v2363 = vpop.f32.mrb[0].mxu0
        %v2364 = vadd.f32 %v2171, %v2363
        %v2365 = vpop.f32.mrb[0].mxu0
        %2366 = vmatprep.mubr.f32.mxu0 0.0
        %2367 = vmatmul.mubr.f32.gmra.mrb[0].mxu0 %v2241
        %v2368 = vpop.f32.mrb[0].mxu0
        %v2369 = vadd.f32 %v2176, %v2368
        %v2370 = vpop.f32.mrb[0].mxu0
        %2371 = vmatprep.mubr.f32.mxu0 0.0
        %2372 = vmatmul.mubr.f32.gmra.mrb[0].mxu0 %v2244
        %v2373 = vpop.f32.mrb[0].mxu0
        %v2374 = vadd.f32 %v2181, %v2373
        %v2375 = vpop.f32.mrb[0].mxu0
        %2376 = vmatprep.mubr.f32.mxu0 0.0
        %2377 = vmatmul.mubr.f32.gmra.mrb[0].mxu0 %v2247
        %v2378 = vpop.f32.mrb[0].mxu0
        %v2379 = vadd.f32 %v2186, %v2378
        %v2380 = vpop.f32.mrb[0].mxu0
        %2381 = vmatprep.mubr.f32.mxu0 0.0
        %2382 = vmatmul.mubr.f32.gmra.mrb[0].mxu0 %v2250
        %v2383 = vpop.f32.mrb[0].mxu0
        %v2384 = vadd.f32 %v2191, %v2383
        %v2385 = vpop.f32.mrb[0].mxu0
        %2386 = vmatprep.mubr.f32.mxu0 0.0
        %2387 = vmatmul.mubr.f32.gmra.mrb[0].mxu0 %v2253
        %v2388 = vpop.f32.mrb[0].mxu0
        %v2389 = vadd.f32 %v2196, %v2388
        %v2390 = vpop.f32.mrb[0].mxu0
        %2391 = vmatprep.mubr.f32.mxu0 0.0
        %2392 = vmatmul.mubr.f32.gmra.mrb[0].mxu0 %v2256
        %v2393 = vpop.f32.mrb[0].mxu0
        %v2394 = vadd.f32 %v2201, %v2393
        %v2395 = vpop.f32.mrb[0].mxu0
        %2396 = vmatprep.mubr.f32.mxu0 0.0
        %2397 = vmatmul.mubr.f32.gmra.mrb[0].mxu0 %v2259
        %v2398 = vpop.f32.mrb[0].mxu0
        %v2399 = vadd.f32 %v2206, %v2398
        %v2400 = vpop.f32.mrb[0].mxu0
        %2401 = vmatprep.mubr.f32.mxu0 0.0
        %2402 = vmatmul.mubr.f32.gmra.mrb[0].mxu0 %v2262
        %v2403 = vpop.f32.mrb[0].mxu0
        %v2404 = vadd.f32 %v2211, %v2403
        %v2405 = vpop.f32.mrb[0].mxu0
        %2406 = vmatprep.mubr.f32.mxu0 0.0
        %2407 = vmatmul.mubr.f32.gmra.mrb[0].mxu0 %v2265
        %v2408 = vpop.f32.mrb[0].mxu0
        %v2409 = vadd.f32 %v2216, %v2408
        %v2410 = vpop.f32.mrb[0].mxu0
        %2411 = vdwg.mxu0
        %v2412 = vld [vmem:[%s7] sm:$0xff]
        %v2413 = vld [vmem:[%s7 + $0x8] sm:$0xff]
        %v2414 = vld [vmem:[%s7 + $0x10] sm:$0xff]
        %v2415 = vld [vmem:[%s7 + $0x18] sm:$0xff]
        %v2416 = vld [vmem:[%s7 + $0x20] sm:$0xff]
        %v2417 = vld [vmem:[%s7 + $0x28] sm:$0xff]
        %v2418 = vld [vmem:[%s7 + $0x30] sm:$0xff]
        %v2419 = vld [vmem:[%s7 + $0x38] sm:$0xff]
        %v2420 = vld [vmem:[%s7 + $0x40] sm:$0xff]
        %v2421 = vld [vmem:[%s7 + $0x48] sm:$0xff]
        %v2422 = vld [vmem:[%s7 + $0x50] sm:$0xff]
        %v2423 = vld [vmem:[%s7 + $0x58] sm:$0xff]
        %v2424 = vld [vmem:[%s7 + $0x60] sm:$0xff]
        %v2425 = vld [vmem:[%s7 + $0x68] sm:$0xff]
        %v2426 = vld [vmem:[%s7 + $0x70] sm:$0xff]
        %v2427 = vld [vmem:[%s7 + $0x78] sm:$0xff]
        %v2428 = vld [vmem:[%s742] sm:$0xff]
        %2445 = vrot.lane.b32.xlu0 %v749, 127
        %v2446 = vpop.permute.xlu0 %2445
        %2447 = vrot.lane.b32.xlu0 %v750, 127
        %v2448 = vpop.permute.xlu0 %2447
        %2449 = vrot.lane.b32.xlu0 %v751, 127
        %v2450 = vpop.permute.xlu0 %2449
        %2451 = vrot.lane.b32.xlu0 %v752, 127
        %v2452 = vpop.permute.xlu0 %2451
        %2453 = vrot.lane.b32.xlu0 %v753, 127
        %v2454 = vpop.permute.xlu0 %2453
        %2455 = vrot.lane.b32.xlu0 %v754, 127
        %v2456 = vpop.permute.xlu0 %2455
        %2457 = vrot.lane.b32.xlu0 %v755, 127
        %v2458 = vpop.permute.xlu0 %2457
        %2459 = vrot.lane.b32.xlu0 %v756, 127
        %v2460 = vpop.permute.xlu0 %2459
        %2461 = vrot.lane.b32.xlu0 %v757, 127
        %v2462 = vpop.permute.xlu0 %2461
        %2463 = vrot.lane.b32.xlu0 %v758, 127
        %v2464 = vpop.permute.xlu0 %2463
        %2465 = vrot.lane.b32.xlu0 %v759, 127
        %v2466 = vpop.permute.xlu0 %2465
        %2467 = vrot.lane.b32.xlu0 %v760, 127
        %v2468 = vpop.permute.xlu0 %2467
        %2469 = vrot.lane.b32.xlu0 %v761, 127
        %v2470 = vpop.permute.xlu0 %2469
        %2471 = vrot.lane.b32.xlu0 %v762, 127
        %v2472 = vpop.permute.xlu0 %2471
        %2473 = vrot.lane.b32.xlu0 %v763, 127
        %v2474 = vpop.permute.xlu0 %2473
        %2475 = vrot.lane.b32.xlu0 %v764, 127
        %v2476 = vpop.permute.xlu0 %2475
        %v2493 = vsub.f32 %v781, %v2446
        %v2494 = vsub.f32 %v782, %v2448
        %v2495 = vsub.f32 %v783, %v2450
        %v2496 = vsub.f32 %v784, %v2452
        %v2497 = vsub.f32 %v785, %v2454
        %v2498 = vsub.f32 %v786, %v2456
        %v2499 = vsub.f32 %v787, %v2458
        %v2500 = vsub.f32 %v788, %v2460
        %v2501 = vsub.f32 %v789, %v2462
        %v2502 = vsub.f32 %v790, %v2464
        %v2503 = vsub.f32 %v791, %v2466
        %v2504 = vsub.f32 %v792, %v2468
        %v2505 = vsub.f32 %v793, %v2470
        %v2506 = vsub.f32 %v794, %v2472
        %v2507 = vsub.f32 %v795, %v2474
        %v2508 = vsub.f32 %v796, %v2476
        %2510 = vset.pattern.permute.xlu0 0
        %2511 = vperm.xlu0 %2510, %v2493
        %v2512 = vpop.permute.xlu0 %2511
        %2515 = vset.pattern.permute.xlu0 0
        %2516 = vperm.xlu0 %2515, %v2494
        %v2517 = vpop.permute.xlu0 %2516
        %2520 = vset.pattern.permute.xlu0 0
        %2521 = vperm.xlu0 %2520, %v2495
        %v2522 = vpop.permute.xlu0 %2521
        %2525 = vset.pattern.permute.xlu0 0
        %2526 = vperm.xlu0 %2525, %v2496
        %v2527 = vpop.permute.xlu0 %2526
        %2530 = vset.pattern.permute.xlu0 0
        %2531 = vperm.xlu0 %2530, %v2497
        %v2532 = vpop.permute.xlu0 %2531
        %2535 = vset.pattern.permute.xlu0 0
        %2536 = vperm.xlu0 %2535, %v2498
        %v2537 = vpop.permute.xlu0 %2536
        %2540 = vset.pattern.permute.xlu0 0
        %2541 = vperm.xlu0 %2540, %v2499
        %v2542 = vpop.permute.xlu0 %2541
        %2545 = vset.pattern.permute.xlu0 0
        %2546 = vperm.xlu0 %2545, %v2500
        %v2547 = vpop.permute.xlu0 %2546
        %2550 = vset.pattern.permute.xlu0 0
        %2551 = vperm.xlu0 %2550, %v2501
        %v2552 = vpop.permute.xlu0 %2551
        %2555 = vset.pattern.permute.xlu0 0
        %2556 = vperm.xlu0 %2555, %v2502
        %v2557 = vpop.permute.xlu0 %2556
        %2560 = vset.pattern.permute.xlu0 0
        %2561 = vperm.xlu0 %2560, %v2503
        %v2562 = vpop.permute.xlu0 %2561
        %2565 = vset.pattern.permute.xlu0 0
        %2566 = vperm.xlu0 %2565, %v2504
        %v2567 = vpop.permute.xlu0 %2566
        %2570 = vset.pattern.permute.xlu0 0
        %2571 = vperm.xlu0 %2570, %v2505
        %v2572 = vpop.permute.xlu0 %2571
        %2575 = vset.pattern.permute.xlu0 0
        %2576 = vperm.xlu0 %2575, %v2506
        %v2577 = vpop.permute.xlu0 %2576
        %2580 = vset.pattern.permute.xlu0 0
        %2581 = vperm.xlu0 %2580, %v2507
        %v2582 = vpop.permute.xlu0 %2581
        %2585 = vset.pattern.permute.xlu0 0
        %2586 = vperm.xlu0 %2585, %v2508
        %v2587 = vpop.permute.xlu0 %2586
        %v2590 = vsel %vm2218, %v2412, 0
        %v2593 = vsel %vm2218, %v2413, 0
        %v2596 = vsel %vm2218, %v2414, 0
        %v2599 = vsel %vm2218, %v2415, 0
        %v2602 = vsel %vm2218, %v2416, 0
        %v2605 = vsel %vm2218, %v2417, 0
        %v2608 = vsel %vm2218, %v2418, 0
        %v2611 = vsel %vm2218, %v2419, 0
        %v2614 = vsel %vm2218, %v2420, 0
        %v2617 = vsel %vm2218, %v2421, 0
        %v2620 = vsel %vm2218, %v2422, 0
        %v2623 = vsel %vm2218, %v2423, 0
        %v2626 = vsel %vm2218, %v2424, 0
        %v2629 = vsel %vm2218, %v2425, 0
        %v2632 = vsel %vm2218, %v2426, 0
        %v2635 = vsel %vm2218, %v2427, 0
        %2637 = vmatprep.subr.mxu0 0.0
        %2638 = vmatpush1.msra.mxu0 %v2428
        %2639 = vmatprep.subr.mxu0 0.0
        %2640 = vmatpush1.msra.mxu0 0.0
        %2641 = vmatprep.subr.mxu0 0.0
        %2642 = vmatpush1.msra.mxu0 0.0
        %2643 = vmatprep.subr.mxu0 0.0
        %2644 = vmatpush1.msra.mxu0 0.0
        %2645 = vmatprep.subr.mxu0 0.0
        %2646 = vmatpush1.msra.mxu0 0.0
        %2647 = vmatprep.subr.mxu0 0.0
        %2648 = vmatpush1.msra.mxu0 0.0
        %2649 = vmatprep.subr.mxu0 0.0
        %2650 = vmatpush1.msra.mxu0 0.0
        %2651 = vmatprep.subr.mxu0 0.0
        %2652 = vmatpush1.msra.mxu0 0.0
        %2653 = vmatprep.subr.mxu0 0.0
        %2654 = vmatpush1.msra.mxu0 0.0
        %2655 = vmatprep.subr.mxu0 0.0
        %2656 = vmatpush1.msra.mxu0 0.0
        %2657 = vmatprep.subr.mxu0 0.0
        %2658 = vmatpush1.msra.mxu0 0.0
        %2659 = vmatprep.subr.mxu0 0.0
        %2660 = vmatpush1.msra.mxu0 0.0
        %2661 = vmatprep.subr.mxu0 0.0
        %2662 = vmatpush1.msra.mxu0 0.0
        %2663 = vmatprep.subr.mxu0 0.0
        %2664 = vmatpush1.msra.mxu0 0.0
        %2665 = vmatprep.subr.mxu0 0.0
        %2666 = vmatpush1.msra.mxu0 0.0
        %2667 = vmatprep.subr.mxu0 0.0
        %2668 = vmatpush1.msra.mxu0 0.0
        %2669 = vmatprep.subr.mxu0 0.0
        %2670 = vmatpush1.msra.mxu0 0.0
        %2671 = vmatprep.subr.mxu0 0.0
        %2672 = vmatpush1.msra.mxu0 0.0
        %2673 = vmatprep.subr.mxu0 0.0
        %2674 = vmatpush1.msra.mxu0 0.0
        %2675 = vmatprep.subr.mxu0 0.0
        %2676 = vmatpush1.msra.mxu0 0.0
        %2677 = vmatprep.subr.mxu0 0.0
        %2678 = vmatpush1.msra.mxu0 0.0
        %2679 = vmatprep.subr.mxu0 0.0
        %2680 = vmatpush1.msra.mxu0 0.0
        %2681 = vmatprep.subr.mxu0 0.0
        %2682 = vmatpush1.msra.mxu0 0.0
        %2683 = vmatprep.subr.mxu0 0.0
        %2684 = vmatpush1.msra.mxu0 0.0
        %2685 = vmatprep.subr.mxu0 0.0
        %2686 = vmatpush1.msra.mxu0 0.0
        %2687 = vmatprep.subr.mxu0 0.0
        %2688 = vmatpush1.msra.mxu0 0.0
        %2689 = vmatprep.subr.mxu0 0.0
        %2690 = vmatpush1.msra.mxu0 0.0
        %2691 = vmatprep.subr.mxu0 0.0
        %2692 = vmatpush1.msra.mxu0 0.0
        %2693 = vmatprep.subr.mxu0 0.0
        %2694 = vmatpush1.msra.mxu0 0.0
        %2695 = vmatprep.subr.mxu0 0.0
        %2696 = vmatpush1.msra.mxu0 0.0
        %2697 = vmatprep.subr.mxu0 0.0
        %2698 = vmatpush1.msra.mxu0 0.0
        %2699 = vmatprep.subr.mxu0 0.0
        %2700 = vmatpush1.msra.mxu0 0.0
        %2701 = vmatprep.mubr.f32.mxu0 0.0
        %2702 = vmatmul.mubr.f32.gmra.mrb[0].mxu0 %v2590
        %v2703 = vpop.f32.mrb[0].mxu0
        %v2704 = vadd.f32 %v2512, %v2703
        %v2705 = vpop.f32.mrb[0].mxu0
        %2706 = vmatprep.mubr.f32.mxu0 0.0
        %2707 = vmatmul.mubr.f32.gmra.mrb[0].mxu0 %v2593
        %v2708 = vpop.f32.mrb[0].mxu0
        %v2709 = vadd.f32 %v2517, %v2708
        %v2710 = vpop.f32.mrb[0].mxu0
        %2711 = vmatprep.mubr.f32.mxu0 0.0
        %2712 = vmatmul.mubr.f32.gmra.mrb[0].mxu0 %v2596
        %v2713 = vpop.f32.mrb[0].mxu0
        %v2714 = vadd.f32 %v2522, %v2713
        %v2715 = vpop.f32.mrb[0].mxu0
        %2716 = vmatprep.mubr.f32.mxu0 0.0
        %2717 = vmatmul.mubr.f32.gmra.mrb[0].mxu0 %v2599
        %v2718 = vpop.f32.mrb[0].mxu0
        %v2719 = vadd.f32 %v2527, %v2718
        %v2720 = vpop.f32.mrb[0].mxu0
        %2721 = vmatprep.mubr.f32.mxu0 0.0
        %2722 = vmatmul.mubr.f32.gmra.mrb[0].mxu0 %v2602
        %v2723 = vpop.f32.mrb[0].mxu0
        %v2724 = vadd.f32 %v2532, %v2723
        %v2725 = vpop.f32.mrb[0].mxu0
        %2726 = vmatprep.mubr.f32.mxu0 0.0
        %2727 = vmatmul.mubr.f32.gmra.mrb[0].mxu0 %v2605
        %v2728 = vpop.f32.mrb[0].mxu0
        %v2729 = vadd.f32 %v2537, %v2728
        %v2730 = vpop.f32.mrb[0].mxu0
        %2731 = vmatprep.mubr.f32.mxu0 0.0
        %2732 = vmatmul.mubr.f32.gmra.mrb[0].mxu0 %v2608
        %v2733 = vpop.f32.mrb[0].mxu0
        %v2734 = vadd.f32 %v2542, %v2733
        %v2735 = vpop.f32.mrb[0].mxu0
        %2736 = vmatprep.mubr.f32.mxu0 0.0
        %2737 = vmatmul.mubr.f32.gmra.mrb[0].mxu0 %v2611
        %v2738 = vpop.f32.mrb[0].mxu0
        %v2739 = vadd.f32 %v2547, %v2738
        %v2740 = vpop.f32.mrb[0].mxu0
        %2741 = vmatprep.mubr.f32.mxu0 0.0
        %2742 = vmatmul.mubr.f32.gmra.mrb[0].mxu0 %v2614
        %v2743 = vpop.f32.mrb[0].mxu0
        %v2744 = vadd.f32 %v2552, %v2743
        %v2745 = vpop.f32.mrb[0].mxu0
        %2746 = vmatprep.mubr.f32.mxu0 0.0
        %2747 = vmatmul.mubr.f32.gmra.mrb[0].mxu0 %v2617
        %v2748 = vpop.f32.mrb[0].mxu0
        %v2749 = vadd.f32 %v2557, %v2748
        %v2750 = vpop.f32.mrb[0].mxu0
        %2751 = vmatprep.mubr.f32.mxu0 0.0
        %2752 = vmatmul.mubr.f32.gmra.mrb[0].mxu0 %v2620
        %v2753 = vpop.f32.mrb[0].mxu0
        %v2754 = vadd.f32 %v2562, %v2753
        %v2755 = vpop.f32.mrb[0].mxu0
        %2756 = vmatprep.mubr.f32.mxu0 0.0
        %2757 = vmatmul.mubr.f32.gmra.mrb[0].mxu0 %v2623
        %v2758 = vpop.f32.mrb[0].mxu0
        %v2759 = vadd.f32 %v2567, %v2758
        %v2760 = vpop.f32.mrb[0].mxu0
        %2761 = vmatprep.mubr.f32.mxu0 0.0
        %2762 = vmatmul.mubr.f32.gmra.mrb[0].mxu0 %v2626
        %v2763 = vpop.f32.mrb[0].mxu0
        %v2764 = vadd.f32 %v2572, %v2763
        %v2765 = vpop.f32.mrb[0].mxu0
        %2766 = vmatprep.mubr.f32.mxu0 0.0
        %2767 = vmatmul.mubr.f32.gmra.mrb[0].mxu0 %v2629
        %v2768 = vpop.f32.mrb[0].mxu0
        %v2769 = vadd.f32 %v2577, %v2768
        %v2770 = vpop.f32.mrb[0].mxu0
        %2771 = vmatprep.mubr.f32.mxu0 0.0
        %2772 = vmatmul.mubr.f32.gmra.mrb[0].mxu0 %v2632
        %v2773 = vpop.f32.mrb[0].mxu0
        %v2774 = vadd.f32 %v2582, %v2773
        %v2775 = vpop.f32.mrb[0].mxu0
        %2776 = vmatprep.mubr.f32.mxu0 0.0
        %2777 = vmatmul.mubr.f32.gmra.mrb[0].mxu0 %v2635
        %v2778 = vpop.f32.mrb[0].mxu0
        %v2779 = vadd.f32 %v2587, %v2778
        %v2780 = vpop.f32.mrb[0].mxu0
        %2781 = vdwg.mxu0
        %v2782 = vld [vmem:[%s11] sm:$0xff]
        %v2783 = vld [vmem:[%s11 + $0x8] sm:$0xff]
        %v2784 = vld [vmem:[%s11 + $0x10] sm:$0xff]
        %v2785 = vld [vmem:[%s11 + $0x18] sm:$0xff]
        %v2786 = vld [vmem:[%s11 + $0x20] sm:$0xff]
        %v2787 = vld [vmem:[%s11 + $0x28] sm:$0xff]
        %v2788 = vld [vmem:[%s11 + $0x30] sm:$0xff]
        %v2789 = vld [vmem:[%s11 + $0x38] sm:$0xff]
        %v2790 = vld [vmem:[%s11 + $0x40] sm:$0xff]
        %v2791 = vld [vmem:[%s11 + $0x48] sm:$0xff]
        %v2792 = vld [vmem:[%s11 + $0x50] sm:$0xff]
        %v2793 = vld [vmem:[%s11 + $0x58] sm:$0xff]
        %v2794 = vld [vmem:[%s11 + $0x60] sm:$0xff]
        %v2795 = vld [vmem:[%s11 + $0x68] sm:$0xff]
        %v2796 = vld [vmem:[%s11 + $0x70] sm:$0xff]
        %v2797 = vld [vmem:[%s11 + $0x78] sm:$0xff]
        %v2798 = vld [vmem:[%s11 + $0x80] sm:$0xff]
        %v2799 = vld [vmem:[%s11 + $0x88] sm:$0xff]
        %v2800 = vld [vmem:[%s11 + $0x90] sm:$0xff]
        %v2801 = vld [vmem:[%s11 + $0x98] sm:$0xff]
        %v2802 = vld [vmem:[%s11 + $0xa0] sm:$0xff]
        %v2803 = vld [vmem:[%s11 + $0xa8] sm:$0xff]
        %v2804 = vld [vmem:[%s11 + $0xb0] sm:$0xff]
        %v2805 = vld [vmem:[%s11 + $0xb8] sm:$0xff]
        %v2806 = vld [vmem:[%s11 + $0xc0] sm:$0xff]
        %v2807 = vld [vmem:[%s11 + $0xc8] sm:$0xff]
        %v2808 = vld [vmem:[%s11 + $0xd0] sm:$0xff]
        %v2809 = vld [vmem:[%s11 + $0xd8] sm:$0xff]
        %v2810 = vld [vmem:[%s11 + $0xe0] sm:$0xff]
        %v2811 = vld [vmem:[%s11 + $0xe8] sm:$0xff]
        %v2812 = vld [vmem:[%s11 + $0xf0] sm:$0xff]
        %v2813 = vld [vmem:[%s11 + $0xf8] sm:$0xff]
        %2814 = vmatprep.subr.mxu0 0.0
        %2815 = vmatpush1.msra.mxu0 %v2704
        %2816 = vmatprep.subr.mxu0 0.0
        %2817 = vmatpush1.msra.mxu0 %v2709
        %2818 = vmatprep.subr.mxu0 0.0
        %2819 = vmatpush1.msra.mxu0 %v2714
        %2820 = vmatprep.subr.mxu0 0.0
        %2821 = vmatpush1.msra.mxu0 %v2719
        %2822 = vmatprep.subr.mxu0 0.0
        %2823 = vmatpush1.msra.mxu0 %v2724
        %2824 = vmatprep.subr.mxu0 0.0
        %2825 = vmatpush1.msra.mxu0 %v2729
        %2826 = vmatprep.subr.mxu0 0.0
        %2827 = vmatpush1.msra.mxu0 %v2734
        %2828 = vmatprep.subr.mxu0 0.0
        %2829 = vmatpush1.msra.mxu0 %v2739
        %2830 = vmatprep.subr.mxu0 0.0
        %2831 = vmatpush1.msra.mxu0 %v2744
        %2832 = vmatprep.subr.mxu0 0.0
        %2833 = vmatpush1.msra.mxu0 %v2749
        %2834 = vmatprep.subr.mxu0 0.0
        %2835 = vmatpush1.msra.mxu0 %v2754
        %2836 = vmatprep.subr.mxu0 0.0
        %2837 = vmatpush1.msra.mxu0 %v2759
        %2838 = vmatprep.subr.mxu0 0.0
        %2839 = vmatpush1.msra.mxu0 %v2764
        %2840 = vmatprep.subr.mxu0 0.0
        %2841 = vmatpush1.msra.mxu0 %v2769
        %2842 = vmatprep.subr.mxu0 0.0
        %2843 = vmatpush1.msra.mxu0 %v2774
        %2844 = vmatprep.subr.mxu0 0.0
        %2845 = vmatpush1.msra.mxu0 %v2779
        %2846 = vmatprep.subr.mxu0 0.0
        %2847 = vmatpush1.msra.mxu0 0.0
        %2848 = vmatprep.subr.mxu0 0.0
        %2849 = vmatpush1.msra.mxu0 0.0
        %2850 = vmatprep.subr.mxu0 0.0
        %2851 = vmatpush1.msra.mxu0 0.0
        %2852 = vmatprep.subr.mxu0 0.0
        %2853 = vmatpush1.msra.mxu0 0.0
        %2854 = vmatprep.subr.mxu0 0.0
        %2855 = vmatpush1.msra.mxu0 0.0
        %2856 = vmatprep.subr.mxu0 0.0
        %2857 = vmatpush1.msra.mxu0 0.0
        %2858 = vmatprep.subr.mxu0 0.0
        %2859 = vmatpush1.msra.mxu0 0.0
        %2860 = vmatprep.subr.mxu0 0.0
        %2861 = vmatpush1.msra.mxu0 0.0
        %2862 = vmatprep.subr.mxu0 0.0
        %2863 = vmatpush1.msra.mxu0 0.0
        %2864 = vmatprep.subr.mxu0 0.0
        %2865 = vmatpush1.msra.mxu0 0.0
        %2866 = vmatprep.subr.mxu0 0.0
        %2867 = vmatpush1.msra.mxu0 0.0
        %2868 = vmatprep.subr.mxu0 0.0
        %2869 = vmatpush1.msra.mxu0 0.0
        %2870 = vmatprep.subr.mxu0 0.0
        %2871 = vmatpush1.msra.mxu0 0.0
        %2872 = vmatprep.subr.mxu0 0.0
        %2873 = vmatpush1.msra.mxu0 0.0
        %2874 = vmatprep.subr.mxu0 0.0
        %2875 = vmatpush1.msra.mxu0 0.0
        %2876 = vmatprep.subr.mxu0 0.0
        %2877 = vmatpush1.msra.mxu0 0.0
        %2878 = vmatprep.mubr.f32.mxu0 0.0
        %2879 = vmatmul.mubr.f32.gmra.mrb[0].mxu0 %v2782
        %v2880 = vpop.f32.mrb[0].mxu0
        %v2881 = vadd.f32 0.0, %v2880
        %v2882 = vpop.f32.mrb[0].mxu0
        %2883 = vmatprep.mubr.f32.mxu0 0.0
        %2884 = vmatmul.mubr.f32.gmra.mrb[0].mxu0 %v2783
        %v2885 = vpop.f32.mrb[0].mxu0
        %v2886 = vadd.f32 0.0, %v2885
        %v2887 = vpop.f32.mrb[0].mxu0
        %2888 = vmatprep.mubr.f32.mxu0 0.0
        %2889 = vmatmul.mubr.f32.gmra.mrb[0].mxu0 %v2784
        %v2890 = vpop.f32.mrb[0].mxu0
        %v2891 = vadd.f32 0.0, %v2890
        %v2892 = vpop.f32.mrb[0].mxu0
        %2893 = vmatprep.mubr.f32.mxu0 0.0
        %2894 = vmatmul.mubr.f32.gmra.mrb[0].mxu0 %v2785
        %v2895 = vpop.f32.mrb[0].mxu0
        %v2896 = vadd.f32 0.0, %v2895
        %v2897 = vpop.f32.mrb[0].mxu0
        %2898 = vmatprep.mubr.f32.mxu0 0.0
        %2899 = vmatmul.mubr.f32.gmra.mrb[0].mxu0 %v2786
        %v2900 = vpop.f32.mrb[0].mxu0
        %v2901 = vadd.f32 0.0, %v2900
        %v2902 = vpop.f32.mrb[0].mxu0
        %2903 = vmatprep.mubr.f32.mxu0 0.0
        %2904 = vmatmul.mubr.f32.gmra.mrb[0].mxu0 %v2787
        %v2905 = vpop.f32.mrb[0].mxu0
        %v2906 = vadd.f32 0.0, %v2905
        %v2907 = vpop.f32.mrb[0].mxu0
        %2908 = vmatprep.mubr.f32.mxu0 0.0
        %2909 = vmatmul.mubr.f32.gmra.mrb[0].mxu0 %v2788
        %v2910 = vpop.f32.mrb[0].mxu0
        %v2911 = vadd.f32 0.0, %v2910
        %v2912 = vpop.f32.mrb[0].mxu0
        %2913 = vmatprep.mubr.f32.mxu0 0.0
        %2914 = vmatmul.mubr.f32.gmra.mrb[0].mxu0 %v2789
        %v2915 = vpop.f32.mrb[0].mxu0
        %v2916 = vadd.f32 0.0, %v2915
        %v2917 = vpop.f32.mrb[0].mxu0
        %2918 = vmatprep.mubr.f32.mxu0 0.0
        %2919 = vmatmul.mubr.f32.gmra.mrb[0].mxu0 %v2790
        %v2920 = vpop.f32.mrb[0].mxu0
        %v2921 = vadd.f32 0.0, %v2920
        %v2922 = vpop.f32.mrb[0].mxu0
        %2923 = vmatprep.mubr.f32.mxu0 0.0
        %2924 = vmatmul.mubr.f32.gmra.mrb[0].mxu0 %v2791
        %v2925 = vpop.f32.mrb[0].mxu0
        %v2926 = vadd.f32 0.0, %v2925
        %v2927 = vpop.f32.mrb[0].mxu0
        %2928 = vmatprep.mubr.f32.mxu0 0.0
        %2929 = vmatmul.mubr.f32.gmra.mrb[0].mxu0 %v2792
        %v2930 = vpop.f32.mrb[0].mxu0
        %v2931 = vadd.f32 0.0, %v2930
        %v2932 = vpop.f32.mrb[0].mxu0
        %2933 = vmatprep.mubr.f32.mxu0 0.0
        %2934 = vmatmul.mubr.f32.gmra.mrb[0].mxu0 %v2793
        %v2935 = vpop.f32.mrb[0].mxu0
        %v2936 = vadd.f32 0.0, %v2935
        %v2937 = vpop.f32.mrb[0].mxu0
        %2938 = vmatprep.mubr.f32.mxu0 0.0
        %2939 = vmatmul.mubr.f32.gmra.mrb[0].mxu0 %v2794
        %v2940 = vpop.f32.mrb[0].mxu0
        %v2941 = vadd.f32 0.0, %v2940
        %v2942 = vpop.f32.mrb[0].mxu0
        %2943 = vmatprep.mubr.f32.mxu0 0.0
        %2944 = vmatmul.mubr.f32.gmra.mrb[0].mxu0 %v2795
        %v2945 = vpop.f32.mrb[0].mxu0
        %v2946 = vadd.f32 0.0, %v2945
        %v2947 = vpop.f32.mrb[0].mxu0
        %2948 = vmatprep.mubr.f32.mxu0 0.0
        %2949 = vmatmul.mubr.f32.gmra.mrb[0].mxu0 %v2796
        %v2950 = vpop.f32.mrb[0].mxu0
        %v2951 = vadd.f32 0.0, %v2950
        %v2952 = vpop.f32.mrb[0].mxu0
        %2953 = vmatprep.mubr.f32.mxu0 0.0
        %2954 = vmatmul.mubr.f32.gmra.mrb[0].mxu0 %v2797
        %v2955 = vpop.f32.mrb[0].mxu0
        %v2956 = vadd.f32 0.0, %v2955
        %v2957 = vpop.f32.mrb[0].mxu0
        %2958 = vmatprep.mubr.f32.mxu0 0.0
        %2959 = vmatmul.mubr.f32.gmra.mrb[0].mxu0 %v2798
        %v2960 = vpop.f32.mrb[0].mxu0
        %v2961 = vadd.f32 0.0, %v2960
        %v2962 = vpop.f32.mrb[0].mxu0
        %2963 = vmatprep.mubr.f32.mxu0 0.0
        %2964 = vmatmul.mubr.f32.gmra.mrb[0].mxu0 %v2799
        %v2965 = vpop.f32.mrb[0].mxu0
        %v2966 = vadd.f32 0.0, %v2965
        %v2967 = vpop.f32.mrb[0].mxu0
        %2968 = vmatprep.mubr.f32.mxu0 0.0
        %2969 = vmatmul.mubr.f32.gmra.mrb[0].mxu0 %v2800
        %v2970 = vpop.f32.mrb[0].mxu0
        %v2971 = vadd.f32 0.0, %v2970
        %v2972 = vpop.f32.mrb[0].mxu0
        %2973 = vmatprep.mubr.f32.mxu0 0.0
        %2974 = vmatmul.mubr.f32.gmra.mrb[0].mxu0 %v2801
        %v2975 = vpop.f32.mrb[0].mxu0
        %v2976 = vadd.f32 0.0, %v2975
        %v2977 = vpop.f32.mrb[0].mxu0
        %2978 = vmatprep.mubr.f32.mxu0 0.0
        %2979 = vmatmul.mubr.f32.gmra.mrb[0].mxu0 %v2802
        %v2980 = vpop.f32.mrb[0].mxu0
        %v2981 = vadd.f32 0.0, %v2980
        %v2982 = vpop.f32.mrb[0].mxu0
        %2983 = vmatprep.mubr.f32.mxu0 0.0
        %2984 = vmatmul.mubr.f32.gmra.mrb[0].mxu0 %v2803
        %v2985 = vpop.f32.mrb[0].mxu0
        %v2986 = vadd.f32 0.0, %v2985
        %v2987 = vpop.f32.mrb[0].mxu0
        %2988 = vmatprep.mubr.f32.mxu0 0.0
        %2989 = vmatmul.mubr.f32.gmra.mrb[0].mxu0 %v2804
        %v2990 = vpop.f32.mrb[0].mxu0
        %v2991 = vadd.f32 0.0, %v2990
        %v2992 = vpop.f32.mrb[0].mxu0
        %2993 = vmatprep.mubr.f32.mxu0 0.0
        %2994 = vmatmul.mubr.f32.gmra.mrb[0].mxu0 %v2805
        %v2995 = vpop.f32.mrb[0].mxu0
        %v2996 = vadd.f32 0.0, %v2995
        %v2997 = vpop.f32.mrb[0].mxu0
        %2998 = vmatprep.mubr.f32.mxu0 0.0
        %2999 = vmatmul.mubr.f32.gmra.mrb[0].mxu0 %v2806
        %v3000 = vpop.f32.mrb[0].mxu0
        %v3001 = vadd.f32 0.0, %v3000
        %v3002 = vpop.f32.mrb[0].mxu0
        %3003 = vmatprep.mubr.f32.mxu0 0.0
        %3004 = vmatmul.mubr.f32.gmra.mrb[0].mxu0 %v2807
        %v3005 = vpop.f32.mrb[0].mxu0
        %v3006 = vadd.f32 0.0, %v3005
        %v3007 = vpop.f32.mrb[0].mxu0
        %3008 = vmatprep.mubr.f32.mxu0 0.0
        %3009 = vmatmul.mubr.f32.gmra.mrb[0].mxu0 %v2808
        %v3010 = vpop.f32.mrb[0].mxu0
        %v3011 = vadd.f32 0.0, %v3010
        %v3012 = vpop.f32.mrb[0].mxu0
        %3013 = vmatprep.mubr.f32.mxu0 0.0
        %3014 = vmatmul.mubr.f32.gmra.mrb[0].mxu0 %v2809
        %v3015 = vpop.f32.mrb[0].mxu0
        %v3016 = vadd.f32 0.0, %v3015
        %v3017 = vpop.f32.mrb[0].mxu0
        %3018 = vmatprep.mubr.f32.mxu0 0.0
        %3019 = vmatmul.mubr.f32.gmra.mrb[0].mxu0 %v2810
        %v3020 = vpop.f32.mrb[0].mxu0
        %v3021 = vadd.f32 0.0, %v3020
        %v3022 = vpop.f32.mrb[0].mxu0
        %3023 = vmatprep.mubr.f32.mxu0 0.0
        %3024 = vmatmul.mubr.f32.gmra.mrb[0].mxu0 %v2811
        %v3025 = vpop.f32.mrb[0].mxu0
        %v3026 = vadd.f32 0.0, %v3025
        %v3027 = vpop.f32.mrb[0].mxu0
        %3028 = vmatprep.mubr.f32.mxu0 0.0
        %3029 = vmatmul.mubr.f32.gmra.mrb[0].mxu0 %v2812
        %v3030 = vpop.f32.mrb[0].mxu0
        %v3031 = vadd.f32 0.0, %v3030
        %v3032 = vpop.f32.mrb[0].mxu0
        %3033 = vmatprep.mubr.f32.mxu0 0.0
        %3034 = vmatmul.mubr.f32.gmra.mrb[0].mxu0 %v2813
        %v3035 = vpop.f32.mrb[0].mxu0
        %v3036 = vadd.f32 0.0, %v3035
        %v3037 = vpop.f32.mrb[0].mxu0
        %3038 = vdwg.mxu0
        %v3039 = vld [vmem:[%s12] sm:$0xff]
        %v3040 = vld [vmem:[%s12 + $0x8] sm:$0xff]
        %v3041 = vld [vmem:[%s12 + $0x10] sm:$0xff]
        %v3042 = vld [vmem:[%s12 + $0x18] sm:$0xff]
        %v3043 = vld [vmem:[%s12 + $0x20] sm:$0xff]
        %v3044 = vld [vmem:[%s12 + $0x28] sm:$0xff]
        %v3045 = vld [vmem:[%s12 + $0x30] sm:$0xff]
        %v3046 = vld [vmem:[%s12 + $0x38] sm:$0xff]
        %v3047 = vld [vmem:[%s12 + $0x40] sm:$0xff]
        %v3048 = vld [vmem:[%s12 + $0x48] sm:$0xff]
        %v3049 = vld [vmem:[%s12 + $0x50] sm:$0xff]
        %v3050 = vld [vmem:[%s12 + $0x58] sm:$0xff]
        %v3051 = vld [vmem:[%s12 + $0x60] sm:$0xff]
        %v3052 = vld [vmem:[%s12 + $0x68] sm:$0xff]
        %v3053 = vld [vmem:[%s12 + $0x70] sm:$0xff]
        %v3054 = vld [vmem:[%s12 + $0x78] sm:$0xff]
        %v3055 = vld [vmem:[%s12 + $0x80] sm:$0xff]
        %v3056 = vld [vmem:[%s12 + $0x88] sm:$0xff]
        %v3057 = vld [vmem:[%s12 + $0x90] sm:$0xff]
        %v3058 = vld [vmem:[%s12 + $0x98] sm:$0xff]
        %v3059 = vld [vmem:[%s12 + $0xa0] sm:$0xff]
        %v3060 = vld [vmem:[%s12 + $0xa8] sm:$0xff]
        %v3061 = vld [vmem:[%s12 + $0xb0] sm:$0xff]
        %v3062 = vld [vmem:[%s12 + $0xb8] sm:$0xff]
        %v3063 = vld [vmem:[%s12 + $0xc0] sm:$0xff]
        %v3064 = vld [vmem:[%s12 + $0xc8] sm:$0xff]
        %v3065 = vld [vmem:[%s12 + $0xd0] sm:$0xff]
        %v3066 = vld [vmem:[%s12 + $0xd8] sm:$0xff]
        %v3067 = vld [vmem:[%s12 + $0xe0] sm:$0xff]
        %v3068 = vld [vmem:[%s12 + $0xe8] sm:$0xff]
        %v3069 = vld [vmem:[%s12 + $0xf0] sm:$0xff]
        %v3070 = vld [vmem:[%s12 + $0xf8] sm:$0xff]
        %3071 = vmatprep.subr.mxu0 0.0
        %3072 = vmatpush1.msra.mxu0 %v2334
        %3073 = vmatprep.subr.mxu0 0.0
        %3074 = vmatpush1.msra.mxu0 %v2339
        %3075 = vmatprep.subr.mxu0 0.0
        %3076 = vmatpush1.msra.mxu0 %v2344
        %3077 = vmatprep.subr.mxu0 0.0
        %3078 = vmatpush1.msra.mxu0 %v2349
        %3079 = vmatprep.subr.mxu0 0.0
        %3080 = vmatpush1.msra.mxu0 %v2354
        %3081 = vmatprep.subr.mxu0 0.0
        %3082 = vmatpush1.msra.mxu0 %v2359
        %3083 = vmatprep.subr.mxu0 0.0
        %3084 = vmatpush1.msra.mxu0 %v2364
        %3085 = vmatprep.subr.mxu0 0.0
        %3086 = vmatpush1.msra.mxu0 %v2369
        %3087 = vmatprep.subr.mxu0 0.0
        %3088 = vmatpush1.msra.mxu0 %v2374
        %3089 = vmatprep.subr.mxu0 0.0
        %3090 = vmatpush1.msra.mxu0 %v2379
        %3091 = vmatprep.subr.mxu0 0.0
        %3092 = vmatpush1.msra.mxu0 %v2384
        %3093 = vmatprep.subr.mxu0 0.0
        %3094 = vmatpush1.msra.mxu0 %v2389
        %3095 = vmatprep.subr.mxu0 0.0
        %3096 = vmatpush1.msra.mxu0 %v2394
        %3097 = vmatprep.subr.mxu0 0.0
        %3098 = vmatpush1.msra.mxu0 %v2399
        %3099 = vmatprep.subr.mxu0 0.0
        %3100 = vmatpush1.msra.mxu0 %v2404
        %3101 = vmatprep.subr.mxu0 0.0
        %3102 = vmatpush1.msra.mxu0 %v2409
        %3103 = vmatprep.subr.mxu0 0.0
        %3104 = vmatpush1.msra.mxu0 0.0
        %3105 = vmatprep.subr.mxu0 0.0
        %3106 = vmatpush1.msra.mxu0 0.0
        %3107 = vmatprep.subr.mxu0 0.0
        %3108 = vmatpush1.msra.mxu0 0.0
        %3109 = vmatprep.subr.mxu0 0.0
        %3110 = vmatpush1.msra.mxu0 0.0
        %3111 = vmatprep.subr.mxu0 0.0
        %3112 = vmatpush1.msra.mxu0 0.0
        %3113 = vmatprep.subr.mxu0 0.0
        %3114 = vmatpush1.msra.mxu0 0.0
        %3115 = vmatprep.subr.mxu0 0.0
        %3116 = vmatpush1.msra.mxu0 0.0
        %3117 = vmatprep.subr.mxu0 0.0
        %3118 = vmatpush1.msra.mxu0 0.0
        %3119 = vmatprep.subr.mxu0 0.0
        %3120 = vmatpush1.msra.mxu0 0.0
        %3121 = vmatprep.subr.mxu0 0.0
        %3122 = vmatpush1.msra.mxu0 0.0
        %3123 = vmatprep.subr.mxu0 0.0
        %3124 = vmatpush1.msra.mxu0 0.0
        %3125 = vmatprep.subr.mxu0 0.0
        %3126 = vmatpush1.msra.mxu0 0.0
        %3127 = vmatprep.subr.mxu0 0.0
        %3128 = vmatpush1.msra.mxu0 0.0
        %3129 = vmatprep.subr.mxu0 0.0
        %3130 = vmatpush1.msra.mxu0 0.0
        %3131 = vmatprep.subr.mxu0 0.0
        %3132 = vmatpush1.msra.mxu0 0.0
        %3133 = vmatprep.subr.mxu0 0.0
        %3134 = vmatpush1.msra.mxu0 0.0
        %3135 = vmatprep.mubr.f32.mxu0 0.0
        %3136 = vmatmul.mubr.f32.gmra.mrb[0].mxu0 %v3039
        %v3137 = vpop.f32.mrb[0].mxu0
        %v3138 = vadd.f32 0.0, %v3137
        %v3139 = vpop.f32.mrb[0].mxu0
        %3140 = vmatprep.mubr.f32.mxu0 0.0
        %3141 = vmatmul.mubr.f32.gmra.mrb[0].mxu0 %v3040
        %v3142 = vpop.f32.mrb[0].mxu0
        %v3143 = vadd.f32 0.0, %v3142
        %v3144 = vpop.f32.mrb[0].mxu0
        %3145 = vmatprep.mubr.f32.mxu0 0.0
        %3146 = vmatmul.mubr.f32.gmra.mrb[0].mxu0 %v3041
        %v3147 = vpop.f32.mrb[0].mxu0
        %v3148 = vadd.f32 0.0, %v3147
        %v3149 = vpop.f32.mrb[0].mxu0
        %3150 = vmatprep.mubr.f32.mxu0 0.0
        %3151 = vmatmul.mubr.f32.gmra.mrb[0].mxu0 %v3042
        %v3152 = vpop.f32.mrb[0].mxu0
        %v3153 = vadd.f32 0.0, %v3152
        %v3154 = vpop.f32.mrb[0].mxu0
        %3155 = vmatprep.mubr.f32.mxu0 0.0
        %3156 = vmatmul.mubr.f32.gmra.mrb[0].mxu0 %v3043
        %v3157 = vpop.f32.mrb[0].mxu0
        %v3158 = vadd.f32 0.0, %v3157
        %v3159 = vpop.f32.mrb[0].mxu0
        %3160 = vmatprep.mubr.f32.mxu0 0.0
        %3161 = vmatmul.mubr.f32.gmra.mrb[0].mxu0 %v3044
        %v3162 = vpop.f32.mrb[0].mxu0
        %v3163 = vadd.f32 0.0, %v3162
        %v3164 = vpop.f32.mrb[0].mxu0
        %3165 = vmatprep.mubr.f32.mxu0 0.0
        %3166 = vmatmul.mubr.f32.gmra.mrb[0].mxu0 %v3045
        %v3167 = vpop.f32.mrb[0].mxu0
        %v3168 = vadd.f32 0.0, %v3167
        %v3169 = vpop.f32.mrb[0].mxu0
        %3170 = vmatprep.mubr.f32.mxu0 0.0
        %3171 = vmatmul.mubr.f32.gmra.mrb[0].mxu0 %v3046
        %v3172 = vpop.f32.mrb[0].mxu0
        %v3173 = vadd.f32 0.0, %v3172
        %v3174 = vpop.f32.mrb[0].mxu0
        %3175 = vmatprep.mubr.f32.mxu0 0.0
        %3176 = vmatmul.mubr.f32.gmra.mrb[0].mxu0 %v3047
        %v3177 = vpop.f32.mrb[0].mxu0
        %v3178 = vadd.f32 0.0, %v3177
        %v3179 = vpop.f32.mrb[0].mxu0
        %3180 = vmatprep.mubr.f32.mxu0 0.0
        %3181 = vmatmul.mubr.f32.gmra.mrb[0].mxu0 %v3048
        %v3182 = vpop.f32.mrb[0].mxu0
        %v3183 = vadd.f32 0.0, %v3182
        %v3184 = vpop.f32.mrb[0].mxu0
        %3185 = vmatprep.mubr.f32.mxu0 0.0
        %3186 = vmatmul.mubr.f32.gmra.mrb[0].mxu0 %v3049
        %v3187 = vpop.f32.mrb[0].mxu0
        %v3188 = vadd.f32 0.0, %v3187
        %v3189 = vpop.f32.mrb[0].mxu0
        %3190 = vmatprep.mubr.f32.mxu0 0.0
        %3191 = vmatmul.mubr.f32.gmra.mrb[0].mxu0 %v3050
        %v3192 = vpop.f32.mrb[0].mxu0
        %v3193 = vadd.f32 0.0, %v3192
        %v3194 = vpop.f32.mrb[0].mxu0
        %3195 = vmatprep.mubr.f32.mxu0 0.0
        %3196 = vmatmul.mubr.f32.gmra.mrb[0].mxu0 %v3051
        %v3197 = vpop.f32.mrb[0].mxu0
        %v3198 = vadd.f32 0.0, %v3197
        %v3199 = vpop.f32.mrb[0].mxu0
        %3200 = vmatprep.mubr.f32.mxu0 0.0
        %3201 = vmatmul.mubr.f32.gmra.mrb[0].mxu0 %v3052
        %v3202 = vpop.f32.mrb[0].mxu0
        %v3203 = vadd.f32 0.0, %v3202
        %v3204 = vpop.f32.mrb[0].mxu0
        %3205 = vmatprep.mubr.f32.mxu0 0.0
        %3206 = vmatmul.mubr.f32.gmra.mrb[0].mxu0 %v3053
        %v3207 = vpop.f32.mrb[0].mxu0
        %v3208 = vadd.f32 0.0, %v3207
        %v3209 = vpop.f32.mrb[0].mxu0
        %3210 = vmatprep.mubr.f32.mxu0 0.0
        %3211 = vmatmul.mubr.f32.gmra.mrb[0].mxu0 %v3054
        %v3212 = vpop.f32.mrb[0].mxu0
        %v3213 = vadd.f32 0.0, %v3212
        %v3214 = vpop.f32.mrb[0].mxu0
        %3215 = vmatprep.mubr.f32.mxu0 0.0
        %3216 = vmatmul.mubr.f32.gmra.mrb[0].mxu0 %v3055
        %v3217 = vpop.f32.mrb[0].mxu0
        %v3218 = vadd.f32 0.0, %v3217
        %v3219 = vpop.f32.mrb[0].mxu0
        %3220 = vmatprep.mubr.f32.mxu0 0.0
        %3221 = vmatmul.mubr.f32.gmra.mrb[0].mxu0 %v3056
        %v3222 = vpop.f32.mrb[0].mxu0
        %v3223 = vadd.f32 0.0, %v3222
        %v3224 = vpop.f32.mrb[0].mxu0
        %3225 = vmatprep.mubr.f32.mxu0 0.0
        %3226 = vmatmul.mubr.f32.gmra.mrb[0].mxu0 %v3057
        %v3227 = vpop.f32.mrb[0].mxu0
        %v3228 = vadd.f32 0.0, %v3227
        %v3229 = vpop.f32.mrb[0].mxu0
        %3230 = vmatprep.mubr.f32.mxu0 0.0
        %3231 = vmatmul.mubr.f32.gmra.mrb[0].mxu0 %v3058
        %v3232 = vpop.f32.mrb[0].mxu0
        %v3233 = vadd.f32 0.0, %v3232
        %v3234 = vpop.f32.mrb[0].mxu0
        %3235 = vmatprep.mubr.f32.mxu0 0.0
        %3236 = vmatmul.mubr.f32.gmra.mrb[0].mxu0 %v3059
        %v3237 = vpop.f32.mrb[0].mxu0
        %v3238 = vadd.f32 0.0, %v3237
        %v3239 = vpop.f32.mrb[0].mxu0
        %3240 = vmatprep.mubr.f32.mxu0 0.0
        %3241 = vmatmul.mubr.f32.gmra.mrb[0].mxu0 %v3060
        %v3242 = vpop.f32.mrb[0].mxu0
        %v3243 = vadd.f32 0.0, %v3242
        %v3244 = vpop.f32.mrb[0].mxu0
        %3245 = vmatprep.mubr.f32.mxu0 0.0
        %3246 = vmatmul.mubr.f32.gmra.mrb[0].mxu0 %v3061
        %v3247 = vpop.f32.mrb[0].mxu0
        %v3248 = vadd.f32 0.0, %v3247
        %v3249 = vpop.f32.mrb[0].mxu0
        %3250 = vmatprep.mubr.f32.mxu0 0.0
        %3251 = vmatmul.mubr.f32.gmra.mrb[0].mxu0 %v3062
        %v3252 = vpop.f32.mrb[0].mxu0
        %v3253 = vadd.f32 0.0, %v3252
        %v3254 = vpop.f32.mrb[0].mxu0
        %3255 = vmatprep.mubr.f32.mxu0 0.0
        %3256 = vmatmul.mubr.f32.gmra.mrb[0].mxu0 %v3063
        %v3257 = vpop.f32.mrb[0].mxu0
        %v3258 = vadd.f32 0.0, %v3257
        %v3259 = vpop.f32.mrb[0].mxu0
        %3260 = vmatprep.mubr.f32.mxu0 0.0
        %3261 = vmatmul.mubr.f32.gmra.mrb[0].mxu0 %v3064
        %v3262 = vpop.f32.mrb[0].mxu0
        %v3263 = vadd.f32 0.0, %v3262
        %v3264 = vpop.f32.mrb[0].mxu0
        %3265 = vmatprep.mubr.f32.mxu0 0.0
        %3266 = vmatmul.mubr.f32.gmra.mrb[0].mxu0 %v3065
        %v3267 = vpop.f32.mrb[0].mxu0
        %v3268 = vadd.f32 0.0, %v3267
        %v3269 = vpop.f32.mrb[0].mxu0
        %3270 = vmatprep.mubr.f32.mxu0 0.0
        %3271 = vmatmul.mubr.f32.gmra.mrb[0].mxu0 %v3066
        %v3272 = vpop.f32.mrb[0].mxu0
        %v3273 = vadd.f32 0.0, %v3272
        %v3274 = vpop.f32.mrb[0].mxu0
        %3275 = vmatprep.mubr.f32.mxu0 0.0
        %3276 = vmatmul.mubr.f32.gmra.mrb[0].mxu0 %v3067
        %v3277 = vpop.f32.mrb[0].mxu0
        %v3278 = vadd.f32 0.0, %v3277
        %v3279 = vpop.f32.mrb[0].mxu0
        %3280 = vmatprep.mubr.f32.mxu0 0.0
        %3281 = vmatmul.mubr.f32.gmra.mrb[0].mxu0 %v3068
        %v3282 = vpop.f32.mrb[0].mxu0
        %v3283 = vadd.f32 0.0, %v3282
        %v3284 = vpop.f32.mrb[0].mxu0
        %3285 = vmatprep.mubr.f32.mxu0 0.0
        %3286 = vmatmul.mubr.f32.gmra.mrb[0].mxu0 %v3069
        %v3287 = vpop.f32.mrb[0].mxu0
        %v3288 = vadd.f32 0.0, %v3287
        %v3289 = vpop.f32.mrb[0].mxu0
        %3290 = vmatprep.mubr.f32.mxu0 0.0
        %3291 = vmatmul.mubr.f32.gmra.mrb[0].mxu0 %v3070
        %v3292 = vpop.f32.mrb[0].mxu0
        %v3293 = vadd.f32 0.0, %v3292
        %v3294 = vpop.f32.mrb[0].mxu0
        %3295 = vdwg.mxu0
        %v3296 = vpack.c.bf16 %v2886, %v2881
        %v3297 = vpack.c.bf16 %v2896, %v2891
        %v3298 = vpack.c.bf16 %v2906, %v2901
        %v3299 = vpack.c.bf16 %v2916, %v2911
        %v3300 = vpack.c.bf16 %v2926, %v2921
        %v3301 = vpack.c.bf16 %v2936, %v2931
        %v3302 = vpack.c.bf16 %v2946, %v2941
        %v3303 = vpack.c.bf16 %v2956, %v2951
        %3304 = vset.pattern.permute.xlu0 2
        %3305 = vperm.xlu0 %3304, %v749
        %v3306 = vpop.permute.xlu0 %3305
        %3308 = vset.pattern.permute.xlu0 2
        %3309 = vperm.xlu0 %3308, %v750
        %v3310 = vpop.permute.xlu0 %3309
        %3312 = vset.pattern.permute.xlu0 2
        %3313 = vperm.xlu0 %3312, %v751
        %v3314 = vpop.permute.xlu0 %3313
        %3316 = vset.pattern.permute.xlu0 2
        %3317 = vperm.xlu0 %3316, %v752
        %v3318 = vpop.permute.xlu0 %3317
        %3320 = vset.pattern.permute.xlu0 2
        %3321 = vperm.xlu0 %3320, %v753
        %v3322 = vpop.permute.xlu0 %3321
        %3324 = vset.pattern.permute.xlu0 2
        %3325 = vperm.xlu0 %3324, %v754
        %v3326 = vpop.permute.xlu0 %3325
        %3328 = vset.pattern.permute.xlu0 2
        %3329 = vperm.xlu0 %3328, %v755
        %v3330 = vpop.permute.xlu0 %3329
        %3332 = vset.pattern.permute.xlu0 2
        %3333 = vperm.xlu0 %3332, %v756
        %v3334 = vpop.permute.xlu0 %3333
        %3336 = vset.pattern.permute.xlu0 2
        %3337 = vperm.xlu0 %3336, %v757
        %v3338 = vpop.permute.xlu0 %3337
        %3340 = vset.pattern.permute.xlu0 2
        %3341 = vperm.xlu0 %3340, %v758
        %v3342 = vpop.permute.xlu0 %3341
        %3344 = vset.pattern.permute.xlu0 2
        %3345 = vperm.xlu0 %3344, %v759
        %v3346 = vpop.permute.xlu0 %3345
        %3348 = vset.pattern.permute.xlu0 2
        %3349 = vperm.xlu0 %3348, %v760
        %v3350 = vpop.permute.xlu0 %3349
        %3352 = vset.pattern.permute.xlu0 2
        %3353 = vperm.xlu0 %3352, %v761
        %v3354 = vpop.permute.xlu0 %3353
        %3356 = vset.pattern.permute.xlu0 2
        %3357 = vperm.xlu0 %3356, %v762
        %v3358 = vpop.permute.xlu0 %3357
        %3360 = vset.pattern.permute.xlu0 2
        %3361 = vperm.xlu0 %3360, %v763
        %v3362 = vpop.permute.xlu0 %3361
        %3364 = vset.pattern.permute.xlu0 2
        %3365 = vperm.xlu0 %3364, %v764
        %v3366 = vpop.permute.xlu0 %3365
        %v3368 = vadd.f32 %v2961, %v3306
        %v3369 = vadd.f32 %v2966, %v3310
        %v3370 = vadd.f32 %v2971, %v3314
        %v3371 = vadd.f32 %v2976, %v3318
        %v3372 = vadd.f32 %v2981, %v3322
        %v3373 = vadd.f32 %v2986, %v3326
        %v3374 = vadd.f32 %v2991, %v3330
        %v3375 = vadd.f32 %v2996, %v3334
        %v3376 = vadd.f32 %v3001, %v3338
        %v3377 = vadd.f32 %v3006, %v3342
        %v3378 = vadd.f32 %v3011, %v3346
        %v3379 = vadd.f32 %v3016, %v3350
        %v3380 = vadd.f32 %v3021, %v3354
        %v3381 = vadd.f32 %v3026, %v3358
        %v3382 = vadd.f32 %v3031, %v3362
        %v3383 = vadd.f32 %v3036, %v3366
        %v3384 = vpack.c.bf16 %v3369, %v3368
        %v3385 = vpack.c.bf16 %v3371, %v3370
        %v3386 = vpack.c.bf16 %v3373, %v3372
        %v3387 = vpack.c.bf16 %v3375, %v3374
        %v3388 = vpack.c.bf16 %v3377, %v3376
        %v3389 = vpack.c.bf16 %v3379, %v3378
        %v3390 = vpack.c.bf16 %v3381, %v3380
        %v3391 = vpack.c.bf16 %v3383, %v3382
        %v3392 = vpack.c.bf16 %v3143, %v3138
        %v3393 = vpack.c.bf16 %v3153, %v3148
        %v3394 = vpack.c.bf16 %v3163, %v3158
        %v3395 = vpack.c.bf16 %v3173, %v3168
        %v3396 = vpack.c.bf16 %v3183, %v3178
        %v3397 = vpack.c.bf16 %v3193, %v3188
        %v3398 = vpack.c.bf16 %v3203, %v3198
        %v3399 = vpack.c.bf16 %v3213, %v3208
        %3400 = vset.pattern.permute.xlu0 3
        %3401 = vperm.xlu0 %3400, %v749
        %v3402 = vpop.permute.xlu0 %3401
        %3404 = vset.pattern.permute.xlu0 3
        %3405 = vperm.xlu0 %3404, %v750
        %v3406 = vpop.permute.xlu0 %3405
        %3408 = vset.pattern.permute.xlu0 3
        %3409 = vperm.xlu0 %3408, %v751
        %v3410 = vpop.permute.xlu0 %3409
        %3412 = vset.pattern.permute.xlu0 3
        %3413 = vperm.xlu0 %3412, %v752
        %v3414 = vpop.permute.xlu0 %3413
        %3416 = vset.pattern.permute.xlu0 3
        %3417 = vperm.xlu0 %3416, %v753
        %v3418 = vpop.permute.xlu0 %3417
        %3420 = vset.pattern.permute.xlu0 3
        %3421 = vperm.xlu0 %3420, %v754
        %v3422 = vpop.permute.xlu0 %3421
        %3424 = vset.pattern.permute.xlu0 3
        %3425 = vperm.xlu0 %3424, %v755
        %v3426 = vpop.permute.xlu0 %3425
        %3428 = vset.pattern.permute.xlu0 3
        %3429 = vperm.xlu0 %3428, %v756
        %v3430 = vpop.permute.xlu0 %3429
        %3432 = vset.pattern.permute.xlu0 3
        %3433 = vperm.xlu0 %3432, %v757
        %v3434 = vpop.permute.xlu0 %3433
        %3436 = vset.pattern.permute.xlu0 3
        %3437 = vperm.xlu0 %3436, %v758
        %v3438 = vpop.permute.xlu0 %3437
        %3440 = vset.pattern.permute.xlu0 3
        %3441 = vperm.xlu0 %3440, %v759
        %v3442 = vpop.permute.xlu0 %3441
        %3444 = vset.pattern.permute.xlu0 3
        %3445 = vperm.xlu0 %3444, %v760
        %v3446 = vpop.permute.xlu0 %3445
        %3448 = vset.pattern.permute.xlu0 3
        %3449 = vperm.xlu0 %3448, %v761
        %v3450 = vpop.permute.xlu0 %3449
        %3452 = vset.pattern.permute.xlu0 3
        %3453 = vperm.xlu0 %3452, %v762
        %v3454 = vpop.permute.xlu0 %3453
        %3456 = vset.pattern.permute.xlu0 3
        %3457 = vperm.xlu0 %3456, %v763
        %v3458 = vpop.permute.xlu0 %3457
        %3460 = vset.pattern.permute.xlu0 3
        %3461 = vperm.xlu0 %3460, %v764
        %v3462 = vpop.permute.xlu0 %3461
        %v3464 = vadd.f32 %v3218, %v3402
        %v3465 = vadd.f32 %v3223, %v3406
        %v3466 = vadd.f32 %v3228, %v3410
        %v3467 = vadd.f32 %v3233, %v3414
        %v3468 = vadd.f32 %v3238, %v3418
        %v3469 = vadd.f32 %v3243, %v3422
        %v3470 = vadd.f32 %v3248, %v3426
        %v3471 = vadd.f32 %v3253, %v3430
        %v3472 = vadd.f32 %v3258, %v3434
        %v3473 = vadd.f32 %v3263, %v3438
        %v3474 = vadd.f32 %v3268, %v3442
        %v3475 = vadd.f32 %v3273, %v3446
        %v3476 = vadd.f32 %v3278, %v3450
        %v3477 = vadd.f32 %v3283, %v3454
        %v3478 = vadd.f32 %v3288, %v3458
        %v3479 = vadd.f32 %v3293, %v3462
        %v3480 = vpack.c.bf16 %v3465, %v3464
        %v3481 = vpack.c.bf16 %v3467, %v3466
        %v3482 = vpack.c.bf16 %v3469, %v3468
        %v3483 = vpack.c.bf16 %v3471, %v3470
        %v3484 = vpack.c.bf16 %v3473, %v3472
        %v3485 = vpack.c.bf16 %v3475, %v3474
        %v3486 = vpack.c.bf16 %v3477, %v3476
        %v3487 = vpack.c.bf16 %v3479, %v3478
        %v3488 = vld [vmem:[#allocation4] sm:$0xff]
        %v3489 = vld [vmem:[#allocation4 + $0x8] sm:$0xff]
        %v3490 = vld [vmem:[#allocation4 + $0x10] sm:$0xff]
        %v3491 = vld [vmem:[#allocation4 + $0x18] sm:$0xff]
        %v3492 = vld [vmem:[#allocation4 + $0x20] sm:$0xff]
        %v3493 = vld [vmem:[#allocation4 + $0x28] sm:$0xff]
        %v3494 = vld [vmem:[#allocation4 + $0x30] sm:$0xff]
        %v3495 = vld [vmem:[#allocation4 + $0x38] sm:$0xff]
        %3496 = vmatprep.subr.bf16.mxu0 0
        %3497 = vmatpush1.bf16.msra.mxu0 %v3296
        %3498 = vmatprep.subr.bf16.mxu0 0
        %3499 = vmatpush1.bf16.msra.mxu0 %v3297
        %3500 = vmatprep.subr.bf16.mxu0 0
        %3501 = vmatpush1.bf16.msra.mxu0 %v3298
        %3502 = vmatprep.subr.bf16.mxu0 0
        %3503 = vmatpush1.bf16.msra.mxu0 %v3299
        %3504 = vmatprep.subr.bf16.mxu0 0
        %3505 = vmatpush1.bf16.msra.mxu0 %v3300
        %3506 = vmatprep.subr.bf16.mxu0 0
        %3507 = vmatpush1.bf16.msra.mxu0 %v3301
        %3508 = vmatprep.subr.bf16.mxu0 0
        %3509 = vmatpush1.bf16.msra.mxu0 %v3302
        %3510 = vmatprep.subr.bf16.mxu0 0
        %3511 = vmatpush1.bf16.msra.mxu0 %v3303
        %3512 = vmatprep.subr.bf16.mxu0 0
        %3513 = vmatpush1.bf16.msra.mxu0 0
        %3514 = vmatprep.subr.bf16.mxu0 0
        %3515 = vmatpush1.bf16.msra.mxu0 0
        %3516 = vmatprep.subr.bf16.mxu0 0
        %3517 = vmatpush1.bf16.msra.mxu0 0
        %3518 = vmatprep.subr.bf16.mxu0 0
        %3519 = vmatpush1.bf16.msra.mxu0 0
        %3520 = vmatprep.subr.bf16.mxu0 0
        %3521 = vmatpush1.bf16.msra.mxu0 0
        %3522 = vmatprep.subr.bf16.mxu0 0
        %3523 = vmatpush1.bf16.msra.mxu0 0
        %3524 = vmatprep.subr.bf16.mxu0 0
        %3525 = vmatpush1.bf16.msra.mxu0 0
        %3526 = vmatprep.subr.bf16.mxu0 0
        %3527 = vmatpush1.bf16.msra.mxu0 0
        %3528 = vmatprep.mubr.bf16.mxu0 0
        %3529 = vmatmul.mubr.bf16.gmra.mrb[0].mxu0 %v3488
        %v3530 = vpop.f32.mrb[0].mxu0
        %v3531 = vadd.f32 0.0, %v3530
        %v3532 = vpop.f32.mrb[0].mxu0
        %v3533 = vpop.f32.mrb[0].mxu0
        %v3534 = vadd.f32 0.0, %v3533
        %v3535 = vpop.f32.mrb[0].mxu0
        %3536 = vmatprep.mubr.bf16.mxu0 0
        %3537 = vmatmul.mubr.bf16.gmra.mrb[0].mxu0 %v3489
        %v3538 = vpop.f32.mrb[0].mxu0
        %v3539 = vadd.f32 0.0, %v3538
        %v3540 = vpop.f32.mrb[0].mxu0
        %v3541 = vpop.f32.mrb[0].mxu0
        %v3542 = vadd.f32 0.0, %v3541
        %v3543 = vpop.f32.mrb[0].mxu0
        %3544 = vmatprep.mubr.bf16.mxu0 0
        %3545 = vmatmul.mubr.bf16.gmra.mrb[0].mxu0 %v3490
        %v3546 = vpop.f32.mrb[0].mxu0
        %v3547 = vadd.f32 0.0, %v3546
        %v3548 = vpop.f32.mrb[0].mxu0
        %v3549 = vpop.f32.mrb[0].mxu0
        %v3550 = vadd.f32 0.0, %v3549
        %v3551 = vpop.f32.mrb[0].mxu0
        %3552 = vmatprep.mubr.bf16.mxu0 0
        %3553 = vmatmul.mubr.bf16.gmra.mrb[0].mxu0 %v3491
        %v3554 = vpop.f32.mrb[0].mxu0
        %v3555 = vadd.f32 0.0, %v3554
        %v3556 = vpop.f32.mrb[0].mxu0
        %v3557 = vpop.f32.mrb[0].mxu0
        %v3558 = vadd.f32 0.0, %v3557
        %v3559 = vpop.f32.mrb[0].mxu0
        %3560 = vmatprep.mubr.bf16.mxu0 0
        %3561 = vmatmul.mubr.bf16.gmra.mrb[0].mxu0 %v3492
        %v3562 = vpop.f32.mrb[0].mxu0
        %v3563 = vadd.f32 0.0, %v3562
        %v3564 = vpop.f32.mrb[0].mxu0
        %v3565 = vpop.f32.mrb[0].mxu0
        %v3566 = vadd.f32 0.0, %v3565
        %v3567 = vpop.f32.mrb[0].mxu0
        %3568 = vmatprep.mubr.bf16.mxu0 0
        %3569 = vmatmul.mubr.bf16.gmra.mrb[0].mxu0 %v3493
        %v3570 = vpop.f32.mrb[0].mxu0
        %v3571 = vadd.f32 0.0, %v3570
        %v3572 = vpop.f32.mrb[0].mxu0
        %v3573 = vpop.f32.mrb[0].mxu0
        %v3574 = vadd.f32 0.0, %v3573
        %v3575 = vpop.f32.mrb[0].mxu0
        %3576 = vmatprep.mubr.bf16.mxu0 0
        %3577 = vmatmul.mubr.bf16.gmra.mrb[0].mxu0 %v3494
        %v3578 = vpop.f32.mrb[0].mxu0
        %v3579 = vadd.f32 0.0, %v3578
        %v3580 = vpop.f32.mrb[0].mxu0
        %v3581 = vpop.f32.mrb[0].mxu0
        %v3582 = vadd.f32 0.0, %v3581
        %v3583 = vpop.f32.mrb[0].mxu0
        %3584 = vmatprep.mubr.bf16.mxu0 0
        %3585 = vmatmul.mubr.bf16.gmra.mrb[0].mxu0 %v3495
        %v3586 = vpop.f32.mrb[0].mxu0
        %v3587 = vadd.f32 0.0, %v3586
        %v3588 = vpop.f32.mrb[0].mxu0
        %v3589 = vpop.f32.mrb[0].mxu0
        %v3590 = vadd.f32 0.0, %v3589
        %v3591 = vpop.f32.mrb[0].mxu0
        %3592 = vdwg.mxu0
        %v3593 = vld [vmem:[#allocation6] sm:$0xff]
        %v3594 = vld [vmem:[#allocation6 + $0x8] sm:$0xff]
        %v3595 = vld [vmem:[#allocation6 + $0x10] sm:$0xff]
        %v3596 = vld [vmem:[#allocation6 + $0x18] sm:$0xff]
        %v3597 = vld [vmem:[#allocation6 + $0x20] sm:$0xff]
        %v3598 = vld [vmem:[#allocation6 + $0x28] sm:$0xff]
        %v3599 = vld [vmem:[#allocation6 + $0x30] sm:$0xff]
        %v3600 = vld [vmem:[#allocation6 + $0x38] sm:$0xff]
        %v3601 = vld [vmem:[#allocation6 + $0x40] sm:$0xff]
        %v3602 = vld [vmem:[#allocation6 + $0x48] sm:$0xff]
        %v3603 = vld [vmem:[#allocation6 + $0x50] sm:$0xff]
        %v3604 = vld [vmem:[#allocation6 + $0x58] sm:$0xff]
        %v3605 = vld [vmem:[#allocation6 + $0x60] sm:$0xff]
        %v3606 = vld [vmem:[#allocation6 + $0x68] sm:$0xff]
        %v3607 = vld [vmem:[#allocation6 + $0x70] sm:$0xff]
        %v3608 = vld [vmem:[#allocation6 + $0x78] sm:$0xff]
        %3609 = vmax.xlane.f32.xlu0 %v3531
        %v3610 = vpop.xlane.xlu0 %3609
        %3611 = vmax.xlane.f32.xlu0 %v3534
        %v3612 = vpop.xlane.xlu0 %3611
        %3613 = vmax.xlane.f32.xlu0 %v3539
        %v3614 = vpop.xlane.xlu0 %3613
        %3615 = vmax.xlane.f32.xlu0 %v3542
        %v3616 = vpop.xlane.xlu0 %3615
        %3617 = vmax.xlane.f32.xlu0 %v3547
        %v3618 = vpop.xlane.xlu0 %3617
        %3619 = vmax.xlane.f32.xlu0 %v3550
        %v3620 = vpop.xlane.xlu0 %3619
        %3621 = vmax.xlane.f32.xlu0 %v3555
        %v3622 = vpop.xlane.xlu0 %3621
        %3623 = vmax.xlane.f32.xlu0 %v3558
        %v3624 = vpop.xlane.xlu0 %3623
        %3625 = vmax.xlane.f32.xlu0 %v3563
        %v3626 = vpop.xlane.xlu0 %3625
        %3627 = vmax.xlane.f32.xlu0 %v3566
        %v3628 = vpop.xlane.xlu0 %3627
        %3629 = vmax.xlane.f32.xlu0 %v3571
        %v3630 = vpop.xlane.xlu0 %3629
        %3631 = vmax.xlane.f32.xlu0 %v3574
        %v3632 = vpop.xlane.xlu0 %3631
        %3633 = vmax.xlane.f32.xlu0 %v3579
        %v3634 = vpop.xlane.xlu0 %3633
        %3635 = vmax.xlane.f32.xlu0 %v3582
        %v3636 = vpop.xlane.xlu0 %3635
        %3637 = vmax.xlane.f32.xlu0 %v3587
        %v3638 = vpop.xlane.xlu0 %3637
        %3639 = vmax.xlane.f32.xlu0 %v3590
        %v3640 = vpop.xlane.xlu0 %3639
        %v3641 = vmax.f32 %v3593, %v3610
        %v3642 = vmax.f32 %v3594, %v3612
        %v3643 = vmax.f32 %v3595, %v3614
        %v3644 = vmax.f32 %v3596, %v3616
        %v3645 = vmax.f32 %v3597, %v3618
        %v3646 = vmax.f32 %v3598, %v3620
        %v3647 = vmax.f32 %v3599, %v3622
        %v3648 = vmax.f32 %v3600, %v3624
        %v3649 = vmax.f32 %v3601, %v3626
        %v3650 = vmax.f32 %v3602, %v3628
        %v3651 = vmax.f32 %v3603, %v3630
        %v3652 = vmax.f32 %v3604, %v3632
        %v3653 = vmax.f32 %v3605, %v3634
        %v3654 = vmax.f32 %v3606, %v3636
        %v3655 = vmax.f32 %v3607, %v3638
        %v3656 = vmax.f32 %v3608, %v3640
        %v3657 = vsub.f32 %v3593, %v3641
        %v3658 = vsub.f32 %v3594, %v3642
        %v3659 = vsub.f32 %v3595, %v3643
        %v3660 = vsub.f32 %v3596, %v3644
        %v3661 = vsub.f32 %v3597, %v3645
        %v3662 = vsub.f32 %v3598, %v3646
        %v3663 = vsub.f32 %v3599, %v3647
        %v3664 = vsub.f32 %v3600, %v3648
        %v3665 = vsub.f32 %v3601, %v3649
        %v3666 = vsub.f32 %v3602, %v3650
        %v3667 = vsub.f32 %v3603, %v3651
        %v3668 = vsub.f32 %v3604, %v3652
        %v3669 = vsub.f32 %v3605, %v3653
        %v3670 = vsub.f32 %v3606, %v3654
        %v3671 = vsub.f32 %v3607, %v3655
        %v3672 = vsub.f32 %v3608, %v3656
        %v3673 = vmul.f32 %v3657, 1.442695
        %v3674 = vpow.pop %v3673
        %v3675 = vmul.f32 %v3658, 1.442695
        %v3676 = vpow.pop %v3675
        %v3677 = vmul.f32 %v3659, 1.442695
        %v3678 = vpow.pop %v3677
        %v3679 = vmul.f32 %v3660, 1.442695
        %v3680 = vpow.pop %v3679
        %v3681 = vmul.f32 %v3661, 1.442695
        %v3682 = vpow.pop %v3681
        %v3683 = vmul.f32 %v3662, 1.442695
        %v3684 = vpow.pop %v3683
        %v3685 = vmul.f32 %v3663, 1.442695
        %v3686 = vpow.pop %v3685
        %v3687 = vmul.f32 %v3664, 1.442695
        %v3688 = vpow.pop %v3687
        %v3689 = vmul.f32 %v3665, 1.442695
        %v3690 = vpow.pop %v3689
        %v3691 = vmul.f32 %v3666, 1.442695
        %v3692 = vpow.pop %v3691
        %v3693 = vmul.f32 %v3667, 1.442695
        %v3694 = vpow.pop %v3693
        %v3695 = vmul.f32 %v3668, 1.442695
        %v3696 = vpow.pop %v3695
        %v3697 = vmul.f32 %v3669, 1.442695
        %v3698 = vpow.pop %v3697
        %v3699 = vmul.f32 %v3670, 1.442695
        %v3700 = vpow.pop %v3699
        %v3701 = vmul.f32 %v3671, 1.442695
        %v3702 = vpow.pop %v3701
        %v3703 = vmul.f32 %v3672, 1.442695
        %v3704 = vpow.pop %v3703
        %3706 = vset.pattern.permute.xlu0 0
        %3707 = vperm.xlu0 %3706, %v3641
        %v3708 = vpop.permute.xlu0 %3707
        %3711 = vset.pattern.permute.xlu0 0
        %3712 = vperm.xlu0 %3711, %v3642
        %v3713 = vpop.permute.xlu0 %3712
        %3716 = vset.pattern.permute.xlu0 0
        %3717 = vperm.xlu0 %3716, %v3643
        %v3718 = vpop.permute.xlu0 %3717
        %3721 = vset.pattern.permute.xlu0 0
        %3722 = vperm.xlu0 %3721, %v3644
        %v3723 = vpop.permute.xlu0 %3722
        %3726 = vset.pattern.permute.xlu0 0
        %3727 = vperm.xlu0 %3726, %v3645
        %v3728 = vpop.permute.xlu0 %3727
        %3731 = vset.pattern.permute.xlu0 0
        %3732 = vperm.xlu0 %3731, %v3646
        %v3733 = vpop.permute.xlu0 %3732
        %3736 = vset.pattern.permute.xlu0 0
        %3737 = vperm.xlu0 %3736, %v3647
        %v3738 = vpop.permute.xlu0 %3737
        %3741 = vset.pattern.permute.xlu0 0
        %3742 = vperm.xlu0 %3741, %v3648
        %v3743 = vpop.permute.xlu0 %3742
        %3746 = vset.pattern.permute.xlu0 0
        %3747 = vperm.xlu0 %3746, %v3649
        %v3748 = vpop.permute.xlu0 %3747
        %3751 = vset.pattern.permute.xlu0 0
        %3752 = vperm.xlu0 %3751, %v3650
        %v3753 = vpop.permute.xlu0 %3752
        %3756 = vset.pattern.permute.xlu0 0
        %3757 = vperm.xlu0 %3756, %v3651
        %v3758 = vpop.permute.xlu0 %3757
        %3761 = vset.pattern.permute.xlu0 0
        %3762 = vperm.xlu0 %3761, %v3652
        %v3763 = vpop.permute.xlu0 %3762
        %3766 = vset.pattern.permute.xlu0 0
        %3767 = vperm.xlu0 %3766, %v3653
        %v3768 = vpop.permute.xlu0 %3767
        %3771 = vset.pattern.permute.xlu0 0
        %3772 = vperm.xlu0 %3771, %v3654
        %v3773 = vpop.permute.xlu0 %3772
        %3776 = vset.pattern.permute.xlu0 0
        %3777 = vperm.xlu0 %3776, %v3655
        %v3778 = vpop.permute.xlu0 %3777
        %3781 = vset.pattern.permute.xlu0 0
        %3782 = vperm.xlu0 %3781, %v3656
        %v3783 = vpop.permute.xlu0 %3782
        %v3785 = vsub.f32 %v3531, %v3708
        %v3786 = vsub.f32 %v3534, %v3713
        %v3787 = vsub.f32 %v3539, %v3718
        %v3788 = vsub.f32 %v3542, %v3723
        %v3789 = vsub.f32 %v3547, %v3728
        %v3790 = vsub.f32 %v3550, %v3733
        %v3791 = vsub.f32 %v3555, %v3738
        %v3792 = vsub.f32 %v3558, %v3743
        %v3793 = vsub.f32 %v3563, %v3748
        %v3794 = vsub.f32 %v3566, %v3753
        %v3795 = vsub.f32 %v3571, %v3758
        %v3796 = vsub.f32 %v3574, %v3763
        %v3797 = vsub.f32 %v3579, %v3768
        %v3798 = vsub.f32 %v3582, %v3773
        %v3799 = vsub.f32 %v3587, %v3778
        %v3800 = vsub.f32 %v3590, %v3783
        %v3801 = vmul.f32 %v3785, 1.442695
        %v3802 = vpow.pop %v3801
        %v3803 = vmul.f32 %v3786, 1.442695
        %v3804 = vpow.pop %v3803
        %v3805 = vmul.f32 %v3787, 1.442695
        %v3806 = vpow.pop %v3805
        %v3807 = vmul.f32 %v3788, 1.442695
        %v3808 = vpow.pop %v3807
        %v3809 = vmul.f32 %v3789, 1.442695
        %v3810 = vpow.pop %v3809
        %v3811 = vmul.f32 %v3790, 1.442695
        %v3812 = vpow.pop %v3811
        %v3813 = vmul.f32 %v3791, 1.442695
        %v3814 = vpow.pop %v3813
        %v3815 = vmul.f32 %v3792, 1.442695
        %v3816 = vpow.pop %v3815
        %v3817 = vmul.f32 %v3793, 1.442695
        %v3818 = vpow.pop %v3817
        %v3819 = vmul.f32 %v3794, 1.442695
        %v3820 = vpow.pop %v3819
        %v3821 = vmul.f32 %v3795, 1.442695
        %v3822 = vpow.pop %v3821
        %v3823 = vmul.f32 %v3796, 1.442695
        %v3824 = vpow.pop %v3823
        %v3825 = vmul.f32 %v3797, 1.442695
        %v3826 = vpow.pop %v3825
        %v3827 = vmul.f32 %v3798, 1.442695
        %v3828 = vpow.pop %v3827
        %v3829 = vmul.f32 %v3799, 1.442695
        %v3830 = vpow.pop %v3829
        %v3831 = vmul.f32 %v3800, 1.442695
        %v3832 = vpow.pop %v3831
        %v3833 = vld [vmem:[#allocation7] sm:$0xff]
        %v3834 = vld [vmem:[#allocation7 + $0x8] sm:$0xff]
        %v3835 = vld [vmem:[#allocation7 + $0x10] sm:$0xff]
        %v3836 = vld [vmem:[#allocation7 + $0x18] sm:$0xff]
        %v3837 = vld [vmem:[#allocation7 + $0x20] sm:$0xff]
        %v3838 = vld [vmem:[#allocation7 + $0x28] sm:$0xff]
        %v3839 = vld [vmem:[#allocation7 + $0x30] sm:$0xff]
        %v3840 = vld [vmem:[#allocation7 + $0x38] sm:$0xff]
        %v3841 = vld [vmem:[#allocation7 + $0x40] sm:$0xff]
        %v3842 = vld [vmem:[#allocation7 + $0x48] sm:$0xff]
        %v3843 = vld [vmem:[#allocation7 + $0x50] sm:$0xff]
        %v3844 = vld [vmem:[#allocation7 + $0x58] sm:$0xff]
        %v3845 = vld [vmem:[#allocation7 + $0x60] sm:$0xff]
        %v3846 = vld [vmem:[#allocation7 + $0x68] sm:$0xff]
        %v3847 = vld [vmem:[#allocation7 + $0x70] sm:$0xff]
        %v3848 = vld [vmem:[#allocation7 + $0x78] sm:$0xff]
        %v3849 = vmul.f32 %v3674, %v3833
        %v3850 = vmul.f32 %v3676, %v3834
        %v3851 = vmul.f32 %v3678, %v3835
        %v3852 = vmul.f32 %v3680, %v3836
        %v3853 = vmul.f32 %v3682, %v3837
        %v3854 = vmul.f32 %v3684, %v3838
        %v3855 = vmul.f32 %v3686, %v3839
        %v3856 = vmul.f32 %v3688, %v3840
        %v3857 = vmul.f32 %v3690, %v3841
        %v3858 = vmul.f32 %v3692, %v3842
        %v3859 = vmul.f32 %v3694, %v3843
        %v3860 = vmul.f32 %v3696, %v3844
        %v3861 = vmul.f32 %v3698, %v3845
        %v3862 = vmul.f32 %v3700, %v3846
        %v3863 = vmul.f32 %v3702, %v3847
        %v3864 = vmul.f32 %v3704, %v3848
        %3865 = vadd.xlane.f32.xlu0 %v3802
        %v3866 = vpop.xlane.xlu0 %3865
        %3867 = vadd.xlane.f32.xlu0 %v3804
        %v3868 = vpop.xlane.xlu0 %3867
        %3869 = vadd.xlane.f32.xlu0 %v3806
        %v3870 = vpop.xlane.xlu0 %3869
        %3871 = vadd.xlane.f32.xlu0 %v3808
        %v3872 = vpop.xlane.xlu0 %3871
        %3873 = vadd.xlane.f32.xlu0 %v3810
        %v3874 = vpop.xlane.xlu0 %3873
        %3875 = vadd.xlane.f32.xlu0 %v3812
        %v3876 = vpop.xlane.xlu0 %3875
        %3877 = vadd.xlane.f32.xlu0 %v3814
        %v3878 = vpop.xlane.xlu0 %3877
        %3879 = vadd.xlane.f32.xlu0 %v3816
        %v3880 = vpop.xlane.xlu0 %3879
        %3881 = vadd.xlane.f32.xlu0 %v3818
        %v3882 = vpop.xlane.xlu0 %3881
        %3883 = vadd.xlane.f32.xlu0 %v3820
        %v3884 = vpop.xlane.xlu0 %3883
        %3885 = vadd.xlane.f32.xlu0 %v3822
        %v3886 = vpop.xlane.xlu0 %3885
        %3887 = vadd.xlane.f32.xlu0 %v3824
        %v3888 = vpop.xlane.xlu0 %3887
        %3889 = vadd.xlane.f32.xlu0 %v3826
        %v3890 = vpop.xlane.xlu0 %3889
        %3891 = vadd.xlane.f32.xlu0 %v3828
        %v3892 = vpop.xlane.xlu0 %3891
        %3893 = vadd.xlane.f32.xlu0 %v3830
        %v3894 = vpop.xlane.xlu0 %3893
        %3895 = vadd.xlane.f32.xlu0 %v3832
        %v3896 = vpop.xlane.xlu0 %3895
        %v3897 = vadd.f32 %v3849, %v3866
        %v3898 = vadd.f32 %v3850, %v3868
        %v3899 = vadd.f32 %v3851, %v3870
        %v3900 = vadd.f32 %v3852, %v3872
        %v3901 = vadd.f32 %v3853, %v3874
        %v3902 = vadd.f32 %v3854, %v3876
        %v3903 = vadd.f32 %v3855, %v3878
        %v3904 = vadd.f32 %v3856, %v3880
        %v3905 = vadd.f32 %v3857, %v3882
        %v3906 = vadd.f32 %v3858, %v3884
        %v3907 = vadd.f32 %v3859, %v3886
        %v3908 = vadd.f32 %v3860, %v3888
        %v3909 = vadd.f32 %v3861, %v3890
        %v3910 = vadd.f32 %v3862, %v3892
        %v3911 = vadd.f32 %v3863, %v3894
        %v3912 = vadd.f32 %v3864, %v3896
        %vm3913 = vcmask 7168
        %3914 = vst.msk [vmem:[#allocation7] sm:$0xff] %vm3913, %v3897
        %3915 = vst.msk [vmem:[#allocation7 + $0x8] sm:$0xff] %vm3913, %v3898
        %3916 = vst.msk [vmem:[#allocation7 + $0x10] sm:$0xff] %vm3913, %v3899
        %3917 = vst.msk [vmem:[#allocation7 + $0x18] sm:$0xff] %vm3913, %v3900
        %3918 = vst.msk [vmem:[#allocation7 + $0x20] sm:$0xff] %vm3913, %v3901
        %3919 = vst.msk [vmem:[#allocation7 + $0x28] sm:$0xff] %vm3913, %v3902
        %3920 = vst.msk [vmem:[#allocation7 + $0x30] sm:$0xff] %vm3913, %v3903
        %3921 = vst.msk [vmem:[#allocation7 + $0x38] sm:$0xff] %vm3913, %v3904
        %3922 = vst.msk [vmem:[#allocation7 + $0x40] sm:$0xff] %vm3913, %v3905
        %3923 = vst.msk [vmem:[#allocation7 + $0x48] sm:$0xff] %vm3913, %v3906
        %3924 = vst.msk [vmem:[#allocation7 + $0x50] sm:$0xff] %vm3913, %v3907
        %3925 = vst.msk [vmem:[#allocation7 + $0x58] sm:$0xff] %vm3913, %v3908
        %3926 = vst.msk [vmem:[#allocation7 + $0x60] sm:$0xff] %vm3913, %v3909
        %3927 = vst.msk [vmem:[#allocation7 + $0x68] sm:$0xff] %vm3913, %v3910
        %3928 = vst.msk [vmem:[#allocation7 + $0x70] sm:$0xff] %vm3913, %v3911
        %3929 = vst.msk [vmem:[#allocation7 + $0x78] sm:$0xff] %vm3913, %v3912
        %v3930 = vpack.c.bf16 %v3804, %v3802
        %v3931 = vpack.c.bf16 %v3808, %v3806
        %v3932 = vpack.c.bf16 %v3812, %v3810
        %v3933 = vpack.c.bf16 %v3816, %v3814
        %v3934 = vpack.c.bf16 %v3820, %v3818
        %v3935 = vpack.c.bf16 %v3824, %v3822
        %v3936 = vpack.c.bf16 %v3828, %v3826
        %v3937 = vpack.c.bf16 %v3832, %v3830
        %3938 = vmatprep.subr.bf16.mxu0 0
        %3939 = vmatpush1.bf16.xpose.msra.mxu0 %v3384
        %3940 = vmatprep.subr.bf16.mxu0 0
        %3941 = vmatpush1.bf16.xpose.msra.mxu0 %v3385
        %3942 = vmatprep.subr.bf16.mxu0 0
        %3943 = vmatpush1.bf16.xpose.msra.mxu0 %v3386
        %3944 = vmatprep.subr.bf16.mxu0 0
        %3945 = vmatpush1.bf16.xpose.msra.mxu0 %v3387
        %3946 = vmatprep.subr.bf16.mxu0 0
        %3947 = vmatpush1.bf16.xpose.msra.mxu0 %v3388
        %3948 = vmatprep.subr.bf16.mxu0 0
        %3949 = vmatpush1.bf16.xpose.msra.mxu0 %v3389
        %3950 = vmatprep.subr.bf16.mxu0 0
        %3951 = vmatpush1.bf16.xpose.msra.mxu0 %v3390
        %3952 = vmatprep.subr.bf16.mxu0 0
        %3953 = vmatpush1.bf16.xpose.msra.mxu0 %v3391
        %3954 = vmatprep.subr.bf16.mxu0 0
        %3955 = vmatpush1.bf16.xpose.msra.mxu0 0
        %3956 = vmatprep.subr.bf16.mxu0 0
        %3957 = vmatpush1.bf16.xpose.msra.mxu0 0
        %3958 = vmatprep.subr.bf16.mxu0 0
        %3959 = vmatpush1.bf16.xpose.msra.mxu0 0
        %3960 = vmatprep.subr.bf16.mxu0 0
        %3961 = vmatpush1.bf16.xpose.msra.mxu0 0
        %3962 = vmatprep.subr.bf16.mxu0 0
        %3963 = vmatpush1.bf16.xpose.msra.mxu0 0
        %3964 = vmatprep.subr.bf16.mxu0 0
        %3965 = vmatpush1.bf16.xpose.msra.mxu0 0
        %3966 = vmatprep.subr.bf16.mxu0 0
        %3967 = vmatpush1.bf16.xpose.msra.mxu0 0
        %3968 = vmatprep.subr.bf16.mxu0 0
        %3969 = vmatpush1.bf16.xpose.msra.mxu0 0
        %3970 = vmatprep.mubr.bf16.mxu0 0
        %3971 = vmatmul.mubr.bf16.gmra.mrb[0].mxu0 %v3930
        %v3972 = vpop.f32.mrb[0].mxu0
        %v3973 = vadd.f32 0.0, %v3972
        %v3974 = vpop.f32.mrb[0].mxu0
        %v3975 = vpop.f32.mrb[0].mxu0
        %v3976 = vadd.f32 0.0, %v3975
        %v3977 = vpop.f32.mrb[0].mxu0
        %3978 = vmatprep.mubr.bf16.mxu0 0
        %3979 = vmatmul.mubr.bf16.gmra.mrb[0].mxu0 %v3931
        %v3980 = vpop.f32.mrb[0].mxu0
        %v3981 = vadd.f32 0.0, %v3980
        %v3982 = vpop.f32.mrb[0].mxu0
        %v3983 = vpop.f32.mrb[0].mxu0
        %v3984 = vadd.f32 0.0, %v3983
        %v3985 = vpop.f32.mrb[0].mxu0
        %3986 = vmatprep.mubr.bf16.mxu0 0
        %3987 = vmatmul.mubr.bf16.gmra.mrb[0].mxu0 %v3932
        %v3988 = vpop.f32.mrb[0].mxu0
        %v3989 = vadd.f32 0.0, %v3988
        %v3990 = vpop.f32.mrb[0].mxu0
        %v3991 = vpop.f32.mrb[0].mxu0
        %v3992 = vadd.f32 0.0, %v3991
        %v3993 = vpop.f32.mrb[0].mxu0
        %3994 = vmatprep.mubr.bf16.mxu0 0
        %3995 = vmatmul.mubr.bf16.gmra.mrb[0].mxu0 %v3933
        %v3996 = vpop.f32.mrb[0].mxu0
        %v3997 = vadd.f32 0.0, %v3996
        %v3998 = vpop.f32.mrb[0].mxu0
        %v3999 = vpop.f32.mrb[0].mxu0
        %v4000 = vadd.f32 0.0, %v3999
        %v4001 = vpop.f32.mrb[0].mxu0
        %4002 = vmatprep.mubr.bf16.mxu0 0
        %4003 = vmatmul.mubr.bf16.gmra.mrb[0].mxu0 %v3934
        %v4004 = vpop.f32.mrb[0].mxu0
        %v4005 = vadd.f32 0.0, %v4004
        %v4006 = vpop.f32.mrb[0].mxu0
        %v4007 = vpop.f32.mrb[0].mxu0
        %v4008 = vadd.f32 0.0, %v4007
        %v4009 = vpop.f32.mrb[0].mxu0
        %4010 = vmatprep.mubr.bf16.mxu0 0
        %4011 = vmatmul.mubr.bf16.gmra.mrb[0].mxu0 %v3935
        %v4012 = vpop.f32.mrb[0].mxu0
        %v4013 = vadd.f32 0.0, %v4012
        %v4014 = vpop.f32.mrb[0].mxu0
        %v4015 = vpop.f32.mrb[0].mxu0
        %v4016 = vadd.f32 0.0, %v4015
        %v4017 = vpop.f32.mrb[0].mxu0
        %4018 = vmatprep.mubr.bf16.mxu0 0
        %4019 = vmatmul.mubr.bf16.gmra.mrb[0].mxu0 %v3936
        %v4020 = vpop.f32.mrb[0].mxu0
        %v4021 = vadd.f32 0.0, %v4020
        %v4022 = vpop.f32.mrb[0].mxu0
        %v4023 = vpop.f32.mrb[0].mxu0
        %v4024 = vadd.f32 0.0, %v4023
        %v4025 = vpop.f32.mrb[0].mxu0
        %4026 = vmatprep.mubr.bf16.mxu0 0
        %4027 = vmatmul.mubr.bf16.gmra.mrb[0].mxu0 %v3937
        %v4028 = vpop.f32.mrb[0].mxu0
        %v4029 = vadd.f32 0.0, %v4028
        %v4030 = vpop.f32.mrb[0].mxu0
        %v4031 = vpop.f32.mrb[0].mxu0
        %v4032 = vadd.f32 0.0, %v4031
        %v4033 = vpop.f32.mrb[0].mxu0
        %4034 = vdwg.mxu0
        %v4035 = vld [vmem:[#allocation10] sm:$0xff]
        %v4036 = vld [vmem:[#allocation10 + $0x8] sm:$0xff]
        %v4037 = vld [vmem:[#allocation10 + $0x10] sm:$0xff]
        %v4038 = vld [vmem:[#allocation10 + $0x18] sm:$0xff]
        %v4039 = vld [vmem:[#allocation10 + $0x20] sm:$0xff]
        %v4040 = vld [vmem:[#allocation10 + $0x28] sm:$0xff]
        %v4041 = vld [vmem:[#allocation10 + $0x30] sm:$0xff]
        %v4042 = vld [vmem:[#allocation10 + $0x38] sm:$0xff]
        %v4043 = vld [vmem:[#allocation10 + $0x40] sm:$0xff]
        %v4044 = vld [vmem:[#allocation10 + $0x48] sm:$0xff]
        %v4045 = vld [vmem:[#allocation10 + $0x50] sm:$0xff]
        %v4046 = vld [vmem:[#allocation10 + $0x58] sm:$0xff]
        %v4047 = vld [vmem:[#allocation10 + $0x60] sm:$0xff]
        %v4048 = vld [vmem:[#allocation10 + $0x68] sm:$0xff]
        %v4049 = vld [vmem:[#allocation10 + $0x70] sm:$0xff]
        %v4050 = vld [vmem:[#allocation10 + $0x78] sm:$0xff]
        %4052 = vset.pattern.permute.xlu0 0
        %4053 = vperm.xlu0 %4052, %v3674
        %v4054 = vpop.permute.xlu0 %4053
        %4057 = vset.pattern.permute.xlu0 0
        %4058 = vperm.xlu0 %4057, %v3676
        %v4059 = vpop.permute.xlu0 %4058
        %4062 = vset.pattern.permute.xlu0 0
        %4063 = vperm.xlu0 %4062, %v3678
        %v4064 = vpop.permute.xlu0 %4063
        %4067 = vset.pattern.permute.xlu0 0
        %4068 = vperm.xlu0 %4067, %v3680
        %v4069 = vpop.permute.xlu0 %4068
        %4072 = vset.pattern.permute.xlu0 0
        %4073 = vperm.xlu0 %4072, %v3682
        %v4074 = vpop.permute.xlu0 %4073
        %4077 = vset.pattern.permute.xlu0 0
        %4078 = vperm.xlu0 %4077, %v3684
        %v4079 = vpop.permute.xlu0 %4078
        %4082 = vset.pattern.permute.xlu0 0
        %4083 = vperm.xlu0 %4082, %v3686
        %v4084 = vpop.permute.xlu0 %4083
        %4087 = vset.pattern.permute.xlu0 0
        %4088 = vperm.xlu0 %4087, %v3688
        %v4089 = vpop.permute.xlu0 %4088
        %4092 = vset.pattern.permute.xlu0 0
        %4093 = vperm.xlu0 %4092, %v3690
        %v4094 = vpop.permute.xlu0 %4093
        %4097 = vset.pattern.permute.xlu0 0
        %4098 = vperm.xlu0 %4097, %v3692
        %v4099 = vpop.permute.xlu0 %4098
        %4102 = vset.pattern.permute.xlu0 0
        %4103 = vperm.xlu0 %4102, %v3694
        %v4104 = vpop.permute.xlu0 %4103
        %4107 = vset.pattern.permute.xlu0 0
        %4108 = vperm.xlu0 %4107, %v3696
        %v4109 = vpop.permute.xlu0 %4108
        %4112 = vset.pattern.permute.xlu0 0
        %4113 = vperm.xlu0 %4112, %v3698
        %v4114 = vpop.permute.xlu0 %4113
        %4117 = vset.pattern.permute.xlu0 0
        %4118 = vperm.xlu0 %4117, %v3700
        %v4119 = vpop.permute.xlu0 %4118
        %4122 = vset.pattern.permute.xlu0 0
        %4123 = vperm.xlu0 %4122, %v3702
        %v4124 = vpop.permute.xlu0 %4123
        %4127 = vset.pattern.permute.xlu0 0
        %4128 = vperm.xlu0 %4127, %v3704
        %v4129 = vpop.permute.xlu0 %4128
        %v4131 = vmul.f32 %v4054, %v4035
        %v4132 = vmul.f32 %v4059, %v4036
        %v4133 = vmul.f32 %v4064, %v4037
        %v4134 = vmul.f32 %v4069, %v4038
        %v4135 = vmul.f32 %v4074, %v4039
        %v4136 = vmul.f32 %v4079, %v4040
        %v4137 = vmul.f32 %v4084, %v4041
        %v4138 = vmul.f32 %v4089, %v4042
        %v4139 = vmul.f32 %v4094, %v4043
        %v4140 = vmul.f32 %v4099, %v4044
        %v4141 = vmul.f32 %v4104, %v4045
        %v4142 = vmul.f32 %v4109, %v4046
        %v4143 = vmul.f32 %v4114, %v4047
        %v4144 = vmul.f32 %v4119, %v4048
        %v4145 = vmul.f32 %v4124, %v4049
        %v4146 = vmul.f32 %v4129, %v4050
        %v4147 = vadd.f32 %v4131, %v3973
        %v4148 = vadd.f32 %v4132, %v3976
        %v4149 = vadd.f32 %v4133, %v3981
        %v4150 = vadd.f32 %v4134, %v3984
        %v4151 = vadd.f32 %v4135, %v3989
        %v4152 = vadd.f32 %v4136, %v3992
        %v4153 = vadd.f32 %v4137, %v3997
        %v4154 = vadd.f32 %v4138, %v4000
        %v4155 = vadd.f32 %v4139, %v4005
        %v4156 = vadd.f32 %v4140, %v4008
        %v4157 = vadd.f32 %v4141, %v4013
        %v4158 = vadd.f32 %v4142, %v4016
        %v4159 = vadd.f32 %v4143, %v4021
        %v4160 = vadd.f32 %v4144, %v4024
        %v4161 = vadd.f32 %v4145, %v4029
        %v4162 = vadd.f32 %v4146, %v4032
        %4163 = vst [vmem:[#allocation10] sm:$0xff] %v4147
        %4164 = vst [vmem:[#allocation10 + $0x8] sm:$0xff] %v4148
        %4165 = vst [vmem:[#allocation10 + $0x10] sm:$0xff] %v4149
        %4166 = vst [vmem:[#allocation10 + $0x18] sm:$0xff] %v4150
        %4167 = vst [vmem:[#allocation10 + $0x20] sm:$0xff] %v4151
        %4168 = vst [vmem:[#allocation10 + $0x28] sm:$0xff] %v4152
        %4169 = vst [vmem:[#allocation10 + $0x30] sm:$0xff] %v4153
        %4170 = vst [vmem:[#allocation10 + $0x38] sm:$0xff] %v4154
        %4171 = vst [vmem:[#allocation10 + $0x40] sm:$0xff] %v4155
        %4172 = vst [vmem:[#allocation10 + $0x48] sm:$0xff] %v4156
        %4173 = vst [vmem:[#allocation10 + $0x50] sm:$0xff] %v4157
        %4174 = vst [vmem:[#allocation10 + $0x58] sm:$0xff] %v4158
        %4175 = vst [vmem:[#allocation10 + $0x60] sm:$0xff] %v4159
        %4176 = vst [vmem:[#allocation10 + $0x68] sm:$0xff] %v4160
        %4177 = vst [vmem:[#allocation10 + $0x70] sm:$0xff] %v4161
        %4178 = vst [vmem:[#allocation10 + $0x78] sm:$0xff] %v4162
        %4179 = vst.msk [vmem:[#allocation6] sm:$0xff] %vm3913, %v3641
        %4180 = vst.msk [vmem:[#allocation6 + $0x8] sm:$0xff] %vm3913, %v3642
        %4181 = vst.msk [vmem:[#allocation6 + $0x10] sm:$0xff] %vm3913, %v3643
        %4182 = vst.msk [vmem:[#allocation6 + $0x18] sm:$0xff] %vm3913, %v3644
        %4183 = vst.msk [vmem:[#allocation6 + $0x20] sm:$0xff] %vm3913, %v3645
        %4184 = vst.msk [vmem:[#allocation6 + $0x28] sm:$0xff] %vm3913, %v3646
        %4185 = vst.msk [vmem:[#allocation6 + $0x30] sm:$0xff] %vm3913, %v3647
        %4186 = vst.msk [vmem:[#allocation6 + $0x38] sm:$0xff] %vm3913, %v3648
        %4187 = vst.msk [vmem:[#allocation6 + $0x40] sm:$0xff] %vm3913, %v3649
        %4188 = vst.msk [vmem:[#allocation6 + $0x48] sm:$0xff] %vm3913, %v3650
        %4189 = vst.msk [vmem:[#allocation6 + $0x50] sm:$0xff] %vm3913, %v3651
        %4190 = vst.msk [vmem:[#allocation6 + $0x58] sm:$0xff] %vm3913, %v3652
        %4191 = vst.msk [vmem:[#allocation6 + $0x60] sm:$0xff] %vm3913, %v3653
        %4192 = vst.msk [vmem:[#allocation6 + $0x68] sm:$0xff] %vm3913, %v3654
        %4193 = vst.msk [vmem:[#allocation6 + $0x70] sm:$0xff] %vm3913, %v3655
        %4194 = vst.msk [vmem:[#allocation6 + $0x78] sm:$0xff] %vm3913, %v3656
        %v4195 = vld [vmem:[#allocation5] sm:$0xff]
        %v4196 = vld [vmem:[#allocation5 + $0x8] sm:$0xff]
        %v4197 = vld [vmem:[#allocation5 + $0x10] sm:$0xff]
        %v4198 = vld [vmem:[#allocation5 + $0x18] sm:$0xff]
        %v4199 = vld [vmem:[#allocation5 + $0x20] sm:$0xff]
        %v4200 = vld [vmem:[#allocation5 + $0x28] sm:$0xff]
        %v4201 = vld [vmem:[#allocation5 + $0x30] sm:$0xff]
        %v4202 = vld [vmem:[#allocation5 + $0x38] sm:$0xff]
        %4203 = vmatprep.subr.bf16.mxu0 0
        %4204 = vmatpush1.bf16.msra.mxu0 %v3392
        %4205 = vmatprep.subr.bf16.mxu0 0
        %4206 = vmatpush1.bf16.msra.mxu0 %v3393
        %4207 = vmatprep.subr.bf16.mxu0 0
        %4208 = vmatpush1.bf16.msra.mxu0 %v3394
        %4209 = vmatprep.subr.bf16.mxu0 0
        %4210 = vmatpush1.bf16.msra.mxu0 %v3395
        %4211 = vmatprep.subr.bf16.mxu0 0
        %4212 = vmatpush1.bf16.msra.mxu0 %v3396
        %4213 = vmatprep.subr.bf16.mxu0 0
        %4214 = vmatpush1.bf16.msra.mxu0 %v3397
        %4215 = vmatprep.subr.bf16.mxu0 0
        %4216 = vmatpush1.bf16.msra.mxu0 %v3398
        %4217 = vmatprep.subr.bf16.mxu0 0
        %4218 = vmatpush1.bf16.msra.mxu0 %v3399
        %4219 = vmatprep.subr.bf16.mxu0 0
        %4220 = vmatpush1.bf16.msra.mxu0 0
        %4221 = vmatprep.subr.bf16.mxu0 0
        %4222 = vmatpush1.bf16.msra.mxu0 0
        %4223 = vmatprep.subr.bf16.mxu0 0
        %4224 = vmatpush1.bf16.msra.mxu0 0
        %4225 = vmatprep.subr.bf16.mxu0 0
        %4226 = vmatpush1.bf16.msra.mxu0 0
        %4227 = vmatprep.subr.bf16.mxu0 0
        %4228 = vmatpush1.bf16.msra.mxu0 0
        %4229 = vmatprep.subr.bf16.mxu0 0
        %4230 = vmatpush1.bf16.msra.mxu0 0
        %4231 = vmatprep.subr.bf16.mxu0 0
        %4232 = vmatpush1.bf16.msra.mxu0 0
        %4233 = vmatprep.subr.bf16.mxu0 0
        %4234 = vmatpush1.bf16.msra.mxu0 0
        %4235 = vmatprep.mubr.bf16.mxu0 0
        %4236 = vmatmul.mubr.bf16.gmra.mrb[0].mxu0 %v4195
        %v4237 = vpop.f32.mrb[0].mxu0
        %v4238 = vadd.f32 0.0, %v4237
        %v4239 = vpop.f32.mrb[0].mxu0
        %v4240 = vpop.f32.mrb[0].mxu0
        %v4241 = vadd.f32 0.0, %v4240
        %v4242 = vpop.f32.mrb[0].mxu0
        %4243 = vmatprep.mubr.bf16.mxu0 0
        %4244 = vmatmul.mubr.bf16.gmra.mrb[0].mxu0 %v4196
        %v4245 = vpop.f32.mrb[0].mxu0
        %v4246 = vadd.f32 0.0, %v4245
        %v4247 = vpop.f32.mrb[0].mxu0
        %v4248 = vpop.f32.mrb[0].mxu0
        %v4249 = vadd.f32 0.0, %v4248
        %v4250 = vpop.f32.mrb[0].mxu0
        %4251 = vmatprep.mubr.bf16.mxu0 0
        %4252 = vmatmul.mubr.bf16.gmra.mrb[0].mxu0 %v4197
        %v4253 = vpop.f32.mrb[0].mxu0
        %v4254 = vadd.f32 0.0, %v4253
        %v4255 = vpop.f32.mrb[0].mxu0
        %v4256 = vpop.f32.mrb[0].mxu0
        %v4257 = vadd.f32 0.0, %v4256
        %v4258 = vpop.f32.mrb[0].mxu0
        %4259 = vmatprep.mubr.bf16.mxu0 0
        %4260 = vmatmul.mubr.bf16.gmra.mrb[0].mxu0 %v4198
        %v4261 = vpop.f32.mrb[0].mxu0
        %v4262 = vadd.f32 0.0, %v4261
        %v4263 = vpop.f32.mrb[0].mxu0
        %v4264 = vpop.f32.mrb[0].mxu0
        %v4265 = vadd.f32 0.0, %v4264
        %v4266 = vpop.f32.mrb[0].mxu0
        %4267 = vmatprep.mubr.bf16.mxu0 0
        %4268 = vmatmul.mubr.bf16.gmra.mrb[0].mxu0 %v4199
        %v4269 = vpop.f32.mrb[0].mxu0
        %v4270 = vadd.f32 0.0, %v4269
        %v4271 = vpop.f32.mrb[0].mxu0
        %v4272 = vpop.f32.mrb[0].mxu0
        %v4273 = vadd.f32 0.0, %v4272
        %v4274 = vpop.f32.mrb[0].mxu0
        %4275 = vmatprep.mubr.bf16.mxu0 0
        %4276 = vmatmul.mubr.bf16.gmra.mrb[0].mxu0 %v4200
        %v4277 = vpop.f32.mrb[0].mxu0
        %v4278 = vadd.f32 0.0, %v4277
        %v4279 = vpop.f32.mrb[0].mxu0
        %v4280 = vpop.f32.mrb[0].mxu0
        %v4281 = vadd.f32 0.0, %v4280
        %v4282 = vpop.f32.mrb[0].mxu0
        %4283 = vmatprep.mubr.bf16.mxu0 0
        %4284 = vmatmul.mubr.bf16.gmra.mrb[0].mxu0 %v4201
        %v4285 = vpop.f32.mrb[0].mxu0
        %v4286 = vadd.f32 0.0, %v4285
        %v4287 = vpop.f32.mrb[0].mxu0
        %v4288 = vpop.f32.mrb[0].mxu0
        %v4289 = vadd.f32 0.0, %v4288
        %v4290 = vpop.f32.mrb[0].mxu0
        %4291 = vmatprep.mubr.bf16.mxu0 0
        %4292 = vmatmul.mubr.bf16.gmra.mrb[0].mxu0 %v4202
        %v4293 = vpop.f32.mrb[0].mxu0
        %v4294 = vadd.f32 0.0, %v4293
        %v4295 = vpop.f32.mrb[0].mxu0
        %v4296 = vpop.f32.mrb[0].mxu0
        %v4297 = vadd.f32 0.0, %v4296
        %v4298 = vpop.f32.mrb[0].mxu0
        %4299 = vdwg.mxu0
        %v4300 = vld [vmem:[#allocation8] sm:$0xff]
        %v4301 = vld [vmem:[#allocation8 + $0x8] sm:$0xff]
        %v4302 = vld [vmem:[#allocation8 + $0x10] sm:$0xff]
        %v4303 = vld [vmem:[#allocation8 + $0x18] sm:$0xff]
        %v4304 = vld [vmem:[#allocation8 + $0x20] sm:$0xff]
        %v4305 = vld [vmem:[#allocation8 + $0x28] sm:$0xff]
        %v4306 = vld [vmem:[#allocation8 + $0x30] sm:$0xff]
        %v4307 = vld [vmem:[#allocation8 + $0x38] sm:$0xff]
        %v4308 = vld [vmem:[#allocation8 + $0x40] sm:$0xff]
        %v4309 = vld [vmem:[#allocation8 + $0x48] sm:$0xff]
        %v4310 = vld [vmem:[#allocation8 + $0x50] sm:$0xff]
        %v4311 = vld [vmem:[#allocation8 + $0x58] sm:$0xff]
        %v4312 = vld [vmem:[#allocation8 + $0x60] sm:$0xff]
        %v4313 = vld [vmem:[#allocation8 + $0x68] sm:$0xff]
        %v4314 = vld [vmem:[#allocation8 + $0x70] sm:$0xff]
        %v4315 = vld [vmem:[#allocation8 + $0x78] sm:$0xff]
        %4316 = vmax.xlane.f32.xlu0 %v4238
        %v4317 = vpop.xlane.xlu0 %4316
        %4318 = vmax.xlane.f32.xlu0 %v4241
        %v4319 = vpop.xlane.xlu0 %4318
        %4320 = vmax.xlane.f32.xlu0 %v4246
        %v4321 = vpop.xlane.xlu0 %4320
        %4322 = vmax.xlane.f32.xlu0 %v4249
        %v4323 = vpop.xlane.xlu0 %4322
        %4324 = vmax.xlane.f32.xlu0 %v4254
        %v4325 = vpop.xlane.xlu0 %4324
        %4326 = vmax.xlane.f32.xlu0 %v4257
        %v4327 = vpop.xlane.xlu0 %4326
        %4328 = vmax.xlane.f32.xlu0 %v4262
        %v4329 = vpop.xlane.xlu0 %4328
        %4330 = vmax.xlane.f32.xlu0 %v4265
        %v4331 = vpop.xlane.xlu0 %4330
        %4332 = vmax.xlane.f32.xlu0 %v4270
        %v4333 = vpop.xlane.xlu0 %4332
        %4334 = vmax.xlane.f32.xlu0 %v4273
        %v4335 = vpop.xlane.xlu0 %4334
        %4336 = vmax.xlane.f32.xlu0 %v4278
        %v4337 = vpop.xlane.xlu0 %4336
        %4338 = vmax.xlane.f32.xlu0 %v4281
        %v4339 = vpop.xlane.xlu0 %4338
        %4340 = vmax.xlane.f32.xlu0 %v4286
        %v4341 = vpop.xlane.xlu0 %4340
        %4342 = vmax.xlane.f32.xlu0 %v4289
        %v4343 = vpop.xlane.xlu0 %4342
        %4344 = vmax.xlane.f32.xlu0 %v4294
        %v4345 = vpop.xlane.xlu0 %4344
        %4346 = vmax.xlane.f32.xlu0 %v4297
        %v4347 = vpop.xlane.xlu0 %4346
        %v4348 = vmax.f32 %v4300, %v4317
        %v4349 = vmax.f32 %v4301, %v4319
        %v4350 = vmax.f32 %v4302, %v4321
        %v4351 = vmax.f32 %v4303, %v4323
        %v4352 = vmax.f32 %v4304, %v4325
        %v4353 = vmax.f32 %v4305, %v4327
        %v4354 = vmax.f32 %v4306, %v4329
        %v4355 = vmax.f32 %v4307, %v4331
        %v4356 = vmax.f32 %v4308, %v4333
        %v4357 = vmax.f32 %v4309, %v4335
        %v4358 = vmax.f32 %v4310, %v4337
        %v4359 = vmax.f32 %v4311, %v4339
        %v4360 = vmax.f32 %v4312, %v4341
        %v4361 = vmax.f32 %v4313, %v4343
        %v4362 = vmax.f32 %v4314, %v4345
        %v4363 = vmax.f32 %v4315, %v4347
        %v4364 = vsub.f32 %v4300, %v4348
        %v4365 = vsub.f32 %v4301, %v4349
        %v4366 = vsub.f32 %v4302, %v4350
        %v4367 = vsub.f32 %v4303, %v4351
        %v4368 = vsub.f32 %v4304, %v4352
        %v4369 = vsub.f32 %v4305, %v4353
        %v4370 = vsub.f32 %v4306, %v4354
        %v4371 = vsub.f32 %v4307, %v4355
        %v4372 = vsub.f32 %v4308, %v4356
        %v4373 = vsub.f32 %v4309, %v4357
        %v4374 = vsub.f32 %v4310, %v4358
        %v4375 = vsub.f32 %v4311, %v4359
        %v4376 = vsub.f32 %v4312, %v4360
        %v4377 = vsub.f32 %v4313, %v4361
        %v4378 = vsub.f32 %v4314, %v4362
        %v4379 = vsub.f32 %v4315, %v4363
        %v4380 = vmul.f32 %v4364, 1.442695
        %v4381 = vpow.pop %v4380
        %v4382 = vmul.f32 %v4365, 1.442695
        %v4383 = vpow.pop %v4382
        %v4384 = vmul.f32 %v4366, 1.442695
        %v4385 = vpow.pop %v4384
        %v4386 = vmul.f32 %v4367, 1.442695
        %v4387 = vpow.pop %v4386
        %v4388 = vmul.f32 %v4368, 1.442695
        %v4389 = vpow.pop %v4388
        %v4390 = vmul.f32 %v4369, 1.442695
        %v4391 = vpow.pop %v4390
        %v4392 = vmul.f32 %v4370, 1.442695
        %v4393 = vpow.pop %v4392
        %v4394 = vmul.f32 %v4371, 1.442695
        %v4395 = vpow.pop %v4394
        %v4396 = vmul.f32 %v4372, 1.442695
        %v4397 = vpow.pop %v4396
        %v4398 = vmul.f32 %v4373, 1.442695
        %v4399 = vpow.pop %v4398
        %v4400 = vmul.f32 %v4374, 1.442695
        %v4401 = vpow.pop %v4400
        %v4402 = vmul.f32 %v4375, 1.442695
        %v4403 = vpow.pop %v4402
        %v4404 = vmul.f32 %v4376, 1.442695
        %v4405 = vpow.pop %v4404
        %v4406 = vmul.f32 %v4377, 1.442695
        %v4407 = vpow.pop %v4406
        %v4408 = vmul.f32 %v4378, 1.442695
        %v4409 = vpow.pop %v4408
        %v4410 = vmul.f32 %v4379, 1.442695
        %v4411 = vpow.pop %v4410
        %4413 = vset.pattern.permute.xlu0 0
        %4414 = vperm.xlu0 %4413, %v4348
        %v4415 = vpop.permute.xlu0 %4414
        %4418 = vset.pattern.permute.xlu0 0
        %4419 = vperm.xlu0 %4418, %v4349
        %v4420 = vpop.permute.xlu0 %4419
        %4423 = vset.pattern.permute.xlu0 0
        %4424 = vperm.xlu0 %4423, %v4350
        %v4425 = vpop.permute.xlu0 %4424
        %4428 = vset.pattern.permute.xlu0 0
        %4429 = vperm.xlu0 %4428, %v4351
        %v4430 = vpop.permute.xlu0 %4429
        %4433 = vset.pattern.permute.xlu0 0
        %4434 = vperm.xlu0 %4433, %v4352
        %v4435 = vpop.permute.xlu0 %4434
        %4438 = vset.pattern.permute.xlu0 0
        %4439 = vperm.xlu0 %4438, %v4353
        %v4440 = vpop.permute.xlu0 %4439
        %4443 = vset.pattern.permute.xlu0 0
        %4444 = vperm.xlu0 %4443, %v4354
        %v4445 = vpop.permute.xlu0 %4444
        %4448 = vset.pattern.permute.xlu0 0
        %4449 = vperm.xlu0 %4448, %v4355
        %v4450 = vpop.permute.xlu0 %4449
        %4453 = vset.pattern.permute.xlu0 0
        %4454 = vperm.xlu0 %4453, %v4356
        %v4455 = vpop.permute.xlu0 %4454
        %4458 = vset.pattern.permute.xlu0 0
        %4459 = vperm.xlu0 %4458, %v4357
        %v4460 = vpop.permute.xlu0 %4459
        %4463 = vset.pattern.permute.xlu0 0
        %4464 = vperm.xlu0 %4463, %v4358
        %v4465 = vpop.permute.xlu0 %4464
        %4468 = vset.pattern.permute.xlu0 0
        %4469 = vperm.xlu0 %4468, %v4359
        %v4470 = vpop.permute.xlu0 %4469
        %4473 = vset.pattern.permute.xlu0 0
        %4474 = vperm.xlu0 %4473, %v4360
        %v4475 = vpop.permute.xlu0 %4474
        %4478 = vset.pattern.permute.xlu0 0
        %4479 = vperm.xlu0 %4478, %v4361
        %v4480 = vpop.permute.xlu0 %4479
        %4483 = vset.pattern.permute.xlu0 0
        %4484 = vperm.xlu0 %4483, %v4362
        %v4485 = vpop.permute.xlu0 %4484
        %4488 = vset.pattern.permute.xlu0 0
        %4489 = vperm.xlu0 %4488, %v4363
        %v4490 = vpop.permute.xlu0 %4489
        %v4492 = vsub.f32 %v4238, %v4415
        %v4493 = vsub.f32 %v4241, %v4420
        %v4494 = vsub.f32 %v4246, %v4425
        %v4495 = vsub.f32 %v4249, %v4430
        %v4496 = vsub.f32 %v4254, %v4435
        %v4497 = vsub.f32 %v4257, %v4440
        %v4498 = vsub.f32 %v4262, %v4445
        %v4499 = vsub.f32 %v4265, %v4450
        %v4500 = vsub.f32 %v4270, %v4455
        %v4501 = vsub.f32 %v4273, %v4460
        %v4502 = vsub.f32 %v4278, %v4465
        %v4503 = vsub.f32 %v4281, %v4470
        %v4504 = vsub.f32 %v4286, %v4475
        %v4505 = vsub.f32 %v4289, %v4480
        %v4506 = vsub.f32 %v4294, %v4485
        %v4507 = vsub.f32 %v4297, %v4490
        %v4508 = vmul.f32 %v4492, 1.442695
        %v4509 = vpow.pop %v4508
        %v4510 = vmul.f32 %v4493, 1.442695
        %v4511 = vpow.pop %v4510
        %v4512 = vmul.f32 %v4494, 1.442695
        %v4513 = vpow.pop %v4512
        %v4514 = vmul.f32 %v4495, 1.442695
        %v4515 = vpow.pop %v4514
        %v4516 = vmul.f32 %v4496, 1.442695
        %v4517 = vpow.pop %v4516
        %v4518 = vmul.f32 %v4497, 1.442695
        %v4519 = vpow.pop %v4518
        %v4520 = vmul.f32 %v4498, 1.442695
        %v4521 = vpow.pop %v4520
        %v4522 = vmul.f32 %v4499, 1.442695
        %v4523 = vpow.pop %v4522
        %v4524 = vmul.f32 %v4500, 1.442695
        %v4525 = vpow.pop %v4524
        %v4526 = vmul.f32 %v4501, 1.442695
        %v4527 = vpow.pop %v4526
        %v4528 = vmul.f32 %v4502, 1.442695
        %v4529 = vpow.pop %v4528
        %v4530 = vmul.f32 %v4503, 1.442695
        %v4531 = vpow.pop %v4530
        %v4532 = vmul.f32 %v4504, 1.442695
        %v4533 = vpow.pop %v4532
        %v4534 = vmul.f32 %v4505, 1.442695
        %v4535 = vpow.pop %v4534
        %v4536 = vmul.f32 %v4506, 1.442695
        %v4537 = vpow.pop %v4536
        %v4538 = vmul.f32 %v4507, 1.442695
        %v4539 = vpow.pop %v4538
        %v4540 = vld [vmem:[#allocation9] sm:$0xff]
        %v4541 = vld [vmem:[#allocation9 + $0x8] sm:$0xff]
        %v4542 = vld [vmem:[#allocation9 + $0x10] sm:$0xff]
        %v4543 = vld [vmem:[#allocation9 + $0x18] sm:$0xff]
        %v4544 = vld [vmem:[#allocation9 + $0x20] sm:$0xff]
        %v4545 = vld [vmem:[#allocation9 + $0x28] sm:$0xff]
        %v4546 = vld [vmem:[#allocation9 + $0x30] sm:$0xff]
        %v4547 = vld [vmem:[#allocation9 + $0x38] sm:$0xff]
        %v4548 = vld [vmem:[#allocation9 + $0x40] sm:$0xff]
        %v4549 = vld [vmem:[#allocation9 + $0x48] sm:$0xff]
        %v4550 = vld [vmem:[#allocation9 + $0x50] sm:$0xff]
        %v4551 = vld [vmem:[#allocation9 + $0x58] sm:$0xff]
        %v4552 = vld [vmem:[#allocation9 + $0x60] sm:$0xff]
        %v4553 = vld [vmem:[#allocation9 + $0x68] sm:$0xff]
        %v4554 = vld [vmem:[#allocation9 + $0x70] sm:$0xff]
        %v4555 = vld [vmem:[#allocation9 + $0x78] sm:$0xff]
        %v4556 = vmul.f32 %v4381, %v4540
        %v4557 = vmul.f32 %v4383, %v4541
        %v4558 = vmul.f32 %v4385, %v4542
        %v4559 = vmul.f32 %v4387, %v4543
        %v4560 = vmul.f32 %v4389, %v4544
        %v4561 = vmul.f32 %v4391, %v4545
        %v4562 = vmul.f32 %v4393, %v4546
        %v4563 = vmul.f32 %v4395, %v4547
        %v4564 = vmul.f32 %v4397, %v4548
        %v4565 = vmul.f32 %v4399, %v4549
        %v4566 = vmul.f32 %v4401, %v4550
        %v4567 = vmul.f32 %v4403, %v4551
        %v4568 = vmul.f32 %v4405, %v4552
        %v4569 = vmul.f32 %v4407, %v4553
        %v4570 = vmul.f32 %v4409, %v4554
        %v4571 = vmul.f32 %v4411, %v4555
        %4572 = vadd.xlane.f32.xlu0 %v4509
        %v4573 = vpop.xlane.xlu0 %4572
        %4574 = vadd.xlane.f32.xlu0 %v4511
        %v4575 = vpop.xlane.xlu0 %4574
        %4576 = vadd.xlane.f32.xlu0 %v4513
        %v4577 = vpop.xlane.xlu0 %4576
        %4578 = vadd.xlane.f32.xlu0 %v4515
        %v4579 = vpop.xlane.xlu0 %4578
        %4580 = vadd.xlane.f32.xlu0 %v4517
        %v4581 = vpop.xlane.xlu0 %4580
        %4582 = vadd.xlane.f32.xlu0 %v4519
        %v4583 = vpop.xlane.xlu0 %4582
        %4584 = vadd.xlane.f32.xlu0 %v4521
        %v4585 = vpop.xlane.xlu0 %4584
        %4586 = vadd.xlane.f32.xlu0 %v4523
        %v4587 = vpop.xlane.xlu0 %4586
        %4588 = vadd.xlane.f32.xlu0 %v4525
        %v4589 = vpop.xlane.xlu0 %4588
        %4590 = vadd.xlane.f32.xlu0 %v4527
        %v4591 = vpop.xlane.xlu0 %4590
        %4592 = vadd.xlane.f32.xlu0 %v4529
        %v4593 = vpop.xlane.xlu0 %4592
        %4594 = vadd.xlane.f32.xlu0 %v4531
        %v4595 = vpop.xlane.xlu0 %4594
        %4596 = vadd.xlane.f32.xlu0 %v4533
        %v4597 = vpop.xlane.xlu0 %4596
        %4598 = vadd.xlane.f32.xlu0 %v4535
        %v4599 = vpop.xlane.xlu0 %4598
        %4600 = vadd.xlane.f32.xlu0 %v4537
        %v4601 = vpop.xlane.xlu0 %4600
        %4602 = vadd.xlane.f32.xlu0 %v4539
        %v4603 = vpop.xlane.xlu0 %4602
        %v4604 = vadd.f32 %v4556, %v4573
        %v4605 = vadd.f32 %v4557, %v4575
        %v4606 = vadd.f32 %v4558, %v4577
        %v4607 = vadd.f32 %v4559, %v4579
        %v4608 = vadd.f32 %v4560, %v4581
        %v4609 = vadd.f32 %v4561, %v4583
        %v4610 = vadd.f32 %v4562, %v4585
        %v4611 = vadd.f32 %v4563, %v4587
        %v4612 = vadd.f32 %v4564, %v4589
        %v4613 = vadd.f32 %v4565, %v4591
        %v4614 = vadd.f32 %v4566, %v4593
        %v4615 = vadd.f32 %v4567, %v4595
        %v4616 = vadd.f32 %v4568, %v4597
        %v4617 = vadd.f32 %v4569, %v4599
        %v4618 = vadd.f32 %v4570, %v4601
        %v4619 = vadd.f32 %v4571, %v4603
        %4620 = vst.msk [vmem:[#allocation9] sm:$0xff] %vm3913, %v4604
        %4621 = vst.msk [vmem:[#allocation9 + $0x8] sm:$0xff] %vm3913, %v4605
        %4622 = vst.msk [vmem:[#allocation9 + $0x10] sm:$0xff] %vm3913, %v4606
        %4623 = vst.msk [vmem:[#allocation9 + $0x18] sm:$0xff] %vm3913, %v4607
        %4624 = vst.msk [vmem:[#allocation9 + $0x20] sm:$0xff] %vm3913, %v4608
        %4625 = vst.msk [vmem:[#allocation9 + $0x28] sm:$0xff] %vm3913, %v4609
        %4626 = vst.msk [vmem:[#allocation9 + $0x30] sm:$0xff] %vm3913, %v4610
        %4627 = vst.msk [vmem:[#allocation9 + $0x38] sm:$0xff] %vm3913, %v4611
        %4628 = vst.msk [vmem:[#allocation9 + $0x40] sm:$0xff] %vm3913, %v4612
        %4629 = vst.msk [vmem:[#allocation9 + $0x48] sm:$0xff] %vm3913, %v4613
        %4630 = vst.msk [vmem:[#allocation9 + $0x50] sm:$0xff] %vm3913, %v4614
        %4631 = vst.msk [vmem:[#allocation9 + $0x58] sm:$0xff] %vm3913, %v4615
        %4632 = vst.msk [vmem:[#allocation9 + $0x60] sm:$0xff] %vm3913, %v4616
        %4633 = vst.msk [vmem:[#allocation9 + $0x68] sm:$0xff] %vm3913, %v4617
        %4634 = vst.msk [vmem:[#allocation9 + $0x70] sm:$0xff] %vm3913, %v4618
        %4635 = vst.msk [vmem:[#allocation9 + $0x78] sm:$0xff] %vm3913, %v4619
        %v4636 = vpack.c.bf16 %v4511, %v4509
        %v4637 = vpack.c.bf16 %v4515, %v4513
        %v4638 = vpack.c.bf16 %v4519, %v4517
        %v4639 = vpack.c.bf16 %v4523, %v4521
        %v4640 = vpack.c.bf16 %v4527, %v4525
        %v4641 = vpack.c.bf16 %v4531, %v4529
        %v4642 = vpack.c.bf16 %v4535, %v4533
        %v4643 = vpack.c.bf16 %v4539, %v4537
        %4644 = vmatprep.subr.bf16.mxu0 0
        %4645 = vmatpush1.bf16.xpose.msra.mxu0 %v3480
        %4646 = vmatprep.subr.bf16.mxu0 0
        %4647 = vmatpush1.bf16.xpose.msra.mxu0 %v3481
        %4648 = vmatprep.subr.bf16.mxu0 0
        %4649 = vmatpush1.bf16.xpose.msra.mxu0 %v3482
        %4650 = vmatprep.subr.bf16.mxu0 0
        %4651 = vmatpush1.bf16.xpose.msra.mxu0 %v3483
        %4652 = vmatprep.subr.bf16.mxu0 0
        %4653 = vmatpush1.bf16.xpose.msra.mxu0 %v3484
        %4654 = vmatprep.subr.bf16.mxu0 0
        %4655 = vmatpush1.bf16.xpose.msra.mxu0 %v3485
        %4656 = vmatprep.subr.bf16.mxu0 0
        %4657 = vmatpush1.bf16.xpose.msra.mxu0 %v3486
        %4658 = vmatprep.subr.bf16.mxu0 0
        %4659 = vmatpush1.bf16.xpose.msra.mxu0 %v3487
        %4660 = vmatprep.subr.bf16.mxu0 0
        %4661 = vmatpush1.bf16.xpose.msra.mxu0 0
        %4662 = vmatprep.subr.bf16.mxu0 0
        %4663 = vmatpush1.bf16.xpose.msra.mxu0 0
        %4664 = vmatprep.subr.bf16.mxu0 0
        %4665 = vmatpush1.bf16.xpose.msra.mxu0 0
        %4666 = vmatprep.subr.bf16.mxu0 0
        %4667 = vmatpush1.bf16.xpose.msra.mxu0 0
        %4668 = vmatprep.subr.bf16.mxu0 0
        %4669 = vmatpush1.bf16.xpose.msra.mxu0 0
        %4670 = vmatprep.subr.bf16.mxu0 0
        %4671 = vmatpush1.bf16.xpose.msra.mxu0 0
        %4672 = vmatprep.subr.bf16.mxu0 0
        %4673 = vmatpush1.bf16.xpose.msra.mxu0 0
        %4674 = vmatprep.subr.bf16.mxu0 0
        %4675 = vmatpush1.bf16.xpose.msra.mxu0 0
        %4676 = vmatprep.mubr.bf16.mxu0 0
        %4677 = vmatmul.mubr.bf16.gmra.mrb[0].mxu0 %v4636
        %v4678 = vpop.f32.mrb[0].mxu0
        %v4679 = vadd.f32 0.0, %v4678
        %v4680 = vpop.f32.mrb[0].mxu0
        %v4681 = vpop.f32.mrb[0].mxu0
        %v4682 = vadd.f32 0.0, %v4681
        %v4683 = vpop.f32.mrb[0].mxu0
        %4684 = vmatprep.mubr.bf16.mxu0 0
        %4685 = vmatmul.mubr.bf16.gmra.mrb[0].mxu0 %v4637
        %v4686 = vpop.f32.mrb[0].mxu0
        %v4687 = vadd.f32 0.0, %v4686
        %v4688 = vpop.f32.mrb[0].mxu0
        %v4689 = vpop.f32.mrb[0].mxu0
        %v4690 = vadd.f32 0.0, %v4689
        %v4691 = vpop.f32.mrb[0].mxu0
        %4692 = vmatprep.mubr.bf16.mxu0 0
        %4693 = vmatmul.mubr.bf16.gmra.mrb[0].mxu0 %v4638
        %v4694 = vpop.f32.mrb[0].mxu0
        %v4695 = vadd.f32 0.0, %v4694
        %v4696 = vpop.f32.mrb[0].mxu0
        %v4697 = vpop.f32.mrb[0].mxu0
        %v4698 = vadd.f32 0.0, %v4697
        %v4699 = vpop.f32.mrb[0].mxu0
        %4700 = vmatprep.mubr.bf16.mxu0 0
        %4701 = vmatmul.mubr.bf16.gmra.mrb[0].mxu0 %v4639
        %v4702 = vpop.f32.mrb[0].mxu0
        %v4703 = vadd.f32 0.0, %v4702
        %v4704 = vpop.f32.mrb[0].mxu0
        %v4705 = vpop.f32.mrb[0].mxu0
        %v4706 = vadd.f32 0.0, %v4705
        %v4707 = vpop.f32.mrb[0].mxu0
        %4708 = vmatprep.mubr.bf16.mxu0 0
        %4709 = vmatmul.mubr.bf16.gmra.mrb[0].mxu0 %v4640
        %v4710 = vpop.f32.mrb[0].mxu0
        %v4711 = vadd.f32 0.0, %v4710
        %v4712 = vpop.f32.mrb[0].mxu0
        %v4713 = vpop.f32.mrb[0].mxu0
        %v4714 = vadd.f32 0.0, %v4713
        %v4715 = vpop.f32.mrb[0].mxu0
        %4716 = vmatprep.mubr.bf16.mxu0 0
        %4717 = vmatmul.mubr.bf16.gmra.mrb[0].mxu0 %v4641
        %v4718 = vpop.f32.mrb[0].mxu0
        %v4719 = vadd.f32 0.0, %v4718
        %v4720 = vpop.f32.mrb[0].mxu0
        %v4721 = vpop.f32.mrb[0].mxu0
        %v4722 = vadd.f32 0.0, %v4721
        %v4723 = vpop.f32.mrb[0].mxu0
        %4724 = vmatprep.mubr.bf16.mxu0 0
        %4725 = vmatmul.mubr.bf16.gmra.mrb[0].mxu0 %v4642
        %v4726 = vpop.f32.mrb[0].mxu0
        %v4727 = vadd.f32 0.0, %v4726
        %v4728 = vpop.f32.mrb[0].mxu0
        %v4729 = vpop.f32.mrb[0].mxu0
        %v4730 = vadd.f32 0.0, %v4729
        %v4731 = vpop.f32.mrb[0].mxu0
        %4732 = vmatprep.mubr.bf16.mxu0 0
        %4733 = vmatmul.mubr.bf16.gmra.mrb[0].mxu0 %v4643
        %v4734 = vpop.f32.mrb[0].mxu0
        %v4735 = vadd.f32 0.0, %v4734
        %v4736 = vpop.f32.mrb[0].mxu0
        %v4737 = vpop.f32.mrb[0].mxu0
        %v4738 = vadd.f32 0.0, %v4737
        %v4739 = vpop.f32.mrb[0].mxu0
        %4740 = vdwg.mxu0
        %v4741 = vld [vmem:[#allocation11] sm:$0xff]
        %v4742 = vld [vmem:[#allocation11 + $0x8] sm:$0xff]
        %v4743 = vld [vmem:[#allocation11 + $0x10] sm:$0xff]
        %v4744 = vld [vmem:[#allocation11 + $0x18] sm:$0xff]
        %v4745 = vld [vmem:[#allocation11 + $0x20] sm:$0xff]
        %v4746 = vld [vmem:[#allocation11 + $0x28] sm:$0xff]
        %v4747 = vld [vmem:[#allocation11 + $0x30] sm:$0xff]
        %v4748 = vld [vmem:[#allocation11 + $0x38] sm:$0xff]
        %v4749 = vld [vmem:[#allocation11 + $0x40] sm:$0xff]
        %v4750 = vld [vmem:[#allocation11 + $0x48] sm:$0xff]
        %v4751 = vld [vmem:[#allocation11 + $0x50] sm:$0xff]
        %v4752 = vld [vmem:[#allocation11 + $0x58] sm:$0xff]
        %v4753 = vld [vmem:[#allocation11 + $0x60] sm:$0xff]
        %v4754 = vld [vmem:[#allocation11 + $0x68] sm:$0xff]
        %v4755 = vld [vmem:[#allocation11 + $0x70] sm:$0xff]
        %v4756 = vld [vmem:[#allocation11 + $0x78] sm:$0xff]
        %4758 = vset.pattern.permute.xlu0 0
        %4759 = vperm.xlu0 %4758, %v4381
        %v4760 = vpop.permute.xlu0 %4759
        %4763 = vset.pattern.permute.xlu0 0
        %4764 = vperm.xlu0 %4763, %v4383
        %v4765 = vpop.permute.xlu0 %4764
        %4768 = vset.pattern.permute.xlu0 0
        %4769 = vperm.xlu0 %4768, %v4385
        %v4770 = vpop.permute.xlu0 %4769
        %4773 = vset.pattern.permute.xlu0 0
        %4774 = vperm.xlu0 %4773, %v4387
        %v4775 = vpop.permute.xlu0 %4774
        %4778 = vset.pattern.permute.xlu0 0
        %4779 = vperm.xlu0 %4778, %v4389
        %v4780 = vpop.permute.xlu0 %4779
        %4783 = vset.pattern.permute.xlu0 0
        %4784 = vperm.xlu0 %4783, %v4391
        %v4785 = vpop.permute.xlu0 %4784
        %4788 = vset.pattern.permute.xlu0 0
        %4789 = vperm.xlu0 %4788, %v4393
        %v4790 = vpop.permute.xlu0 %4789
        %4793 = vset.pattern.permute.xlu0 0
        %4794 = vperm.xlu0 %4793, %v4395
        %v4795 = vpop.permute.xlu0 %4794
        %4798 = vset.pattern.permute.xlu0 0
        %4799 = vperm.xlu0 %4798, %v4397
        %v4800 = vpop.permute.xlu0 %4799
        %4803 = vset.pattern.permute.xlu0 0
        %4804 = vperm.xlu0 %4803, %v4399
        %v4805 = vpop.permute.xlu0 %4804
        %4808 = vset.pattern.permute.xlu0 0
        %4809 = vperm.xlu0 %4808, %v4401
        %v4810 = vpop.permute.xlu0 %4809
        %4813 = vset.pattern.permute.xlu0 0
        %4814 = vperm.xlu0 %4813, %v4403
        %v4815 = vpop.permute.xlu0 %4814
        %4818 = vset.pattern.permute.xlu0 0
        %4819 = vperm.xlu0 %4818, %v4405
        %v4820 = vpop.permute.xlu0 %4819
        %4823 = vset.pattern.permute.xlu0 0
        %4824 = vperm.xlu0 %4823, %v4407
        %v4825 = vpop.permute.xlu0 %4824
        %4828 = vset.pattern.permute.xlu0 0
        %4829 = vperm.xlu0 %4828, %v4409
        %v4830 = vpop.permute.xlu0 %4829
        %4833 = vset.pattern.permute.xlu0 0
        %4834 = vperm.xlu0 %4833, %v4411
        %v4835 = vpop.permute.xlu0 %4834
        %v4837 = vmul.f32 %v4760, %v4741
        %v4838 = vmul.f32 %v4765, %v4742
        %v4839 = vmul.f32 %v4770, %v4743
        %v4840 = vmul.f32 %v4775, %v4744
        %v4841 = vmul.f32 %v4780, %v4745
        %v4842 = vmul.f32 %v4785, %v4746
        %v4843 = vmul.f32 %v4790, %v4747
        %v4844 = vmul.f32 %v4795, %v4748
        %v4845 = vmul.f32 %v4800, %v4749
        %v4846 = vmul.f32 %v4805, %v4750
        %v4847 = vmul.f32 %v4810, %v4751
        %v4848 = vmul.f32 %v4815, %v4752
        %v4849 = vmul.f32 %v4820, %v4753
        %v4850 = vmul.f32 %v4825, %v4754
        %v4851 = vmul.f32 %v4830, %v4755
        %v4852 = vmul.f32 %v4835, %v4756
        %v4853 = vadd.f32 %v4837, %v4679
        %v4854 = vadd.f32 %v4838, %v4682
        %v4855 = vadd.f32 %v4839, %v4687
        %v4856 = vadd.f32 %v4840, %v4690
        %v4857 = vadd.f32 %v4841, %v4695
        %v4858 = vadd.f32 %v4842, %v4698
        %v4859 = vadd.f32 %v4843, %v4703
        %v4860 = vadd.f32 %v4844, %v4706
        %v4861 = vadd.f32 %v4845, %v4711
        %v4862 = vadd.f32 %v4846, %v4714
        %v4863 = vadd.f32 %v4847, %v4719
        %v4864 = vadd.f32 %v4848, %v4722
        %v4865 = vadd.f32 %v4849, %v4727
        %v4866 = vadd.f32 %v4850, %v4730
        %v4867 = vadd.f32 %v4851, %v4735
        %v4868 = vadd.f32 %v4852, %v4738
        %4869 = vst [vmem:[#allocation11] sm:$0xff] %v4853
        %4870 = vst [vmem:[#allocation11 + $0x8] sm:$0xff] %v4854
        %4871 = vst [vmem:[#allocation11 + $0x10] sm:$0xff] %v4855
        %4872 = vst [vmem:[#allocation11 + $0x18] sm:$0xff] %v4856
        %4873 = vst [vmem:[#allocation11 + $0x20] sm:$0xff] %v4857
        %4874 = vst [vmem:[#allocation11 + $0x28] sm:$0xff] %v4858
        %4875 = vst [vmem:[#allocation11 + $0x30] sm:$0xff] %v4859
        %4876 = vst [vmem:[#allocation11 + $0x38] sm:$0xff] %v4860
        %4877 = vst [vmem:[#allocation11 + $0x40] sm:$0xff] %v4861
        %4878 = vst [vmem:[#allocation11 + $0x48] sm:$0xff] %v4862
        %4879 = vst [vmem:[#allocation11 + $0x50] sm:$0xff] %v4863
        %4880 = vst [vmem:[#allocation11 + $0x58] sm:$0xff] %v4864
        %4881 = vst [vmem:[#allocation11 + $0x60] sm:$0xff] %v4865
        %4882 = vst [vmem:[#allocation11 + $0x68] sm:$0xff] %v4866
        %4883 = vst [vmem:[#allocation11 + $0x70] sm:$0xff] %v4867
        %4884 = vst [vmem:[#allocation11 + $0x78] sm:$0xff] %v4868
        %4885 = vst.msk [vmem:[#allocation8] sm:$0xff] %vm3913, %v4348
        %4886 = vst.msk [vmem:[#allocation8 + $0x8] sm:$0xff] %vm3913, %v4349
        %4887 = vst.msk [vmem:[#allocation8 + $0x10] sm:$0xff] %vm3913, %v4350
        %4888 = vst.msk [vmem:[#allocation8 + $0x18] sm:$0xff] %vm3913, %v4351
        %4889 = vst.msk [vmem:[#allocation8 + $0x20] sm:$0xff] %vm3913, %v4352
        %4890 = vst.msk [vmem:[#allocation8 + $0x28] sm:$0xff] %vm3913, %v4353
        %4891 = vst.msk [vmem:[#allocation8 + $0x30] sm:$0xff] %vm3913, %v4354
        %4892 = vst.msk [vmem:[#allocation8 + $0x38] sm:$0xff] %vm3913, %v4355
        %4893 = vst.msk [vmem:[#allocation8 + $0x40] sm:$0xff] %vm3913, %v4356
        %4894 = vst.msk [vmem:[#allocation8 + $0x48] sm:$0xff] %vm3913, %v4357
        %4895 = vst.msk [vmem:[#allocation8 + $0x50] sm:$0xff] %vm3913, %v4358
        %4896 = vst.msk [vmem:[#allocation8 + $0x58] sm:$0xff] %vm3913, %v4359
        %4897 = vst.msk [vmem:[#allocation8 + $0x60] sm:$0xff] %vm3913, %v4360
        %4898 = vst.msk [vmem:[#allocation8 + $0x68] sm:$0xff] %vm3913, %v4361
        %4899 = vst.msk [vmem:[#allocation8 + $0x70] sm:$0xff] %vm3913, %v4362
        %4900 = vst.msk [vmem:[#allocation8 + $0x78] sm:$0xff] %vm3913, %v4363
        %p4901 = scmp.eq.s32.totalorder %s46, 1
        // Predicated region
        $region113: #{tpu_custom_call.1} parent=87 // pred_check
          %p4902 = pneg %p4901
        $region114: #{tpu_custom_call.1} parent=87 // pred_check_branch
          %4904 = sbr.rel (%p4902) target = $region116
        $region115: #{tpu_custom_call.1} parent=87 // pred_region
          %v4905 = vld [vmem:[#allocation7] sm:$0xff]
          %v4906 = vld [vmem:[#allocation7 + $0x8] sm:$0xff]
          %v4907 = vld [vmem:[#allocation7 + $0x10] sm:$0xff]
          %v4908 = vld [vmem:[#allocation7 + $0x18] sm:$0xff]
          %v4909 = vld [vmem:[#allocation7 + $0x20] sm:$0xff]
          %v4910 = vld [vmem:[#allocation7 + $0x28] sm:$0xff]
          %v4911 = vld [vmem:[#allocation7 + $0x30] sm:$0xff]
          %v4912 = vld [vmem:[#allocation7 + $0x38] sm:$0xff]
          %v4913 = vld [vmem:[#allocation7 + $0x40] sm:$0xff]
          %v4914 = vld [vmem:[#allocation7 + $0x48] sm:$0xff]
          %v4915 = vld [vmem:[#allocation7 + $0x50] sm:$0xff]
          %v4916 = vld [vmem:[#allocation7 + $0x58] sm:$0xff]
          %v4917 = vld [vmem:[#allocation7 + $0x60] sm:$0xff]
          %v4918 = vld [vmem:[#allocation7 + $0x68] sm:$0xff]
          %v4919 = vld [vmem:[#allocation7 + $0x70] sm:$0xff]
          %v4920 = vld [vmem:[#allocation7 + $0x78] sm:$0xff]
          %v4921 = vrcp.pop %v4905
          %v4922 = vrcp.pop %v4906
          %v4923 = vrcp.pop %v4907
          %v4924 = vrcp.pop %v4908
          %v4925 = vrcp.pop %v4909
          %v4926 = vrcp.pop %v4910
          %v4927 = vrcp.pop %v4911
          %v4928 = vrcp.pop %v4912
          %v4929 = vrcp.pop %v4913
          %v4930 = vrcp.pop %v4914
          %v4931 = vrcp.pop %v4915
          %v4932 = vrcp.pop %v4916
          %v4933 = vrcp.pop %v4917
          %v4934 = vrcp.pop %v4918
          %v4935 = vrcp.pop %v4919
          %v4936 = vrcp.pop %v4920
          %s4937 = sld [smem:[#allocation21]]
          %v4938 = vstv %s4937
          %v4939 = vmul.f32 %v4921, %v4938
          %v4940 = vmul.f32 %v4922, %v4938
          %v4941 = vmul.f32 %v4923, %v4938
          %v4942 = vmul.f32 %v4924, %v4938
          %v4943 = vmul.f32 %v4925, %v4938
          %v4944 = vmul.f32 %v4926, %v4938
          %v4945 = vmul.f32 %v4927, %v4938
          %v4946 = vmul.f32 %v4928, %v4938
          %v4947 = vmul.f32 %v4929, %v4938
          %v4948 = vmul.f32 %v4930, %v4938
          %v4949 = vmul.f32 %v4931, %v4938
          %v4950 = vmul.f32 %v4932, %v4938
          %v4951 = vmul.f32 %v4933, %v4938
          %v4952 = vmul.f32 %v4934, %v4938
          %v4953 = vmul.f32 %v4935, %v4938
          %v4954 = vmul.f32 %v4936, %v4938
          %v4955 = vld [vmem:[#allocation9] sm:$0xff]
          %v4956 = vld [vmem:[#allocation9 + $0x8] sm:$0xff]
          %v4957 = vld [vmem:[#allocation9 + $0x10] sm:$0xff]
          %v4958 = vld [vmem:[#allocation9 + $0x18] sm:$0xff]
          %v4959 = vld [vmem:[#allocation9 + $0x20] sm:$0xff]
          %v4960 = vld [vmem:[#allocation9 + $0x28] sm:$0xff]
          %v4961 = vld [vmem:[#allocation9 + $0x30] sm:$0xff]
          %v4962 = vld [vmem:[#allocation9 + $0x38] sm:$0xff]
          %v4963 = vld [vmem:[#allocation9 + $0x40] sm:$0xff]
          %v4964 = vld [vmem:[#allocation9 + $0x48] sm:$0xff]
          %v4965 = vld [vmem:[#allocation9 + $0x50] sm:$0xff]
          %v4966 = vld [vmem:[#allocation9 + $0x58] sm:$0xff]
          %v4967 = vld [vmem:[#allocation9 + $0x60] sm:$0xff]
          %v4968 = vld [vmem:[#allocation9 + $0x68] sm:$0xff]
          %v4969 = vld [vmem:[#allocation9 + $0x70] sm:$0xff]
          %v4970 = vld [vmem:[#allocation9 + $0x78] sm:$0xff]
          %v4971 = vrcp.pop %v4955
          %v4972 = vrcp.pop %v4956
          %v4973 = vrcp.pop %v4957
          %v4974 = vrcp.pop %v4958
          %v4975 = vrcp.pop %v4959
          %v4976 = vrcp.pop %v4960
          %v4977 = vrcp.pop %v4961
          %v4978 = vrcp.pop %v4962
          %v4979 = vrcp.pop %v4963
          %v4980 = vrcp.pop %v4964
          %v4981 = vrcp.pop %v4965
          %v4982 = vrcp.pop %v4966
          %v4983 = vrcp.pop %v4967
          %v4984 = vrcp.pop %v4968
          %v4985 = vrcp.pop %v4969
          %v4986 = vrcp.pop %v4970
          %s4987 = sld [smem:[#allocation21 + $0x1]]
          %v4988 = vstv %s4987
          %v4989 = vmul.f32 %v4971, %v4988
          %v4990 = vmul.f32 %v4972, %v4988
          %v4991 = vmul.f32 %v4973, %v4988
          %v4992 = vmul.f32 %v4974, %v4988
          %v4993 = vmul.f32 %v4975, %v4988
          %v4994 = vmul.f32 %v4976, %v4988
          %v4995 = vmul.f32 %v4977, %v4988
          %v4996 = vmul.f32 %v4978, %v4988
          %v4997 = vmul.f32 %v4979, %v4988
          %v4998 = vmul.f32 %v4980, %v4988
          %v4999 = vmul.f32 %v4981, %v4988
          %v5000 = vmul.f32 %v4982, %v4988
          %v5001 = vmul.f32 %v4983, %v4988
          %v5002 = vmul.f32 %v4984, %v4988
          %v5003 = vmul.f32 %v4985, %v4988
          %v5004 = vmul.f32 %v4986, %v4988
          %v5005 = vld [vmem:[#allocation10] sm:$0xff]
          %v5006 = vld [vmem:[#allocation10 + $0x8] sm:$0xff]
          %v5007 = vld [vmem:[#allocation10 + $0x10] sm:$0xff]
          %v5008 = vld [vmem:[#allocation10 + $0x18] sm:$0xff]
          %v5009 = vld [vmem:[#allocation10 + $0x20] sm:$0xff]
          %v5010 = vld [vmem:[#allocation10 + $0x28] sm:$0xff]
          %v5011 = vld [vmem:[#allocation10 + $0x30] sm:$0xff]
          %v5012 = vld [vmem:[#allocation10 + $0x38] sm:$0xff]
          %v5013 = vld [vmem:[#allocation10 + $0x40] sm:$0xff]
          %v5014 = vld [vmem:[#allocation10 + $0x48] sm:$0xff]
          %v5015 = vld [vmem:[#allocation10 + $0x50] sm:$0xff]
          %v5016 = vld [vmem:[#allocation10 + $0x58] sm:$0xff]
          %v5017 = vld [vmem:[#allocation10 + $0x60] sm:$0xff]
          %v5018 = vld [vmem:[#allocation10 + $0x68] sm:$0xff]
          %v5019 = vld [vmem:[#allocation10 + $0x70] sm:$0xff]
          %v5020 = vld [vmem:[#allocation10 + $0x78] sm:$0xff]
          %5022 = vset.pattern.permute.xlu0 0
          %5023 = vperm.xlu0 %5022, %v4939
          %v5024 = vpop.permute.xlu0 %5023
          %5027 = vset.pattern.permute.xlu0 0
          %5028 = vperm.xlu0 %5027, %v4940
          %v5029 = vpop.permute.xlu0 %5028
          %5032 = vset.pattern.permute.xlu0 0
          %5033 = vperm.xlu0 %5032, %v4941
          %v5034 = vpop.permute.xlu0 %5033
          %5037 = vset.pattern.permute.xlu0 0
          %5038 = vperm.xlu0 %5037, %v4942
          %v5039 = vpop.permute.xlu0 %5038
          %5042 = vset.pattern.permute.xlu0 0
          %5043 = vperm.xlu0 %5042, %v4943
          %v5044 = vpop.permute.xlu0 %5043
          %5047 = vset.pattern.permute.xlu0 0
          %5048 = vperm.xlu0 %5047, %v4944
          %v5049 = vpop.permute.xlu0 %5048
          %5052 = vset.pattern.permute.xlu0 0
          %5053 = vperm.xlu0 %5052, %v4945
          %v5054 = vpop.permute.xlu0 %5053
          %5057 = vset.pattern.permute.xlu0 0
          %5058 = vperm.xlu0 %5057, %v4946
          %v5059 = vpop.permute.xlu0 %5058
          %5062 = vset.pattern.permute.xlu0 0
          %5063 = vperm.xlu0 %5062, %v4947
          %v5064 = vpop.permute.xlu0 %5063
          %5067 = vset.pattern.permute.xlu0 0
          %5068 = vperm.xlu0 %5067, %v4948
          %v5069 = vpop.permute.xlu0 %5068
          %5072 = vset.pattern.permute.xlu0 0
          %5073 = vperm.xlu0 %5072, %v4949
          %v5074 = vpop.permute.xlu0 %5073
          %5077 = vset.pattern.permute.xlu0 0
          %5078 = vperm.xlu0 %5077, %v4950
          %v5079 = vpop.permute.xlu0 %5078
          %5082 = vset.pattern.permute.xlu0 0
          %5083 = vperm.xlu0 %5082, %v4951
          %v5084 = vpop.permute.xlu0 %5083
          %5087 = vset.pattern.permute.xlu0 0
          %5088 = vperm.xlu0 %5087, %v4952
          %v5089 = vpop.permute.xlu0 %5088
          %5092 = vset.pattern.permute.xlu0 0
          %5093 = vperm.xlu0 %5092, %v4953
          %v5094 = vpop.permute.xlu0 %5093
          %5097 = vset.pattern.permute.xlu0 0
          %5098 = vperm.xlu0 %5097, %v4954
          %v5099 = vpop.permute.xlu0 %5098
          %v5101 = vmul.f32 %v5005, %v5024
          %v5102 = vmul.f32 %v5006, %v5029
          %v5103 = vmul.f32 %v5007, %v5034
          %v5104 = vmul.f32 %v5008, %v5039
          %v5105 = vmul.f32 %v5009, %v5044
          %v5106 = vmul.f32 %v5010, %v5049
          %v5107 = vmul.f32 %v5011, %v5054
          %v5108 = vmul.f32 %v5012, %v5059
          %v5109 = vmul.f32 %v5013, %v5064
          %v5110 = vmul.f32 %v5014, %v5069
          %v5111 = vmul.f32 %v5015, %v5074
          %v5112 = vmul.f32 %v5016, %v5079
          %v5113 = vmul.f32 %v5017, %v5084
          %v5114 = vmul.f32 %v5018, %v5089
          %v5115 = vmul.f32 %v5019, %v5094
          %v5116 = vmul.f32 %v5020, %v5099
          %v5117 = vld [vmem:[#allocation11] sm:$0xff]
          %v5118 = vld [vmem:[#allocation11 + $0x8] sm:$0xff]
          %v5119 = vld [vmem:[#allocation11 + $0x10] sm:$0xff]
          %v5120 = vld [vmem:[#allocation11 + $0x18] sm:$0xff]
          %v5121 = vld [vmem:[#allocation11 + $0x20] sm:$0xff]
          %v5122 = vld [vmem:[#allocation11 + $0x28] sm:$0xff]
          %v5123 = vld [vmem:[#allocation11 + $0x30] sm:$0xff]
          %v5124 = vld [vmem:[#allocation11 + $0x38] sm:$0xff]
          %v5125 = vld [vmem:[#allocation11 + $0x40] sm:$0xff]
          %v5126 = vld [vmem:[#allocation11 + $0x48] sm:$0xff]
          %v5127 = vld [vmem:[#allocation11 + $0x50] sm:$0xff]
          %v5128 = vld [vmem:[#allocation11 + $0x58] sm:$0xff]
          %v5129 = vld [vmem:[#allocation11 + $0x60] sm:$0xff]
          %v5130 = vld [vmem:[#allocation11 + $0x68] sm:$0xff]
          %v5131 = vld [vmem:[#allocation11 + $0x70] sm:$0xff]
          %v5132 = vld [vmem:[#allocation11 + $0x78] sm:$0xff]
          %5134 = vset.pattern.permute.xlu0 0
          %5135 = vperm.xlu0 %5134, %v4989
          %v5136 = vpop.permute.xlu0 %5135
          %5139 = vset.pattern.permute.xlu0 0
          %5140 = vperm.xlu0 %5139, %v4990
          %v5141 = vpop.permute.xlu0 %5140
          %5144 = vset.pattern.permute.xlu0 0
          %5145 = vperm.xlu0 %5144, %v4991
          %v5146 = vpop.permute.xlu0 %5145
          %5149 = vset.pattern.permute.xlu0 0
          %5150 = vperm.xlu0 %5149, %v4992
          %v5151 = vpop.permute.xlu0 %5150
          %5154 = vset.pattern.permute.xlu0 0
          %5155 = vperm.xlu0 %5154, %v4993
          %v5156 = vpop.permute.xlu0 %5155
          %5159 = vset.pattern.permute.xlu0 0
          %5160 = vperm.xlu0 %5159, %v4994
          %v5161 = vpop.permute.xlu0 %5160
          %5164 = vset.pattern.permute.xlu0 0
          %5165 = vperm.xlu0 %5164, %v4995
          %v5166 = vpop.permute.xlu0 %5165
          %5169 = vset.pattern.permute.xlu0 0
          %5170 = vperm.xlu0 %5169, %v4996
          %v5171 = vpop.permute.xlu0 %5170
          %5174 = vset.pattern.permute.xlu0 0
          %5175 = vperm.xlu0 %5174, %v4997
          %v5176 = vpop.permute.xlu0 %5175
          %5179 = vset.pattern.permute.xlu0 0
          %5180 = vperm.xlu0 %5179, %v4998
          %v5181 = vpop.permute.xlu0 %5180
          %5184 = vset.pattern.permute.xlu0 0
          %5185 = vperm.xlu0 %5184, %v4999
          %v5186 = vpop.permute.xlu0 %5185
          %5189 = vset.pattern.permute.xlu0 0
          %5190 = vperm.xlu0 %5189, %v5000
          %v5191 = vpop.permute.xlu0 %5190
          %5194 = vset.pattern.permute.xlu0 0
          %5195 = vperm.xlu0 %5194, %v5001
          %v5196 = vpop.permute.xlu0 %5195
          %5199 = vset.pattern.permute.xlu0 0
          %5200 = vperm.xlu0 %5199, %v5002
          %v5201 = vpop.permute.xlu0 %5200
          %5204 = vset.pattern.permute.xlu0 0
          %5205 = vperm.xlu0 %5204, %v5003
          %v5206 = vpop.permute.xlu0 %5205
          %5209 = vset.pattern.permute.xlu0 0
          %5210 = vperm.xlu0 %5209, %v5004
          %v5211 = vpop.permute.xlu0 %5210
          %v5213 = vmul.f32 %v5117, %v5136
          %v5214 = vmul.f32 %v5118, %v5141
          %v5215 = vmul.f32 %v5119, %v5146
          %v5216 = vmul.f32 %v5120, %v5151
          %v5217 = vmul.f32 %v5121, %v5156
          %v5218 = vmul.f32 %v5122, %v5161
          %v5219 = vmul.f32 %v5123, %v5166
          %v5220 = vmul.f32 %v5124, %v5171
          %v5221 = vmul.f32 %v5125, %v5176
          %v5222 = vmul.f32 %v5126, %v5181
          %v5223 = vmul.f32 %v5127, %v5186
          %v5224 = vmul.f32 %v5128, %v5191
          %v5225 = vmul.f32 %v5129, %v5196
          %v5226 = vmul.f32 %v5130, %v5201
          %v5227 = vmul.f32 %v5131, %v5206
          %v5228 = vmul.f32 %v5132, %v5211
          %v5229 = vld [vmem:[#allocation2] sm:$0xff]
          %v5230 = vld [vmem:[#allocation2 + $0x8] sm:$0xff]
          %v5231 = vld [vmem:[#allocation2 + $0x10] sm:$0xff]
          %v5232 = vld [vmem:[#allocation2 + $0x18] sm:$0xff]
          %v5233 = vld [vmem:[#allocation2 + $0x20] sm:$0xff]
          %v5234 = vld [vmem:[#allocation2 + $0x28] sm:$0xff]
          %v5235 = vld [vmem:[#allocation2 + $0x30] sm:$0xff]
          %v5236 = vld [vmem:[#allocation2 + $0x38] sm:$0xff]
          %v5237 = vld [vmem:[#allocation2 + $0x40] sm:$0xff]
          %v5238 = vld [vmem:[#allocation2 + $0x48] sm:$0xff]
          %v5239 = vld [vmem:[#allocation2 + $0x50] sm:$0xff]
          %v5240 = vld [vmem:[#allocation2 + $0x58] sm:$0xff]
          %v5241 = vld [vmem:[#allocation2 + $0x60] sm:$0xff]
          %v5242 = vld [vmem:[#allocation2 + $0x68] sm:$0xff]
          %v5243 = vld [vmem:[#allocation2 + $0x70] sm:$0xff]
          %v5244 = vld [vmem:[#allocation2 + $0x78] sm:$0xff]
          %5245 = vxpose.xlu0.b32.start [1/16] %v5101, 128
          %5246 = vxpose.xlu0.b32.cont [2/16] %v5102, 128
          %5247 = vxpose.xlu0.b32.cont [3/16] %v5103, 128
          %5248 = vxpose.xlu0.b32.cont [4/16] %v5104, 128
          %5249 = vxpose.xlu0.b32.cont [5/16] %v5105, 128
          %5250 = vxpose.xlu0.b32.cont [6/16] %v5106, 128
          %5251 = vxpose.xlu0.b32.cont [7/16] %v5107, 128
          %5252 = vxpose.xlu0.b32.cont [8/16] %v5108, 128
          %5253 = vxpose.xlu0.b32.cont [9/16] %v5109, 128
          %5254 = vxpose.xlu0.b32.cont [10/16] %v5110, 128
          %5255 = vxpose.xlu0.b32.cont [11/16] %v5111, 128
          %5256 = vxpose.xlu0.b32.cont [12/16] %v5112, 128
          %5257 = vxpose.xlu0.b32.cont [13/16] %v5113, 128
          %5258 = vxpose.xlu0.b32.cont [14/16] %v5114, 128
          %5259 = vxpose.xlu0.b32.cont [15/16] %v5115, 128
          %5260 = vxpose.xlu0.b32.end [16/16] %v5116, 128
          %v5261 = vpop.trf.xlu0
          %v5262 = vpop.trf.xlu0
          %v5263 = vpop.trf.xlu0
          %v5264 = vpop.trf.xlu0
          %v5265 = vpop.trf.xlu0
          %v5266 = vpop.trf.xlu0
          %v5267 = vpop.trf.xlu0
          %v5268 = vpop.trf.xlu0
          %v5269 = vpop.trf.xlu0
          %v5270 = vpop.trf.xlu0
          %v5271 = vpop.trf.xlu0
          %v5272 = vpop.trf.xlu0
          %v5273 = vpop.trf.xlu0
          %v5274 = vpop.trf.xlu0
          %v5275 = vpop.trf.xlu0
          %v5276 = vpop.trf.xlu0
          %v5277 = vadd.f32 %v5229, %v5261
          %v5278 = vadd.f32 %v5230, %v5262
          %v5279 = vadd.f32 %v5231, %v5263
          %v5280 = vadd.f32 %v5232, %v5264
          %v5281 = vadd.f32 %v5233, %v5265
          %v5282 = vadd.f32 %v5234, %v5266
          %v5283 = vadd.f32 %v5235, %v5267
          %v5284 = vadd.f32 %v5236, %v5268
          %v5285 = vadd.f32 %v5237, %v5269
          %v5286 = vadd.f32 %v5238, %v5270
          %v5287 = vadd.f32 %v5239, %v5271
          %v5288 = vadd.f32 %v5240, %v5272
          %v5289 = vadd.f32 %v5241, %v5273
          %v5290 = vadd.f32 %v5242, %v5274
          %v5291 = vadd.f32 %v5243, %v5275
          %v5292 = vadd.f32 %v5244, %v5276
          %v5293 = vld [vmem:[#allocation3] sm:$0xff]
          %v5294 = vld [vmem:[#allocation3 + $0x8] sm:$0xff]
          %v5295 = vld [vmem:[#allocation3 + $0x10] sm:$0xff]
          %v5296 = vld [vmem:[#allocation3 + $0x18] sm:$0xff]
          %v5297 = vld [vmem:[#allocation3 + $0x20] sm:$0xff]
          %v5298 = vld [vmem:[#allocation3 + $0x28] sm:$0xff]
          %v5299 = vld [vmem:[#allocation3 + $0x30] sm:$0xff]
          %v5300 = vld [vmem:[#allocation3 + $0x38] sm:$0xff]
          %v5301 = vld [vmem:[#allocation3 + $0x40] sm:$0xff]
          %v5302 = vld [vmem:[#allocation3 + $0x48] sm:$0xff]
          %v5303 = vld [vmem:[#allocation3 + $0x50] sm:$0xff]
          %v5304 = vld [vmem:[#allocation3 + $0x58] sm:$0xff]
          %v5305 = vld [vmem:[#allocation3 + $0x60] sm:$0xff]
          %v5306 = vld [vmem:[#allocation3 + $0x68] sm:$0xff]
          %v5307 = vld [vmem:[#allocation3 + $0x70] sm:$0xff]
          %v5308 = vld [vmem:[#allocation3 + $0x78] sm:$0xff]
          %5309 = vxpose.xlu0.b32.start [1/16] %v5213, 128
          %5310 = vxpose.xlu0.b32.cont [2/16] %v5214, 128
          %5311 = vxpose.xlu0.b32.cont [3/16] %v5215, 128
          %5312 = vxpose.xlu0.b32.cont [4/16] %v5216, 128
          %5313 = vxpose.xlu0.b32.cont [5/16] %v5217, 128
          %5314 = vxpose.xlu0.b32.cont [6/16] %v5218, 128
          %5315 = vxpose.xlu0.b32.cont [7/16] %v5219, 128
          %5316 = vxpose.xlu0.b32.cont [8/16] %v5220, 128
          %5317 = vxpose.xlu0.b32.cont [9/16] %v5221, 128
          %5318 = vxpose.xlu0.b32.cont [10/16] %v5222, 128
          %5319 = vxpose.xlu0.b32.cont [11/16] %v5223, 128
          %5320 = vxpose.xlu0.b32.cont [12/16] %v5224, 128
          %5321 = vxpose.xlu0.b32.cont [13/16] %v5225, 128
          %5322 = vxpose.xlu0.b32.cont [14/16] %v5226, 128
          %5323 = vxpose.xlu0.b32.cont [15/16] %v5227, 128
          %5324 = vxpose.xlu0.b32.end [16/16] %v5228, 128
          %v5325 = vpop.trf.xlu0
          %v5326 = vpop.trf.xlu0
          %v5327 = vpop.trf.xlu0
          %v5328 = vpop.trf.xlu0
          %v5329 = vpop.trf.xlu0
          %v5330 = vpop.trf.xlu0
          %v5331 = vpop.trf.xlu0
          %v5332 = vpop.trf.xlu0
          %v5333 = vpop.trf.xlu0
          %v5334 = vpop.trf.xlu0
          %v5335 = vpop.trf.xlu0
          %v5336 = vpop.trf.xlu0
          %v5337 = vpop.trf.xlu0
          %v5338 = vpop.trf.xlu0
          %v5339 = vpop.trf.xlu0
          %v5340 = vpop.trf.xlu0
          %v5341 = vadd.f32 %v5293, %v5325
          %v5342 = vadd.f32 %v5294, %v5326
          %v5343 = vadd.f32 %v5295, %v5327
          %v5344 = vadd.f32 %v5296, %v5328
          %v5345 = vadd.f32 %v5297, %v5329
          %v5346 = vadd.f32 %v5298, %v5330
          %v5347 = vadd.f32 %v5299, %v5331
          %v5348 = vadd.f32 %v5300, %v5332
          %v5349 = vadd.f32 %v5301, %v5333
          %v5350 = vadd.f32 %v5302, %v5334
          %v5351 = vadd.f32 %v5303, %v5335
          %v5352 = vadd.f32 %v5304, %v5336
          %v5353 = vadd.f32 %v5305, %v5337
          %v5354 = vadd.f32 %v5306, %v5338
          %v5355 = vadd.f32 %v5307, %v5339
          %v5356 = vadd.f32 %v5308, %v5340
          %v5357 = vld [vmem:[%s13] sm:$0xff]
          %v5358 = vld [vmem:[%s13 + $0x8] sm:$0xff]
          %v5359 = vld [vmem:[%s13 + $0x10] sm:$0xff]
          %v5360 = vld [vmem:[%s13 + $0x18] sm:$0xff]
          %v5361 = vld [vmem:[%s13 + $0x20] sm:$0xff]
          %v5362 = vld [vmem:[%s13 + $0x28] sm:$0xff]
          %v5363 = vld [vmem:[%s13 + $0x30] sm:$0xff]
          %v5364 = vld [vmem:[%s13 + $0x38] sm:$0xff]
          %v5365 = vld [vmem:[%s13 + $0x40] sm:$0xff]
          %v5366 = vld [vmem:[%s13 + $0x48] sm:$0xff]
          %v5367 = vld [vmem:[%s13 + $0x50] sm:$0xff]
          %v5368 = vld [vmem:[%s13 + $0x58] sm:$0xff]
          %v5369 = vld [vmem:[%s13 + $0x60] sm:$0xff]
          %v5370 = vld [vmem:[%s13 + $0x68] sm:$0xff]
          %v5371 = vld [vmem:[%s13 + $0x70] sm:$0xff]
          %v5372 = vld [vmem:[%s13 + $0x78] sm:$0xff]
          %v5373 = vld [vmem:[#allocation19] sm:$0xff]
          %v5374 = vld [vmem:[#allocation19 + $0x8] sm:$0xff]
          %v5375 = vld [vmem:[#allocation19 + $0x10] sm:$0xff]
          %v5376 = vld [vmem:[#allocation19 + $0x18] sm:$0xff]
          %v5377 = vld [vmem:[#allocation19 + $0x20] sm:$0xff]
          %v5378 = vld [vmem:[#allocation19 + $0x28] sm:$0xff]
          %v5379 = vld [vmem:[#allocation19 + $0x30] sm:$0xff]
          %v5380 = vld [vmem:[#allocation19 + $0x38] sm:$0xff]
          %v5381 = vld [vmem:[#allocation19 + $0x40] sm:$0xff]
          %v5382 = vld [vmem:[#allocation19 + $0x48] sm:$0xff]
          %v5383 = vld [vmem:[#allocation19 + $0x50] sm:$0xff]
          %v5384 = vld [vmem:[#allocation19 + $0x58] sm:$0xff]
          %v5385 = vld [vmem:[#allocation19 + $0x60] sm:$0xff]
          %v5386 = vld [vmem:[#allocation19 + $0x68] sm:$0xff]
          %v5387 = vld [vmem:[#allocation19 + $0x70] sm:$0xff]
          %v5388 = vld [vmem:[#allocation19 + $0x78] sm:$0xff]
          %5389 = vmatprep.subr.mxu0 0.0
          %5390 = vmatpush1.msra.mxu0 %v5341
          %5391 = vmatprep.subr.mxu0 0.0
          %5392 = vmatpush1.msra.mxu0 %v5342
          %5393 = vmatprep.subr.mxu0 0.0
          %5394 = vmatpush1.msra.mxu0 %v5343
          %5395 = vmatprep.subr.mxu0 0.0
          %5396 = vmatpush1.msra.mxu0 %v5344
          %5397 = vmatprep.subr.mxu0 0.0
          %5398 = vmatpush1.msra.mxu0 %v5345
          %5399 = vmatprep.subr.mxu0 0.0
          %5400 = vmatpush1.msra.mxu0 %v5346
          %5401 = vmatprep.subr.mxu0 0.0
          %5402 = vmatpush1.msra.mxu0 %v5347
          %5403 = vmatprep.subr.mxu0 0.0
          %5404 = vmatpush1.msra.mxu0 %v5348
          %5405 = vmatprep.subr.mxu0 0.0
          %5406 = vmatpush1.msra.mxu0 %v5349
          %5407 = vmatprep.subr.mxu0 0.0
          %5408 = vmatpush1.msra.mxu0 %v5350
          %5409 = vmatprep.subr.mxu0 0.0
          %5410 = vmatpush1.msra.mxu0 %v5351
          %5411 = vmatprep.subr.mxu0 0.0
          %5412 = vmatpush1.msra.mxu0 %v5352
          %5413 = vmatprep.subr.mxu0 0.0
          %5414 = vmatpush1.msra.mxu0 %v5353
          %5415 = vmatprep.subr.mxu0 0.0
          %5416 = vmatpush1.msra.mxu0 %v5354
          %5417 = vmatprep.subr.mxu0 0.0
          %5418 = vmatpush1.msra.mxu0 %v5355
          %5419 = vmatprep.subr.mxu0 0.0
          %5420 = vmatpush1.msra.mxu0 %v5356
          %5421 = vmatprep.subr.mxu0 0.0
          %5422 = vmatpush1.msra.mxu0 0.0
          %5423 = vmatprep.subr.mxu0 0.0
          %5424 = vmatpush1.msra.mxu0 0.0
          %5425 = vmatprep.subr.mxu0 0.0
          %5426 = vmatpush1.msra.mxu0 0.0
          %5427 = vmatprep.subr.mxu0 0.0
          %5428 = vmatpush1.msra.mxu0 0.0
          %5429 = vmatprep.subr.mxu0 0.0
          %5430 = vmatpush1.msra.mxu0 0.0
          %5431 = vmatprep.subr.mxu0 0.0
          %5432 = vmatpush1.msra.mxu0 0.0
          %5433 = vmatprep.subr.mxu0 0.0
          %5434 = vmatpush1.msra.mxu0 0.0
          %5435 = vmatprep.subr.mxu0 0.0
          %5436 = vmatpush1.msra.mxu0 0.0
          %5437 = vmatprep.subr.mxu0 0.0
          %5438 = vmatpush1.msra.mxu0 0.0
          %5439 = vmatprep.subr.mxu0 0.0
          %5440 = vmatpush1.msra.mxu0 0.0
          %5441 = vmatprep.subr.mxu0 0.0
          %5442 = vmatpush1.msra.mxu0 0.0
          %5443 = vmatprep.subr.mxu0 0.0
          %5444 = vmatpush1.msra.mxu0 0.0
          %5445 = vmatprep.subr.mxu0 0.0
          %5446 = vmatpush1.msra.mxu0 0.0
          %5447 = vmatprep.subr.mxu0 0.0
          %5448 = vmatpush1.msra.mxu0 0.0
          %5449 = vmatprep.subr.mxu0 0.0
          %5450 = vmatpush1.msra.mxu0 0.0
          %5451 = vmatprep.subr.mxu0 0.0
          %5452 = vmatpush1.msra.mxu0 0.0
          %5453 = vmatprep.mubr.f32.mxu0 0.0
          %5454 = vmatmul.mubr.f32.gmra.mrb[0].mxu0 %v5373
          %v5455 = vpop.f32.mrb[0].mxu0
          %v5456 = vadd.f32 0.0, %v5455
          %v5457 = vpop.f32.mrb[0].mxu0
          %5458 = vmatprep.mubr.f32.mxu0 0.0
          %5459 = vmatmul.mubr.f32.gmra.mrb[0].mxu0 %v5374
          %v5460 = vpop.f32.mrb[0].mxu0
          %v5461 = vadd.f32 0.0, %v5460
          %v5462 = vpop.f32.mrb[0].mxu0
          %5463 = vmatprep.mubr.f32.mxu0 0.0
          %5464 = vmatmul.mubr.f32.gmra.mrb[0].mxu0 %v5375
          %v5465 = vpop.f32.mrb[0].mxu0
          %v5466 = vadd.f32 0.0, %v5465
          %v5467 = vpop.f32.mrb[0].mxu0
          %5468 = vmatprep.mubr.f32.mxu0 0.0
          %5469 = vmatmul.mubr.f32.gmra.mrb[0].mxu0 %v5376
          %v5470 = vpop.f32.mrb[0].mxu0
          %v5471 = vadd.f32 0.0, %v5470
          %v5472 = vpop.f32.mrb[0].mxu0
          %5473 = vmatprep.mubr.f32.mxu0 0.0
          %5474 = vmatmul.mubr.f32.gmra.mrb[0].mxu0 %v5377
          %v5475 = vpop.f32.mrb[0].mxu0
          %v5476 = vadd.f32 0.0, %v5475
          %v5477 = vpop.f32.mrb[0].mxu0
          %5478 = vmatprep.mubr.f32.mxu0 0.0
          %5479 = vmatmul.mubr.f32.gmra.mrb[0].mxu0 %v5378
          %v5480 = vpop.f32.mrb[0].mxu0
          %v5481 = vadd.f32 0.0, %v5480
          %v5482 = vpop.f32.mrb[0].mxu0
          %5483 = vmatprep.mubr.f32.mxu0 0.0
          %5484 = vmatmul.mubr.f32.gmra.mrb[0].mxu0 %v5379
          %v5485 = vpop.f32.mrb[0].mxu0
          %v5486 = vadd.f32 0.0, %v5485
          %v5487 = vpop.f32.mrb[0].mxu0
          %5488 = vmatprep.mubr.f32.mxu0 0.0
          %5489 = vmatmul.mubr.f32.gmra.mrb[0].mxu0 %v5380
          %v5490 = vpop.f32.mrb[0].mxu0
          %v5491 = vadd.f32 0.0, %v5490
          %v5492 = vpop.f32.mrb[0].mxu0
          %5493 = vmatprep.mubr.f32.mxu0 0.0
          %5494 = vmatmul.mubr.f32.gmra.mrb[0].mxu0 %v5381
          %v5495 = vpop.f32.mrb[0].mxu0
          %v5496 = vadd.f32 0.0, %v5495
          %v5497 = vpop.f32.mrb[0].mxu0
          %5498 = vmatprep.mubr.f32.mxu0 0.0
          %5499 = vmatmul.mubr.f32.gmra.mrb[0].mxu0 %v5382
          %v5500 = vpop.f32.mrb[0].mxu0
          %v5501 = vadd.f32 0.0, %v5500
          %v5502 = vpop.f32.mrb[0].mxu0
          %5503 = vmatprep.mubr.f32.mxu0 0.0
          %5504 = vmatmul.mubr.f32.gmra.mrb[0].mxu0 %v5383
          %v5505 = vpop.f32.mrb[0].mxu0
          %v5506 = vadd.f32 0.0, %v5505
          %v5507 = vpop.f32.mrb[0].mxu0
          %5508 = vmatprep.mubr.f32.mxu0 0.0
          %5509 = vmatmul.mubr.f32.gmra.mrb[0].mxu0 %v5384
          %v5510 = vpop.f32.mrb[0].mxu0
          %v5511 = vadd.f32 0.0, %v5510
          %v5512 = vpop.f32.mrb[0].mxu0
          %5513 = vmatprep.mubr.f32.mxu0 0.0
          %5514 = vmatmul.mubr.f32.gmra.mrb[0].mxu0 %v5385
          %v5515 = vpop.f32.mrb[0].mxu0
          %v5516 = vadd.f32 0.0, %v5515
          %v5517 = vpop.f32.mrb[0].mxu0
          %5518 = vmatprep.mubr.f32.mxu0 0.0
          %5519 = vmatmul.mubr.f32.gmra.mrb[0].mxu0 %v5386
          %v5520 = vpop.f32.mrb[0].mxu0
          %v5521 = vadd.f32 0.0, %v5520
          %v5522 = vpop.f32.mrb[0].mxu0
          %5523 = vmatprep.mubr.f32.mxu0 0.0
          %5524 = vmatmul.mubr.f32.gmra.mrb[0].mxu0 %v5387
          %v5525 = vpop.f32.mrb[0].mxu0
          %v5526 = vadd.f32 0.0, %v5525
          %v5527 = vpop.f32.mrb[0].mxu0
          %5528 = vmatprep.mubr.f32.mxu0 0.0
          %5529 = vmatmul.mubr.f32.gmra.mrb[0].mxu0 %v5388
          %v5530 = vpop.f32.mrb[0].mxu0
          %v5531 = vadd.f32 0.0, %v5530
          %v5532 = vpop.f32.mrb[0].mxu0
          %5533 = vdwg.mxu0
          %5534 = vmatprep.subr.mxu0 0.0
          %5535 = vmatpush1.msra.mxu0 %v5277
          %5536 = vmatprep.subr.mxu0 0.0
          %5537 = vmatpush1.msra.mxu0 %v5278
          %5538 = vmatprep.subr.mxu0 0.0
          %5539 = vmatpush1.msra.mxu0 %v5279
          %5540 = vmatprep.subr.mxu0 0.0
          %5541 = vmatpush1.msra.mxu0 %v5280
          %5542 = vmatprep.subr.mxu0 0.0
          %5543 = vmatpush1.msra.mxu0 %v5281
          %5544 = vmatprep.subr.mxu0 0.0
          %5545 = vmatpush1.msra.mxu0 %v5282
          %5546 = vmatprep.subr.mxu0 0.0
          %5547 = vmatpush1.msra.mxu0 %v5283
          %5548 = vmatprep.subr.mxu0 0.0
          %5549 = vmatpush1.msra.mxu0 %v5284
          %5550 = vmatprep.subr.mxu0 0.0
          %5551 = vmatpush1.msra.mxu0 %v5285
          %5552 = vmatprep.subr.mxu0 0.0
          %5553 = vmatpush1.msra.mxu0 %v5286
          %5554 = vmatprep.subr.mxu0 0.0
          %5555 = vmatpush1.msra.mxu0 %v5287
          %5556 = vmatprep.subr.mxu0 0.0
          %5557 = vmatpush1.msra.mxu0 %v5288
          %5558 = vmatprep.subr.mxu0 0.0
          %5559 = vmatpush1.msra.mxu0 %v5289
          %5560 = vmatprep.subr.mxu0 0.0
          %5561 = vmatpush1.msra.mxu0 %v5290
          %5562 = vmatprep.subr.mxu0 0.0
          %5563 = vmatpush1.msra.mxu0 %v5291
          %5564 = vmatprep.subr.mxu0 0.0
          %5565 = vmatpush1.msra.mxu0 %v5292
          %5566 = vmatprep.subr.mxu0 0.0
          %5567 = vmatpush1.msra.mxu0 0.0
          %5568 = vmatprep.subr.mxu0 0.0
          %5569 = vmatpush1.msra.mxu0 0.0
          %5570 = vmatprep.subr.mxu0 0.0
          %5571 = vmatpush1.msra.mxu0 0.0
          %5572 = vmatprep.subr.mxu0 0.0
          %5573 = vmatpush1.msra.mxu0 0.0
          %5574 = vmatprep.subr.mxu0 0.0
          %5575 = vmatpush1.msra.mxu0 0.0
          %5576 = vmatprep.subr.mxu0 0.0
          %5577 = vmatpush1.msra.mxu0 0.0
          %5578 = vmatprep.subr.mxu0 0.0
          %5579 = vmatpush1.msra.mxu0 0.0
          %5580 = vmatprep.subr.mxu0 0.0
          %5581 = vmatpush1.msra.mxu0 0.0
          %5582 = vmatprep.subr.mxu0 0.0
          %5583 = vmatpush1.msra.mxu0 0.0
          %5584 = vmatprep.subr.mxu0 0.0
          %5585 = vmatpush1.msra.mxu0 0.0
          %5586 = vmatprep.subr.mxu0 0.0
          %5587 = vmatpush1.msra.mxu0 0.0
          %5588 = vmatprep.subr.mxu0 0.0
          %5589 = vmatpush1.msra.mxu0 0.0
          %5590 = vmatprep.subr.mxu0 0.0
          %5591 = vmatpush1.msra.mxu0 0.0
          %5592 = vmatprep.subr.mxu0 0.0
          %5593 = vmatpush1.msra.mxu0 0.0
          %5594 = vmatprep.subr.mxu0 0.0
          %5595 = vmatpush1.msra.mxu0 0.0
          %5596 = vmatprep.subr.mxu0 0.0
          %5597 = vmatpush1.msra.mxu0 0.0
          %5598 = vmatprep.mubr.f32.mxu0 0.0
          %5599 = vmatmul.mubr.f32.gmra.mrb[0].mxu0 %v5357
          %v5600 = vpop.f32.mrb[0].mxu0
          %v5601 = vadd.f32 %v5456, %v5600
          %v5602 = vpop.f32.mrb[0].mxu0
          %5603 = vmatprep.mubr.f32.mxu0 0.0
          %5604 = vmatmul.mubr.f32.gmra.mrb[0].mxu0 %v5358
          %v5605 = vpop.f32.mrb[0].mxu0
          %v5606 = vadd.f32 %v5461, %v5605
          %v5607 = vpop.f32.mrb[0].mxu0
          %5608 = vmatprep.mubr.f32.mxu0 0.0
          %5609 = vmatmul.mubr.f32.gmra.mrb[0].mxu0 %v5359
          %v5610 = vpop.f32.mrb[0].mxu0
          %v5611 = vadd.f32 %v5466, %v5610
          %v5612 = vpop.f32.mrb[0].mxu0
          %5613 = vmatprep.mubr.f32.mxu0 0.0
          %5614 = vmatmul.mubr.f32.gmra.mrb[0].mxu0 %v5360
          %v5615 = vpop.f32.mrb[0].mxu0
          %v5616 = vadd.f32 %v5471, %v5615
          %v5617 = vpop.f32.mrb[0].mxu0
          %5618 = vmatprep.mubr.f32.mxu0 0.0
          %5619 = vmatmul.mubr.f32.gmra.mrb[0].mxu0 %v5361
          %v5620 = vpop.f32.mrb[0].mxu0
          %v5621 = vadd.f32 %v5476, %v5620
          %v5622 = vpop.f32.mrb[0].mxu0
          %5623 = vmatprep.mubr.f32.mxu0 0.0
          %5624 = vmatmul.mubr.f32.gmra.mrb[0].mxu0 %v5362
          %v5625 = vpop.f32.mrb[0].mxu0
          %v5626 = vadd.f32 %v5481, %v5625
          %v5627 = vpop.f32.mrb[0].mxu0
          %5628 = vmatprep.mubr.f32.mxu0 0.0
          %5629 = vmatmul.mubr.f32.gmra.mrb[0].mxu0 %v5363
          %v5630 = vpop.f32.mrb[0].mxu0
          %v5631 = vadd.f32 %v5486, %v5630
          %v5632 = vpop.f32.mrb[0].mxu0
          %5633 = vmatprep.mubr.f32.mxu0 0.0
          %5634 = vmatmul.mubr.f32.gmra.mrb[0].mxu0 %v5364
          %v5635 = vpop.f32.mrb[0].mxu0
          %v5636 = vadd.f32 %v5491, %v5635
          %v5637 = vpop.f32.mrb[0].mxu0
          %5638 = vmatprep.mubr.f32.mxu0 0.0
          %5639 = vmatmul.mubr.f32.gmra.mrb[0].mxu0 %v5365
          %v5640 = vpop.f32.mrb[0].mxu0
          %v5641 = vadd.f32 %v5496, %v5640
          %v5642 = vpop.f32.mrb[0].mxu0
          %5643 = vmatprep.mubr.f32.mxu0 0.0
          %5644 = vmatmul.mubr.f32.gmra.mrb[0].mxu0 %v5366
          %v5645 = vpop.f32.mrb[0].mxu0
          %v5646 = vadd.f32 %v5501, %v5645
          %v5647 = vpop.f32.mrb[0].mxu0
          %5648 = vmatprep.mubr.f32.mxu0 0.0
          %5649 = vmatmul.mubr.f32.gmra.mrb[0].mxu0 %v5367
          %v5650 = vpop.f32.mrb[0].mxu0
          %v5651 = vadd.f32 %v5506, %v5650
          %v5652 = vpop.f32.mrb[0].mxu0
          %5653 = vmatprep.mubr.f32.mxu0 0.0
          %5654 = vmatmul.mubr.f32.gmra.mrb[0].mxu0 %v5368
          %v5655 = vpop.f32.mrb[0].mxu0
          %v5656 = vadd.f32 %v5511, %v5655
          %v5657 = vpop.f32.mrb[0].mxu0
          %5658 = vmatprep.mubr.f32.mxu0 0.0
          %5659 = vmatmul.mubr.f32.gmra.mrb[0].mxu0 %v5369
          %v5660 = vpop.f32.mrb[0].mxu0
          %v5661 = vadd.f32 %v5516, %v5660
          %v5662 = vpop.f32.mrb[0].mxu0
          %5663 = vmatprep.mubr.f32.mxu0 0.0
          %5664 = vmatmul.mubr.f32.gmra.mrb[0].mxu0 %v5370
          %v5665 = vpop.f32.mrb[0].mxu0
          %v5666 = vadd.f32 %v5521, %v5665
          %v5667 = vpop.f32.mrb[0].mxu0
          %5668 = vmatprep.mubr.f32.mxu0 0.0
          %5669 = vmatmul.mubr.f32.gmra.mrb[0].mxu0 %v5371
          %v5670 = vpop.f32.mrb[0].mxu0
          %v5671 = vadd.f32 %v5526, %v5670
          %v5672 = vpop.f32.mrb[0].mxu0
          %5673 = vmatprep.mubr.f32.mxu0 0.0
          %5674 = vmatmul.mubr.f32.gmra.mrb[0].mxu0 %v5372
          %v5675 = vpop.f32.mrb[0].mxu0
          %v5676 = vadd.f32 %v5531, %v5675
          %v5677 = vpop.f32.mrb[0].mxu0
          %5678 = vdwg.mxu0
          %v5679 = vld [vmem:[%s15] sm:$0xff]
          %v5680 = vld [vmem:[%s15 + $0x8] sm:$0xff]
          %v5681 = vld [vmem:[%s15 + $0x10] sm:$0xff]
          %v5682 = vld [vmem:[%s15 + $0x18] sm:$0xff]
          %v5683 = vld [vmem:[%s15 + $0x20] sm:$0xff]
          %v5684 = vld [vmem:[%s15 + $0x28] sm:$0xff]
          %v5685 = vld [vmem:[%s15 + $0x30] sm:$0xff]
          %v5686 = vld [vmem:[%s15 + $0x38] sm:$0xff]
          %v5687 = vld [vmem:[%s15 + $0x40] sm:$0xff]
          %v5688 = vld [vmem:[%s15 + $0x48] sm:$0xff]
          %v5689 = vld [vmem:[%s15 + $0x50] sm:$0xff]
          %v5690 = vld [vmem:[%s15 + $0x58] sm:$0xff]
          %v5691 = vld [vmem:[%s15 + $0x60] sm:$0xff]
          %v5692 = vld [vmem:[%s15 + $0x68] sm:$0xff]
          %v5693 = vld [vmem:[%s15 + $0x70] sm:$0xff]
          %v5694 = vld [vmem:[%s15 + $0x78] sm:$0xff]
          %5696 = vset.pattern.permute.xlu0 0
          %5697 = vperm.xlu0 %5696, %v5679
          %v5698 = vpop.permute.xlu0 %5697
          %5701 = vset.pattern.permute.xlu0 0
          %5702 = vperm.xlu0 %5701, %v5680
          %v5703 = vpop.permute.xlu0 %5702
          %5706 = vset.pattern.permute.xlu0 0
          %5707 = vperm.xlu0 %5706, %v5681
          %v5708 = vpop.permute.xlu0 %5707
          %5711 = vset.pattern.permute.xlu0 0
          %5712 = vperm.xlu0 %5711, %v5682
          %v5713 = vpop.permute.xlu0 %5712
          %5716 = vset.pattern.permute.xlu0 0
          %5717 = vperm.xlu0 %5716, %v5683
          %v5718 = vpop.permute.xlu0 %5717
          %5721 = vset.pattern.permute.xlu0 0
          %5722 = vperm.xlu0 %5721, %v5684
          %v5723 = vpop.permute.xlu0 %5722
          %5726 = vset.pattern.permute.xlu0 0
          %5727 = vperm.xlu0 %5726, %v5685
          %v5728 = vpop.permute.xlu0 %5727
          %5731 = vset.pattern.permute.xlu0 0
          %5732 = vperm.xlu0 %5731, %v5686
          %v5733 = vpop.permute.xlu0 %5732
          %5736 = vset.pattern.permute.xlu0 0
          %5737 = vperm.xlu0 %5736, %v5687
          %v5738 = vpop.permute.xlu0 %5737
          %5741 = vset.pattern.permute.xlu0 0
          %5742 = vperm.xlu0 %5741, %v5688
          %v5743 = vpop.permute.xlu0 %5742
          %5746 = vset.pattern.permute.xlu0 0
          %5747 = vperm.xlu0 %5746, %v5689
          %v5748 = vpop.permute.xlu0 %5747
          %5751 = vset.pattern.permute.xlu0 0
          %5752 = vperm.xlu0 %5751, %v5690
          %v5753 = vpop.permute.xlu0 %5752
          %5756 = vset.pattern.permute.xlu0 0
          %5757 = vperm.xlu0 %5756, %v5691
          %v5758 = vpop.permute.xlu0 %5757
          %5761 = vset.pattern.permute.xlu0 0
          %5762 = vperm.xlu0 %5761, %v5692
          %v5763 = vpop.permute.xlu0 %5762
          %5766 = vset.pattern.permute.xlu0 0
          %5767 = vperm.xlu0 %5766, %v5693
          %v5768 = vpop.permute.xlu0 %5767
          %5771 = vset.pattern.permute.xlu0 0
          %5772 = vperm.xlu0 %5771, %v5694
          %v5773 = vpop.permute.xlu0 %5772
          %v5775 = vadd.f32 %v5601, %v5698
          %v5776 = vadd.f32 %v5606, %v5703
          %v5777 = vadd.f32 %v5611, %v5708
          %v5778 = vadd.f32 %v5616, %v5713
          %v5779 = vadd.f32 %v5621, %v5718
          %v5780 = vadd.f32 %v5626, %v5723
          %v5781 = vadd.f32 %v5631, %v5728
          %v5782 = vadd.f32 %v5636, %v5733
          %v5783 = vadd.f32 %v5641, %v5738
          %v5784 = vadd.f32 %v5646, %v5743
          %v5785 = vadd.f32 %v5651, %v5748
          %v5786 = vadd.f32 %v5656, %v5753
          %v5787 = vadd.f32 %v5661, %v5758
          %v5788 = vadd.f32 %v5666, %v5763
          %v5789 = vadd.f32 %v5671, %v5768
          %v5790 = vadd.f32 %v5676, %v5773
          %5791 = vst [vmem:[%s734] sm:$0xff] %v5775
          %5792 = vst [vmem:[%s734 + $0x8] sm:$0xff] %v5776
          %5793 = vst [vmem:[%s734 + $0x10] sm:$0xff] %v5777
          %5794 = vst [vmem:[%s734 + $0x18] sm:$0xff] %v5778
          %5795 = vst [vmem:[%s734 + $0x20] sm:$0xff] %v5779
          %5796 = vst [vmem:[%s734 + $0x28] sm:$0xff] %v5780
          %5797 = vst [vmem:[%s734 + $0x30] sm:$0xff] %v5781
          %5798 = vst [vmem:[%s734 + $0x38] sm:$0xff] %v5782
          %5799 = vst [vmem:[%s734 + $0x40] sm:$0xff] %v5783
          %5800 = vst [vmem:[%s734 + $0x48] sm:$0xff] %v5784
          %5801 = vst [vmem:[%s734 + $0x50] sm:$0xff] %v5785
          %5802 = vst [vmem:[%s734 + $0x58] sm:$0xff] %v5786
          %5803 = vst [vmem:[%s734 + $0x60] sm:$0xff] %v5787
          %5804 = vst [vmem:[%s734 + $0x68] sm:$0xff] %v5788
          %5805 = vst [vmem:[%s734 + $0x70] sm:$0xff] %v5789
          %5806 = vst [vmem:[%s734 + $0x78] sm:$0xff] %v5790
        $region116: #{tpu_custom_call.1} parent=87 // pred_fallthru
          _
        %s5807 = sand.u32 %s458, 1
        %s5808 = scalar_lea.sflag [#allocation14], %s5807
        %s5809 = sand.u32 %s458, 1
        %s5810 = smul.addr %s5809, 128
        %s5811 = scalar_lea.vmem [#allocation22], %s5810
        // Predicated region
        $region117: #{tpu_custom_call.1} parent=87 // pred_check
          %p5812 = pneg %p468
        $region118: #{tpu_custom_call.1} parent=87 // pred_check_branch
          %5814 = sbr.rel (%p5812) target = $region120
        $region119: #{tpu_custom_call.1} parent=87 // pred_region
          %s5816 = ssub.s32 2048, 2048
          %5817 = vsyncadd %s5808, %s5816
          %s5818 = smul.addr %s44, 32
          %s5819 = sadd.s32 %s45, %s5818
          %s5820 = smul.addr %s5819, 128
          %s5821 = scalar_lea.hbm %s17, %s5820
          %s5822 = sshll.u32 %s5811, 4
          %s5823 = int_to_ptr.vmem [resolvable:$true] %s5822
          %5828 = dma.vmem_to_hbm [thread:$0]  %s5823, 2048, %s5821, %s5808, 128, 256, 8
        $region120: #{tpu_custom_call.1} parent=87 // pred_fallthru
          _
      $region88: #{tpu_custom_call.1} parent=5 // pred_fallthru
        _
      %p5829 = scmp.le.s32.totalorder 2, %s34
      // Predicated region
      $region121: #{tpu_custom_call.1} parent=5 // pred_check
        %p5830 = pneg %p5829
      $region122: #{tpu_custom_call.1} parent=5 // pred_check_branch
        %5832 = sbr.rel (%p5830) target = $region124
      $region123: #{tpu_custom_call.1} parent=5 // pred_region
        %s5833 = ssub.s32 %s34, 2
        // Predicated region
        $region125: #{tpu_custom_call.1} parent=123 // pred_check
          %p5834 = pneg %p474
        $region126: #{tpu_custom_call.1} parent=123 // pred_check_branch
          %5836 = sbr.rel (%p5834) target = $region128
        $region127: #{tpu_custom_call.1} parent=123 // pred_region
          %s5837 = sand.u32 %s459, 1
          %s5838 = scalar_lea.sflag [#allocation14], %s5837
          %s5839 = sand.u32 %s459, 1
          %s5840 = smul.addr %s5839, 128
          %s5841 = scalar_lea.vmem [#allocation22], %s5840
          %5842 = dma.done %s5838, 2048
        $region128: #{tpu_custom_call.1} parent=123 // pred_fallthru
          _
      $region124: #{tpu_custom_call.1} parent=5 // pred_fallthru
        _
    $region6: #{tpu_custom_call.1} parent=1 // loop_footer
      %s38 = sadd.s32 1, %s34
    $region7: #{tpu_custom_call.1} parent=1 // loop_footer_branch
      %33 = sbr.rel target = $region3
    $region8: #{tpu_custom_call.1} parent=1 // loop_exit
      _
    %5843 = vsyncpa [#allocation13], 1
    %s5844 = scalar_lea.sflag [#allocation13], 1
    %5845 = vsyncpa %s5844, 1
    %5846 = vsyncpa [#allocation17], 1
    %s5847 = scalar_lea.sflag [#allocation17], 1
    %5848 = vsyncpa %s5847, 1
    %5849 = vsyncpa [#allocation20], 1
    %5850 = vsyncpa [#allocation14], 1
    %s5851 = scalar_lea.sflag [#allocation14], 1
    %5852 = vsyncpa %s5851, 1
    %5853 = vsyncpa [#allocation15], 1
    %s5854 = scalar_lea.sflag [#allocation15], 1
    %5855 = vsyncpa %s5854, 1

</llo_original>
